<compile_context>
chip_gen: v7x
topology: tpu7x:2x2x1
jax: 0.10.0
libtpu: 0.0.40
codegen_flags: <defaults>
</compile_context>

<pallas_src>
import functools

import jax
import jax.numpy as jnp
from jax.experimental import pallas as pl
from jax.experimental.pallas import tpu as pltpu

_EPS = 1e-5  # torch.nn.InstanceNorm2d default


# ---------------------------------------------------------------------------
# VMEM budget / spatial tile selection
# ---------------------------------------------------------------------------
def _vmem_limit_bytes():
    """Per-generation VMEM limit (~3/4 of physical; conservative fallback)."""
    try:
        cap = int(pltpu.get_tpu_info().vmem_capacity_bytes)
    except Exception:  # interpret mode / older jax: assume the v7x 64 MiB floor
        cap = 64 * 1024 * 1024
    return max(32 * 1024 * 1024, (cap * 3) // 4)


def _conv_step_bytes(th, W, Cp, K):
    """Rough per-grid-step VMEM footprint of the conv kernel for a th-row tile."""
    wp = W + K - 1
    x_in = 2 * (th + K - 1) * wp * Cp * 2      # bf16 input tile, double-buffered
    grp = th * W * K * Cp * 2                  # one kernel-row tap group (bf16)
    acc = 2 * th * W * Cp * 4                  # f32 accumulator (+ slack)
    y_out = 2 * th * W * Cp * 2                # bf16 output tile, double-buffered
    wgt = 2 * K * K * Cp * Cp * 2              # resident weights
    return x_in + grp + acc + y_out + wgt + (2 << 20)


def _pick_tile_h(H, W, Cp, K, budget_bytes, batch):
    """Largest divisor of H whose conv tile fits `budget_bytes`.

    Prefers a choice that yields >= 2 total grid steps (megacore use at batch 1,
    pipeline overlap) when that does not force pathologically small tiles.
    """
    cands = [d for d in range(1, H + 1)
             if H % d == 0 and (d == H or (d * W) % 8 == 0)]
    fits = [d for d in cands if _conv_step_bytes(d, W, Cp, K) <= budget_bytes]
    if not fits:
        # TODO(synk): width (W) tiling for images too wide for a single row-tile.
        return cands[0]
    pref = [d for d in fits if (H // d) * batch >= 2]
    return max(pref) if pref else max(fits)


# ---------------------------------------------------------------------------
# Kernels
# ---------------------------------------------------------------------------
def _conv_stats_kernel(x_ref, w_ref, y_ref, sum_ref, ssq_ref, *, K, TH, W, Cp):
    """3x3 conv on one padded row-tile + per-tile channel sum / sum-of-squares.

    x_ref  : (TH+K-1, W+K-1, Cp) bf16 reflection-padded activation tile
    w_ref  : (K*K*Cp, Cp)        bf16 im2col weights (row order: kh, kw, cin)
    y_ref  : (TH*W, Cp)          bf16 raw conv output tile
    sum_ref/ssq_ref : (8, Cp)    f32 per-tile partials (row 0 is meaningful)
    """
    acc = None
    for kh in range(K):
        # One kernel row = K taps concatenated along lanes -> contraction K*Cp.
        grp = jnp.concatenate(
            [x_ref[kh:kh + TH, kw:kw + W, :] for kw in range(K)], axis=-1)
        grp = grp.reshape(TH * W, K * Cp)
        part = jnp.dot(grp, w_ref[kh * K * Cp:(kh + 1) * K * Cp, :],
                       preferred_element_type=jnp.float32)
        acc = part if acc is None else acc + part

    s = jnp.sum(acc, axis=0, keepdims=True)                # (1, Cp)
    ss = jnp.sum(acc * acc, axis=0, keepdims=True)         # (1, Cp)
    sum_ref[...] = jnp.broadcast_to(s, (8, Cp))
    ssq_ref[...] = jnp.broadcast_to(ss, (8, Cp))
    y_ref[...] = acc.astype(y_ref.dtype)


def _norm_kernel(y_ref, sc_ref, sh_ref, o_ref, *, relu):
    """out = y*scale + shift (optionally ReLU) in a single fused pass."""
    y = y_ref[...].astype(jnp.float32) * sc_ref[...] + sh_ref[...]
    if relu:
        y = jnp.maximum(y, 0.0)
    o_ref[...] = y.astype(o_ref.dtype)


def _norm_res_kernel(y_ref, sc_ref, sh_ref, res_ref, o_ref):
    """out = y*scale + shift + residual (fused)."""
    y = y_ref[...].astype(jnp.float32) * sc_ref[...] + sh_ref[...]
    o_ref[...] = (y + res_ref[...]).astype(o_ref.dtype)


# ---------------------------------------------------------------------------
# pallas_call wrappers
# ---------------------------------------------------------------------------
def _conv_pass(x_img, w_mat, *, K, H, W, Cp, tile_h, vmem_limit):
    """Conv over row tiles.  Returns bf16 y_raw (N, H*W, Cp) and f32 per-image
    channel sum / sum-of-squares (N, Cp)."""
    N = x_img.shape[0]
    pad = K // 2
    n_t = H // tile_h
    wp = W + 2 * pad

    xp = jnp.pad(x_img, ((0, 0), (pad, pad), (pad, pad), (0, 0)), mode="reflect")
    # Materialize overlapping (1-row halo) tiles so BlockSpec blocks don't
    # overlap; XLA fuses this with the reflect pad (pure data movement).
    x_tiles = jnp.stack(
        [xp[:, t * tile_h: t * tile_h + tile_h + 2 * pad] for t in range(n_t)],
        axis=1)                                            # (N, n_t, th+2p, wp, Cp)

    kernel = functools.partial(_conv_stats_kernel, K=K, TH=tile_h, W=W, Cp=Cp)
    y_raw, s_part, ss_part = pl.pallas_call(
        kernel,
        grid=(N, n_t),
        in_specs=[
            pl.BlockSpec((pl.Squeezed(), pl.Squeezed(), tile_h + 2 * pad, wp, Cp),
                         lambda b, t: (b, t, 0, 0, 0)),
            # Constant index_map: weights stay VMEM resident across the grid.
            pl.BlockSpec((K * K * Cp, Cp), lambda b, t: (0, 0)),
        ],
        out_specs=(
            pl.BlockSpec((pl.Squeezed(), tile_h * W, Cp), lambda b, t: (b, t, 0)),
            pl.BlockSpec((pl.Squeezed(), pl.Squeezed(), 8, Cp),
                         lambda b, t: (b, t, 0, 0)),
            pl.BlockSpec((pl.Squeezed(), pl.Squeezed(), 8, Cp),
                         lambda b, t: (b, t, 0, 0)),
        ),
        out_shape=(
            jax.ShapeDtypeStruct((N, H * W, Cp), jnp.bfloat16),
            jax.ShapeDtypeStruct((N, n_t, 8, Cp), jnp.float32),
            jax.ShapeDtypeStruct((N, n_t, 8, Cp), jnp.float32),
        ),
        compiler_params=pltpu.CompilerParams(
            dimension_semantics=("parallel", "parallel"),
            vmem_limit_bytes=vmem_limit),
    )(x_tiles, w_mat)

    ch_sum = jnp.sum(s_part[:, :, 0, :], axis=1)           # (N, Cp)
    ch_ssq = jnp.sum(ss_part[:, :, 0, :], axis=1)
    return y_raw, ch_sum, ch_ssq


def _affine_from_stats(ch_sum, ch_ssq, gamma, beta, hw):
    """Fold InstanceNorm into per-channel scale/shift: y*scale + shift."""
    mean = ch_sum / hw
    # TODO(synk): E[y^2]-mean^2 in f32 is fine up to ~512x512; switch to
    # per-tile mean-centered (Welford-merged) partials beyond that.
    var = jnp.maximum(ch_ssq / hw - mean * mean, 0.0)
    inv = jax.lax.rsqrt(var + _EPS)
    scale = gamma[None, :] * inv                            # (N, Cp)
    shift = beta[None, :] - mean * scale
    n, cp = scale.shape
    return scale.reshape(n, 1, cp), shift.reshape(n, 1, cp)


def _norm_pass(y_raw, scale, shift, *, H, W, Cp, tile_h, vmem_limit,
               out_dtype, relu=False, residual=None):
    """Apply folded InstanceNorm (+ReLU or +residual) over row tiles."""
    N = y_raw.shape[0]
    n_t = H // tile_h
    tile_spec = pl.BlockSpec((pl.Squeezed(), tile_h * W, Cp),
                             lambda b, t: (b, t, 0))
    row_spec = pl.BlockSpec((pl.Squeezed(), 1, Cp), lambda b, t: (b, 0, 0))

    in_specs = [tile_spec, row_spec, row_spec]
    args = [y_raw, scale, shift]
    if residual is None:
        kernel = functools.partial(_norm_kernel, relu=relu)
    else:
        kernel = _norm_res_kernel
        in_specs.append(tile_spec)
        args.append(residual)

    return pl.pallas_call(
        kernel,
        grid=(N, n_t),
        in_specs=in_specs,
        out_specs=tile_spec,
        out_shape=jax.ShapeDtypeStruct((N, H * W, Cp), out_dtype),
        compiler_params=pltpu.CompilerParams(
            dimension_semantics=("parallel", "parallel"),
            vmem_limit_bytes=vmem_limit),
    )(*args)


# ---------------------------------------------------------------------------
# Parameter packing & forward
# ---------------------------------------------------------------------------
def _pack_weight(w, Cp):
    """(Cout, Cin, K, K) torch layout -> (K*K*Cp, Cp) bf16 im2col matrix."""
    Cout, Cin, K, _ = w.shape
    wt = jnp.transpose(w, (2, 3, 1, 0))                    # (K, K, Cin, Cout)
    wt = jnp.pad(wt, ((0, 0), (0, 0), (0, Cp - Cin), (0, Cp - Cout)))
    return wt.reshape(K * K * Cp, Cp).astype(jnp.bfloat16)


def _pack_vec(v, Cp):
    return jnp.pad(v.astype(jnp.float32), (0, Cp - v.shape[0]))


def residual_block_forward(x, w1, b1, g1, beta1, w2, b2, g2, beta2):
    """ResidualBlock.forward for NCHW float32 x (3x3 stride-1 convs).

    b1/b2 are accepted for interface parity with the torch module but unused:
    a conv bias applied immediately before InstanceNorm is cancelled exactly
    by the mean subtraction.
    """
    del b1, b2
    N, C, H, W = x.shape
    K = w1.shape[-1]
    # Lane-dense channel padding (exact for the real style-transfer net, C=128).
    Cp = ((C + 127) // 128) * 128
    hw = H * W

    vmem_limit = _vmem_limit_bytes()
    tile_h = _pick_tile_h(H, W, Cp, K, (vmem_limit * 3) // 5, N)

    # NHWC + zero channel padding (padded channels stay exactly 0 end-to-end).
    x_nhwc = jnp.pad(jnp.transpose(x, (0, 2, 3, 1)),
                     ((0, 0), (0, 0), (0, 0), (0, Cp - C)))
    residual = x_nhwc.reshape(N, hw, Cp)                   # f32, exact skip path
    x_bf = x_nhwc.astype(jnp.bfloat16)                     # bf16 feed for the MXU

    # conv1 -> IN1 -> ReLU
    y1_raw, s1, ss1 = _conv_pass(x_bf, _pack_weight(w1, Cp), K=K, H=H, W=W,
                                 Cp=Cp, tile_h=tile_h, vmem_limit=vmem_limit)
    sc1, sh1 = _affine_from_stats(s1, ss1, _pack_vec(g1, Cp),
                                  _pack_vec(beta1, Cp), hw)
    y1 = _norm_pass(y1_raw, sc1, sh1, H=H, W=W, Cp=Cp, tile_h=tile_h,
                    vmem_limit=vmem_limit, out_dtype=jnp.bfloat16, relu=True)

    # conv2 -> IN2 -> + residual
    y2_raw, s2, ss2 = _conv_pass(y1.reshape(N, H, W, Cp), _pack_weight(w2, Cp),
                                 K=K, H=H, W=W, Cp=Cp, tile_h=tile_h,
                                 vmem_limit=vmem_limit)
    sc2, sh2 = _affine_from_stats(s2, ss2, _pack_vec(g2, Cp),
                                  _pack_vec(beta2, Cp), hw)
    out = _norm_pass(y2_raw, sc2, sh2, H=H, W=W, Cp=Cp, tile_h=tile_h,
                     vmem_limit=vmem_limit, out_dtype=jnp.float32,
                     residual=residual)

    out = out.reshape(N, H, W, Cp)[..., :C]
    return jnp.transpose(out, (0, 3, 1, 2))                # back to NCHW


if __name__ == "__main__":
    key = jax.random.PRNGKey(0)
    kx, kw1, kb1, kw2, kb2, kg1, kbe1, kg2, kbe2 = jax.random.split(key, 9)

    N, C, H, W = 2, 4, 16, 16
    K = 3
    x = jax.random.normal(kx, (N, C, H, W), jnp.float32)

    # Conv2d default init: U(-1/sqrt(fan_in), 1/sqrt(fan_in)).
    fan_in = C * K * K
    bound = 1.0 / fan_in ** 0.5
    w1 = jax.random.uniform(kw1, (C, C, K, K), jnp.float32, -bound, bound)
    b1 = jax.random.uniform(kb1, (C,), jnp.float32, -bound, bound)
    w2 = jax.random.uniform(kw2, (C, C, K, K), jnp.float32, -bound, bound)
    b2 = jax.random.uniform(kb2, (C,), jnp.float32, -bound, bound)
    # InstanceNorm2d affine params (perturbed so the affine path is exercised).
    g1 = 1.0 + 0.1 * jax.random.normal(kg1, (C,), jnp.float32)
    beta1 = 0.1 * jax.random.normal(kbe1, (C,), jnp.float32)
    g2 = 1.0 + 0.1 * jax.random.normal(kg2, (C,), jnp.float32)
    beta2 = 0.1 * jax.random.normal(kbe2, (C,), jnp.float32)

    fwd = jax.jit(residual_block_forward)
    out = jax.block_until_ready(fwd(x, w1, b1, g1, beta1, w2, b2, g2, beta2))

    # Pure-JAX float32 reference of the same forward pass (bias included: it is
    # a mathematical no-op before InstanceNorm, so results must still match).
    def conv_ref(xx, w, b):
        p = w.shape[-1] // 2
        xp = jnp.pad(xx, ((0, 0), (0, 0), (p, p), (p, p)), mode="reflect")
        y = jax.lax.conv_general_dilated(
            xp, w, (1, 1), "VALID",
            dimension_numbers=("NCHW", "OIHW", "NCHW"),
            precision=jax.lax.Precision.HIGHEST)
        return y + b[None, :, None, None]

    def inorm_ref(xx, g, b):
        m = xx.mean(axis=(2, 3), keepdims=True)
        v = ((xx - m) ** 2).mean(axis=(2, 3), keepdims=True)
        return ((xx - m) * jax.lax.rsqrt(v + _EPS) * g[None, :, None, None]
                + b[None, :, None, None])

    y_ref = jax.nn.relu(inorm_ref(conv_ref(x, w1, b1), g1, beta1))
    ref = inorm_ref(conv_ref(y_ref, w2, b2), g2, beta2) + x

    assert out.shape == ref.shape, (out.shape, ref.shape)
    max_err = float(jnp.max(jnp.abs(out - ref)))
    # bf16 MXU operands / bf16 HBM intermediates with f32 accumulation vs the
    # f32 reference.
    assert jnp.allclose(out, ref, rtol=5e-2, atol=5e-2), max_err
    print("KERNEL_OK")
</pallas_src>

<mosaic_0001>
module attributes {stable_mosaic.version = 11 : i64} {
  func.func @_conv_stats_kernel(%arg0: i32, %arg1: i32, %arg2: memref<1x1x18x18x128xbf16, #tpu.memory_space<vmem>>, %arg3: memref<1152x128xbf16, #tpu.memory_space<vmem>>, %arg4: memref<1x256x128xbf16, #tpu.memory_space<vmem>>, %arg5: memref<1x1x8x128xf32, #tpu.memory_space<vmem>>, %arg6: memref<1x1x8x128xf32, #tpu.memory_space<vmem>>) attributes {dimension_semantics = [#tpu.dimension_semantics<parallel>, #tpu.dimension_semantics<parallel>], iteration_bounds = array<i64: 2, 1>, scalar_prefetch = 0 : i64, scratch_operands = 0 : i64, tpu.core_type = #tpu.core_type<tc>, window_params = [{transform_indices = @transform_0, window_bounds = array<i64: 1, 1, 18, 18, 128>}, {pipeline_mode = #tpu.pipeline_mode<synchronous>, transform_indices = @transform_1, window_bounds = array<i64: 1152, 128>}, {transform_indices = @transform_2, window_bounds = array<i64: 1, 256, 128>}, {transform_indices = @transform_3, window_bounds = array<i64: 1, 1, 8, 128>}, {transform_indices = @transform_4, window_bounds = array<i64: 1, 1, 8, 128>}]} {
    %c0 = arith.constant 0 : index
    %c0_0 = arith.constant 0 : index
    %c0_1 = arith.constant 0 : index
    %c0_2 = arith.constant 0 : index
    %c0_3 = arith.constant 0 : index
    %0 = vector.load %arg2[%c0, %c0_0, %c0_1, %c0_2, %c0_3] : memref<1x1x18x18x128xbf16, #tpu.memory_space<vmem>>, vector<1x1x16x16x128xbf16>
    %1 = vector.shape_cast %0 : vector<1x1x16x16x128xbf16> to vector<16x16x128xbf16>
    %c0_4 = arith.constant 0 : index
    %c0_5 = arith.constant 0 : index
    %c0_6 = arith.constant 0 : index
    %c1 = arith.constant 1 : index
    %c0_7 = arith.constant 0 : index
    %2 = vector.load %arg2[%c0_4, %c0_5, %c0_6, %c1, %c0_7] : memref<1x1x18x18x128xbf16, #tpu.memory_space<vmem>>, vector<1x1x16x16x128xbf16>
    %3 = vector.shape_cast %2 : vector<1x1x16x16x128xbf16> to vector<16x16x128xbf16>
    %c0_8 = arith.constant 0 : index
    %c0_9 = arith.constant 0 : index
    %c0_10 = arith.constant 0 : index
    %c2 = arith.constant 2 : index
    %c0_11 = arith.constant 0 : index
    %4 = vector.load %arg2[%c0_8, %c0_9, %c0_10, %c2, %c0_11] : memref<1x1x18x18x128xbf16, #tpu.memory_space<vmem>>, vector<1x1x16x16x128xbf16>
    %5 = vector.shape_cast %4 : vector<1x1x16x16x128xbf16> to vector<16x16x128xbf16>
    %6 = tpu.concatenate %1, %3, %5 in 2 : vector<16x16x128xbf16>, vector<16x16x128xbf16>, vector<16x16x128xbf16> -> vector<16x16x384xbf16>
    %7 = vector.shape_cast %6 : vector<16x16x384xbf16> to vector<256x384xbf16>
    %c0_12 = arith.constant 0 : index
    %c0_13 = arith.constant 0 : index
    %8 = vector.load %arg3[%c0_12, %c0_13] : memref<1152x128xbf16, #tpu.memory_space<vmem>>, vector<384x128xbf16>
    %cst = arith.constant dense<0.000000e+00> : vector<256x128xf32>
    %9 = tpu.matmul %7, %8, %cst {dimension_numbers = #tpu.dot_dimension_numbers<[1], [0], [0], [1], [0, 0, 1, 1], [], []>} : vector<256x384xbf16>, vector<384x128xbf16>, vector<256x128xf32> -> vector<256x128xf32>
    %c0_14 = arith.constant 0 : index
    %c0_15 = arith.constant 0 : index
    %c1_16 = arith.constant 1 : index
    %c0_17 = arith.constant 0 : index
    %c0_18 = arith.constant 0 : index
    %10 = vector.load %arg2[%c0_14, %c0_15, %c1_16, %c0_17, %c0_18] : memref<1x1x18x18x128xbf16, #tpu.memory_space<vmem>>, vector<1x1x16x16x128xbf16>
    %11 = vector.shape_cast %10 : vector<1x1x16x16x128xbf16> to vector<16x16x128xbf16>
    %c0_19 = arith.constant 0 : index
    %c0_20 = arith.constant 0 : index
    %c1_21 = arith.constant 1 : index
    %c1_22 = arith.constant 1 : index
    %c0_23 = arith.constant 0 : index
    %12 = vector.load %arg2[%c0_19, %c0_20, %c1_21, %c1_22, %c0_23] : memref<1x1x18x18x128xbf16, #tpu.memory_space<vmem>>, vector<1x1x16x16x128xbf16>
    %13 = vector.shape_cast %12 : vector<1x1x16x16x128xbf16> to vector<16x16x128xbf16>
    %c0_24 = arith.constant 0 : index
    %c0_25 = arith.constant 0 : index
    %c1_26 = arith.constant 1 : index
    %c2_27 = arith.constant 2 : index
    %c0_28 = arith.constant 0 : index
    %14 = vector.load %arg2[%c0_24, %c0_25, %c1_26, %c2_27, %c0_28] : memref<1x1x18x18x128xbf16, #tpu.memory_space<vmem>>, vector<1x1x16x16x128xbf16>
    %15 = vector.shape_cast %14 : vector<1x1x16x16x128xbf16> to vector<16x16x128xbf16>
    %16 = tpu.concatenate %11, %13, %15 in 2 : vector<16x16x128xbf16>, vector<16x16x128xbf16>, vector<16x16x128xbf16> -> vector<16x16x384xbf16>
    %17 = vector.shape_cast %16 : vector<16x16x384xbf16> to vector<256x384xbf16>
    %c384 = arith.constant 384 : index
    %c0_29 = arith.constant 0 : index
    %18 = vector.load %arg3[%c384, %c0_29] : memref<1152x128xbf16, #tpu.memory_space<vmem>>, vector<384x128xbf16>
    %cst_30 = arith.constant dense<0.000000e+00> : vector<256x128xf32>
    %19 = tpu.matmul %17, %18, %cst_30 {dimension_numbers = #tpu.dot_dimension_numbers<[1], [0], [0], [1], [0, 0, 1, 1], [], []>} : vector<256x384xbf16>, vector<384x128xbf16>, vector<256x128xf32> -> vector<256x128xf32>
    %20 = arith.addf %9, %19 : vector<256x128xf32>
    %c0_31 = arith.constant 0 : index
    %c0_32 = arith.constant 0 : index
    %c2_33 = arith.constant 2 : index
    %c0_34 = arith.constant 0 : index
    %c0_35 = arith.constant 0 : index
    %21 = vector.load %arg2[%c0_31, %c0_32, %c2_33, %c0_34, %c0_35] : memref<1x1x18x18x128xbf16, #tpu.memory_space<vmem>>, vector<1x1x16x16x128xbf16>
    %22 = vector.shape_cast %21 : vector<1x1x16x16x128xbf16> to vector<16x16x128xbf16>
    %c0_36 = arith.constant 0 : index
    %c0_37 = arith.constant 0 : index
    %c2_38 = arith.constant 2 : index
    %c1_39 = arith.constant 1 : index
    %c0_40 = arith.constant 0 : index
    %23 = vector.load %arg2[%c0_36, %c0_37, %c2_38, %c1_39, %c0_40] : memref<1x1x18x18x128xbf16, #tpu.memory_space<vmem>>, vector<1x1x16x16x128xbf16>
    %24 = vector.shape_cast %23 : vector<1x1x16x16x128xbf16> to vector<16x16x128xbf16>
    %c0_41 = arith.constant 0 : index
    %c0_42 = arith.constant 0 : index
    %c2_43 = arith.constant 2 : index
    %c2_44 = arith.constant 2 : index
    %c0_45 = arith.constant 0 : index
    %25 = vector.load %arg2[%c0_41, %c0_42, %c2_43, %c2_44, %c0_45] : memref<1x1x18x18x128xbf16, #tpu.memory_space<vmem>>, vector<1x1x16x16x128xbf16>
    %26 = vector.shape_cast %25 : vector<1x1x16x16x128xbf16> to vector<16x16x128xbf16>
    %27 = tpu.concatenate %22, %24, %26 in 2 : vector<16x16x128xbf16>, vector<16x16x128xbf16>, vector<16x16x128xbf16> -> vector<16x16x384xbf16>
    %28 = vector.shape_cast %27 : vector<16x16x384xbf16> to vector<256x384xbf16>
    %c768 = arith.constant 768 : index
    %c0_46 = arith.constant 0 : index
    %29 = vector.load %arg3[%c768, %c0_46] : memref<1152x128xbf16, #tpu.memory_space<vmem>>, vector<384x128xbf16>
    %cst_47 = arith.constant dense<0.000000e+00> : vector<256x128xf32>
    %30 = tpu.matmul %28, %29, %cst_47 {dimension_numbers = #tpu.dot_dimension_numbers<[1], [0], [0], [1], [0, 0, 1, 1], [], []>} : vector<256x384xbf16>, vector<384x128xbf16>, vector<256x128xf32> -> vector<256x128xf32>
    %31 = arith.addf %20, %30 : vector<256x128xf32>
    %cst_48 = arith.constant dense<0.000000e+00> : vector<128xf32>
    %32 = vector.multi_reduction <add>, %31, %cst_48 [0] : vector<256x128xf32> to vector<128xf32>
    %33 = vector.shape_cast %32 : vector<128xf32> to vector<1x128xf32>
    %34 = arith.mulf %31, %31 : vector<256x128xf32>
    %cst_49 = arith.constant dense<0.000000e+00> : vector<128xf32>
    %35 = vector.multi_reduction <add>, %34, %cst_49 [0] : vector<256x128xf32> to vector<128xf32>
    %36 = vector.shape_cast %35 : vector<128xf32> to vector<1x128xf32>
    %37 = vector.shape_cast %33 : vector<1x128xf32> to vector<1x128xf32>
    %38 = vector.broadcast %37 : vector<1x128xf32> to vector<8x128xf32>
    %c0_50 = arith.constant 0 : index
    %c0_51 = arith.constant 0 : index
    %c0_52 = arith.constant 0 : index
    %c0_53 = arith.constant 0 : index
    %39 = vector.load %arg5[%c0_50, %c0_51, %c0_52, %c0_53] : memref<1x1x8x128xf32, #tpu.memory_space<vmem>>, vector<1x1x8x128xf32>
    %40 = vector.shape_cast %39 : vector<1x1x8x128xf32> to vector<8x128xf32>
    %41 = vector.shape_cast %38 : vector<8x128xf32> to vector<1x1x8x128xf32>
    tpu.vector_store %arg5[%c0_50, %c0_51, %c0_52, %c0_53], %41 {strides = array<i32>} : memref<1x1x8x128xf32, #tpu.memory_space<vmem>>, vector<1x1x8x128xf32>,
    %42 = vector.shape_cast %36 : vector<1x128xf32> to vector<1x128xf32>
    %43 = vector.broadcast %42 : vector<1x128xf32> to vector<8x128xf32>
    %c0_54 = arith.constant 0 : index
    %c0_55 = arith.constant 0 : index
    %c0_56 = arith.constant 0 : index
    %c0_57 = arith.constant 0 : index
    %44 = vector.load %arg6[%c0_54, %c0_55, %c0_56, %c0_57] : memref<1x1x8x128xf32, #tpu.memory_space<vmem>>, vector<1x1x8x128xf32>
    %45 = vector.shape_cast %44 : vector<1x1x8x128xf32> to vector<8x128xf32>
    %46 = vector.shape_cast %43 : vector<8x128xf32> to vector<1x1x8x128xf32>
    tpu.vector_store %arg6[%c0_54, %c0_55, %c0_56, %c0_57], %46 {strides = array<i32>} : memref<1x1x8x128xf32, #tpu.memory_space<vmem>>, vector<1x1x8x128xf32>,
    %47 = arith.truncf %31 : vector<256x128xf32> to vector<256x128xbf16>
    %c0_58 = arith.constant 0 : index
    %c0_59 = arith.constant 0 : index
    %c0_60 = arith.constant 0 : index
    %48 = vector.load %arg4[%c0_58, %c0_59, %c0_60] : memref<1x256x128xbf16, #tpu.memory_space<vmem>>, vector<1x256x128xbf16>
    %49 = vector.shape_cast %48 : vector<1x256x128xbf16> to vector<256x128xbf16>
    %50 = vector.shape_cast %47 : vector<256x128xbf16> to vector<1x256x128xbf16>
    tpu.vector_store %arg4[%c0_58, %c0_59, %c0_60], %50 {strides = array<i32>} : memref<1x256x128xbf16, #tpu.memory_space<vmem>>, vector<1x256x128xbf16>,
    return
  }
  func.func @transform_0(%arg0: i32, %arg1: i32) -> (i32, i32, i32, i32, i32) {
    %c0_i32 = arith.constant 0 : i32
    %c0_i32_0 = arith.constant 0 : i32
    %c0_i32_1 = arith.constant 0 : i32
    %c0_i32_2 = arith.constant 0 : i32
    return %arg0, %arg1, %c0_i32, %c0_i32_0, %c0_i32_1 : i32, i32, i32, i32, i32
  }
  func.func @transform_1(%arg0: i32, %arg1: i32) -> (i32, i32) {
    %c0_i32 = arith.constant 0 : i32
    %c0_i32_0 = arith.constant 0 : i32
    %c0_i32_1 = arith.constant 0 : i32
    return %c0_i32, %c0_i32_0 : i32, i32
  }
  func.func @transform_2(%arg0: i32, %arg1: i32) -> (i32, i32, i32) {
    %c0_i32 = arith.constant 0 : i32
    %c0_i32_0 = arith.constant 0 : i32
    return %arg0, %arg1, %c0_i32 : i32, i32, i32
  }
  func.func @transform_3(%arg0: i32, %arg1: i32) -> (i32, i32, i32, i32) {
    %c0_i32 = arith.constant 0 : i32
    %c0_i32_0 = arith.constant 0 : i32
    %c0_i32_1 = arith.constant 0 : i32
    return %arg0, %arg1, %c0_i32, %c0_i32_0 : i32, i32, i32, i32
  }
  func.func @transform_4(%arg0: i32, %arg1: i32) -> (i32, i32, i32, i32) {
    %c0_i32 = arith.constant 0 : i32
    %c0_i32_0 = arith.constant 0 : i32
    %c0_i32_1 = arith.constant 0 : i32
    return %arg0, %arg1, %c0_i32, %c0_i32_0 : i32, i32, i32, i32
  }
}

module attributes {stable_mosaic.version = 11 : i64} {
  func.func @_norm_kernel(%arg0: i32, %arg1: i32, %arg2: memref<1x256x128xbf16, #tpu.memory_space<vmem>>, %arg3: memref<1x1x128xf32, #tpu.memory_space<vmem>>, %arg4: memref<1x1x128xf32, #tpu.memory_space<vmem>>, %arg5: memref<1x256x128xbf16, #tpu.memory_space<vmem>>) attributes {dimension_semantics = [#tpu.dimension_semantics<parallel>, #tpu.dimension_semantics<parallel>], iteration_bounds = array<i64: 2, 1>, scalar_prefetch = 0 : i64, scratch_operands = 0 : i64, tpu.core_type = #tpu.core_type<tc>, window_params = [{transform_indices = @transform_0, window_bounds = array<i64: 1, 256, 128>}, {transform_indices = @transform_1, window_bounds = array<i64: 1, 1, 128>}, {transform_indices = @transform_2, window_bounds = array<i64: 1, 1, 128>}, {transform_indices = @transform_3, window_bounds = array<i64: 1, 256, 128>}]} {
    %c0 = arith.constant 0 : index
    %c0_0 = arith.constant 0 : index
    %c0_1 = arith.constant 0 : index
    %0 = vector.load %arg2[%c0, %c0_0, %c0_1] : memref<1x256x128xbf16, #tpu.memory_space<vmem>>, vector<1x256x128xbf16>
    %1 = vector.shape_cast %0 : vector<1x256x128xbf16> to vector<256x128xbf16>
    %2 = arith.extf %1 : vector<256x128xbf16> to vector<256x128xf32>
    %c0_2 = arith.constant 0 : index
    %c0_3 = arith.constant 0 : index
    %c0_4 = arith.constant 0 : index
    %3 = vector.load %arg3[%c0_2, %c0_3, %c0_4] : memref<1x1x128xf32, #tpu.memory_space<vmem>>, vector<1x1x128xf32>
    %4 = vector.shape_cast %3 : vector<1x1x128xf32> to vector<1x128xf32>
    %5 = vector.broadcast %4 : vector<1x128xf32> to vector<256x128xf32>
    %6 = arith.mulf %2, %5 : vector<256x128xf32>
    %c0_5 = arith.constant 0 : index
    %c0_6 = arith.constant 0 : index
    %c0_7 = arith.constant 0 : index
    %7 = vector.load %arg4[%c0_5, %c0_6, %c0_7] : memref<1x1x128xf32, #tpu.memory_space<vmem>>, vector<1x1x128xf32>
    %8 = vector.shape_cast %7 : vector<1x1x128xf32> to vector<1x128xf32>
    %9 = vector.broadcast %8 : vector<1x128xf32> to vector<256x128xf32>
    %10 = arith.addf %6, %9 : vector<256x128xf32>
    %cst = arith.constant 0.000000e+00 : f32
    %11 = vector.broadcast %cst : f32 to vector<256x128xf32>
    %12 = arith.maximumf %10, %11 : vector<256x128xf32>
    %13 = arith.truncf %12 : vector<256x128xf32> to vector<256x128xbf16>
    %c0_8 = arith.constant 0 : index
    %c0_9 = arith.constant 0 : index
    %c0_10 = arith.constant 0 : index
    %14 = vector.load %arg5[%c0_8, %c0_9, %c0_10] : memref<1x256x128xbf16, #tpu.memory_space<vmem>>, vector<1x256x128xbf16>
    %15 = vector.shape_cast %14 : vector<1x256x128xbf16> to vector<256x128xbf16>
    %16 = vector.shape_cast %13 : vector<256x128xbf16> to vector<1x256x128xbf16>
    tpu.vector_store %arg5[%c0_8, %c0_9, %c0_10], %16 {strides = array<i32>} : memref<1x256x128xbf16, #tpu.memory_space<vmem>>, vector<1x256x128xbf16>,
    return
  }
  func.func @transform_0(%arg0: i32, %arg1: i32) -> (i32, i32, i32) {
    %c0_i32 = arith.constant 0 : i32
    %c0_i32_0 = arith.constant 0 : i32
    return %arg0, %arg1, %c0_i32 : i32, i32, i32
  }
  func.func @transform_1(%arg0: i32, %arg1: i32) -> (i32, i32, i32) {
    %c0_i32 = arith.constant 0 : i32
    %c0_i32_0 = arith.constant 0 : i32
    %c0_i32_1 = arith.constant 0 : i32
    return %arg0, %c0_i32, %c0_i32_0 : i32, i32, i32
  }
  func.func @transform_2(%arg0: i32, %arg1: i32) -> (i32, i32, i32) {
    %c0_i32 = arith.constant 0 : i32
    %c0_i32_0 = arith.constant 0 : i32
    %c0_i32_1 = arith.constant 0 : i32
    return %arg0, %c0_i32, %c0_i32_0 : i32, i32, i32
  }
  func.func @transform_3(%arg0: i32, %arg1: i32) -> (i32, i32, i32) {
    %c0_i32 = arith.constant 0 : i32
    %c0_i32_0 = arith.constant 0 : i32
    return %arg0, %arg1, %c0_i32 : i32, i32, i32
  }
}

module attributes {stable_mosaic.version = 11 : i64} {
  func.func @_norm_res_kernel(%arg0: i32, %arg1: i32, %arg2: memref<1x256x128xbf16, #tpu.memory_space<vmem>>, %arg3: memref<1x1x128xf32, #tpu.memory_space<vmem>>, %arg4: memref<1x1x128xf32, #tpu.memory_space<vmem>>, %arg5: memref<1x256x128xf32, #tpu.memory_space<vmem>>, %arg6: memref<1x256x128xf32, #tpu.memory_space<vmem>>) attributes {dimension_semantics = [#tpu.dimension_semantics<parallel>, #tpu.dimension_semantics<parallel>], iteration_bounds = array<i64: 2, 1>, scalar_prefetch = 0 : i64, scratch_operands = 0 : i64, tpu.core_type = #tpu.core_type<tc>, window_params = [{transform_indices = @transform_0, window_bounds = array<i64: 1, 256, 128>}, {transform_indices = @transform_1, window_bounds = array<i64: 1, 1, 128>}, {transform_indices = @transform_2, window_bounds = array<i64: 1, 1, 128>}, {transform_indices = @transform_3, window_bounds = array<i64: 1, 256, 128>}, {transform_indices = @transform_4, window_bounds = array<i64: 1, 256, 128>}]} {
    %c0 = arith.constant 0 : index
    %c0_0 = arith.constant 0 : index
    %c0_1 = arith.constant 0 : index
    %0 = vector.load %arg2[%c0, %c0_0, %c0_1] : memref<1x256x128xbf16, #tpu.memory_space<vmem>>, vector<1x256x128xbf16>
    %1 = vector.shape_cast %0 : vector<1x256x128xbf16> to vector<256x128xbf16>
    %2 = arith.extf %1 : vector<256x128xbf16> to vector<256x128xf32>
    %c0_2 = arith.constant 0 : index
    %c0_3 = arith.constant 0 : index
    %c0_4 = arith.constant 0 : index
    %3 = vector.load %arg3[%c0_2, %c0_3, %c0_4] : memref<1x1x128xf32, #tpu.memory_space<vmem>>, vector<1x1x128xf32>
    %4 = vector.shape_cast %3 : vector<1x1x128xf32> to vector<1x128xf32>
    %5 = vector.broadcast %4 : vector<1x128xf32> to vector<256x128xf32>
    %6 = arith.mulf %2, %5 : vector<256x128xf32>
    %c0_5 = arith.constant 0 : index
    %c0_6 = arith.constant 0 : index
    %c0_7 = arith.constant 0 : index
    %7 = vector.load %arg4[%c0_5, %c0_6, %c0_7] : memref<1x1x128xf32, #tpu.memory_space<vmem>>, vector<1x1x128xf32>
    %8 = vector.shape_cast %7 : vector<1x1x128xf32> to vector<1x128xf32>
    %9 = vector.broadcast %8 : vector<1x128xf32> to vector<256x128xf32>
    %10 = arith.addf %6, %9 : vector<256x128xf32>
    %c0_8 = arith.constant 0 : index
    %c0_9 = arith.constant 0 : index
    %c0_10 = arith.constant 0 : index
    %11 = vector.load %arg5[%c0_8, %c0_9, %c0_10] : memref<1x256x128xf32, #tpu.memory_space<vmem>>, vector<1x256x128xf32>
    %12 = vector.shape_cast %11 : vector<1x256x128xf32> to vector<256x128xf32>
    %13 = arith.addf %10, %12 : vector<256x128xf32>
    %c0_11 = arith.constant 0 : index
    %c0_12 = arith.constant 0 : index
    %c0_13 = arith.constant 0 : index
    %14 = vector.load %arg6[%c0_11, %c0_12, %c0_13] : memref<1x256x128xf32, #tpu.memory_space<vmem>>, vector<1x256x128xf32>
    %15 = vector.shape_cast %14 : vector<1x256x128xf32> to vector<256x128xf32>
    %16 = vector.shape_cast %13 : vector<256x128xf32> to vector<1x256x128xf32>
    tpu.vector_store %arg6[%c0_11, %c0_12, %c0_13], %16 {strides = array<i32>} : memref<1x256x128xf32, #tpu.memory_space<vmem>>, vector<1x256x128xf32>,
    return
  }
  func.func @transform_0(%arg0: i32, %arg1: i32) -> (i32, i32, i32) {
    %c0_i32 = arith.constant 0 : i32
    %c0_i32_0 = arith.constant 0 : i32
    return %arg0, %arg1, %c0_i32 : i32, i32, i32
  }
  func.func @transform_1(%arg0: i32, %arg1: i32) -> (i32, i32, i32) {
    %c0_i32 = arith.constant 0 : i32
    %c0_i32_0 = arith.constant 0 : i32
    %c0_i32_1 = arith.constant 0 : i32
    return %arg0, %c0_i32, %c0_i32_0 : i32, i32, i32
  }
  func.func @transform_2(%arg0: i32, %arg1: i32) -> (i32, i32, i32) {
    %c0_i32 = arith.constant 0 : i32
    %c0_i32_0 = arith.constant 0 : i32
    %c0_i32_1 = arith.constant 0 : i32
    return %arg0, %c0_i32, %c0_i32_0 : i32, i32, i32
  }
  func.func @transform_3(%arg0: i32, %arg1: i32) -> (i32, i32, i32) {
    %c0_i32 = arith.constant 0 : i32
    %c0_i32_0 = arith.constant 0 : i32
    return %arg0, %arg1, %c0_i32 : i32, i32, i32
  }
  func.func @transform_4(%arg0: i32, %arg1: i32) -> (i32, i32, i32) {
    %c0_i32 = arith.constant 0 : i32
    %c0_i32_0 = arith.constant 0 : i32
    return %arg0, %arg1, %c0_i32 : i32, i32, i32
  }
}

</mosaic_0001>

<llo_original>
// kernel: residual_block_forward.5
$region0: #{residual_block_forward.5}
  #allocation0 [shape = 'u32[]', space=smem, size = 0x4, offset = 0x4, fixed_abs, tag = 'smem constant byte address 0x4 - core index']
  #allocation1 [shape = 'u32[144,128]{1,0:T(1,128)}', space=vmem, size = 0x12000, scoped, tag = 'internal scratch']
  %s0 = inlined_call_operand.vmem [shape: bf16[2,256,128], index: 0, kind: input, shape index: {}]
  %s1 = inlined_call_operand.vmem [shape: f32[2,1,128], index: 1, kind: input, shape index: {}]
  %s2 = inlined_call_operand.vmem [shape: f32[2,1,128], index: 2, kind: input, shape index: {}]
  %s3 = inlined_call_operand.vmem [shape: bf16[2,256,128], index: 3, kind: output, shape index: {}]
  %s4 = sld [smem:[#allocation0]]
  $region45: #{residual_block_forward.5} parent=0
    _
  %s6 = ssub.s32 1, %s4
  %s7 = scalar_select 0, %s6, %s4
  loop: start=0, step=1, limit=4
  $region2: #{residual_block_forward.5} parent=0 // loop_pre_header
    _
  $region3: #{residual_block_forward.5} parent=0 // loop_header
    %s9 = sphi 0, %s13
    %p10 = scmp.ge.s32.totalorder %s9, 4
    %s16 = sphi 0, %s28
    %s17 = sphi 0, %s24
    %s18 = sphi 0, %s16
    %s19 = sphi 0, %s17
    %s20 = sphi 0, %s18
    %s21 = sphi 0, %s19
    %s33 = sphi 0, %s35
    %s36 = sphi 0, %s33
    %s37 = sphi 0, %s36
    %s53 = sphi 0, %s37
    %s59 = sphi 0, %s61
    %s62 = sphi 0, %s59
    %s63 = sphi 0, %s62
    %s79 = sphi 0, %s63
    %s85 = sphi 0, %s87
    %s88 = sphi 0, %s85
    %s89 = sphi 0, %s88
    %s105 = sphi 0, %s89
    %s113 = sphi 0, %s115
    %s116 = sphi 0, %s113
    %s117 = sphi 0, %s116
    %s133 = sphi 0, %s117
  $region4: #{residual_block_forward.5} parent=0 // loop_header_branch
    %12 = sbr.rel (%p10) target = $region8
  $region5: #{residual_block_forward.5} parent=0 // loop_body
    %s14 = ssub.s32 %s9, 1
    %s15 = ssub.s32 %s9, 2
    %s22 = sadd.s32 1, %s17
    %p23 = scmp.ge.s32.totalorder %s22, 1
    %s24 = scalar_select %p23, 0, %s22
    %s25 = sadd.s32 1, %s16
    %s26 = scalar_select %p23, %s25, %s16
    %p27 = scmp.ge.s32.totalorder %s26, 2
    %s28 = scalar_select %p27, 0, %s26
    %s29 = ssub.s32 %s16, %s28
    %s30 = ssub.s32 %s17, %s24
    %s31 = sor.u32 %s29, %s30
    %p32 = scmp.eq.s32.totalorder %s31, 0
    %s34 = sadd.s32 %s33, 1
    %s35 = scalar_select %p32, %s33, %s34
    %p38 = pneg %p32
    %p39 = scmp.eq.s32.totalorder %s9, 1
    %p40 = por %p38, %p39
    %p41 = scmp.ne.s32.totalorder %s33, %s36
    %p42 = scmp.eq.s32.totalorder %s9, 0
    %p43 = por %p41, %p42
    %p44 = scmp.ne.s32.totalorder %s33, %s36
    %p45 = scmp.eq.s32.totalorder %s14, 1
    %p46 = por %p44, %p45
    %p47 = scmp.ne.s32.totalorder %s36, %s37
    %p48 = scmp.eq.s32.totalorder %s14, 0
    %p49 = por %p47, %p48
    %p50 = scmp.ne.s32.totalorder %s36, %s37
    %p51 = scmp.eq.s32.totalorder %s15, 1
    %p52 = por %p50, %p51
    %p54 = scmp.ne.s32.totalorder %s37, %s53
    %p55 = scmp.eq.s32.totalorder %s15, 0
    %p56 = por %p54, %p55
    %s57 = ssub.s32 %s16, %s28
    %p58 = scmp.eq.s32.totalorder %s57, 0
    %s60 = sadd.s32 %s59, 1
    %s61 = scalar_select %p58, %s59, %s60
    %p64 = pneg %p58
    %p65 = scmp.eq.s32.totalorder %s9, 1
    %p66 = por %p64, %p65
    %p67 = scmp.ne.s32.totalorder %s59, %s62
    %p68 = scmp.eq.s32.totalorder %s9, 0
    %p69 = por %p67, %p68
    %p70 = scmp.ne.s32.totalorder %s59, %s62
    %p71 = scmp.eq.s32.totalorder %s14, 1
    %p72 = por %p70, %p71
    %p73 = scmp.ne.s32.totalorder %s62, %s63
    %p74 = scmp.eq.s32.totalorder %s14, 0
    %p75 = por %p73, %p74
    %p76 = scmp.ne.s32.totalorder %s62, %s63
    %p77 = scmp.eq.s32.totalorder %s15, 1
    %p78 = por %p76, %p77
    %p80 = scmp.ne.s32.totalorder %s63, %s79
    %p81 = scmp.eq.s32.totalorder %s15, 0
    %p82 = por %p80, %p81
    %s83 = ssub.s32 %s16, %s28
    %p84 = scmp.eq.s32.totalorder %s83, 0
    %s86 = sadd.s32 %s85, 1
    %s87 = scalar_select %p84, %s85, %s86
    %p90 = pneg %p84
    %p91 = scmp.eq.s32.totalorder %s9, 1
    %p92 = por %p90, %p91
    %p93 = scmp.ne.s32.totalorder %s85, %s88
    %p94 = scmp.eq.s32.totalorder %s9, 0
    %p95 = por %p93, %p94
    %p96 = scmp.ne.s32.totalorder %s85, %s88
    %p97 = scmp.eq.s32.totalorder %s14, 1
    %p98 = por %p96, %p97
    %p99 = scmp.ne.s32.totalorder %s88, %s89
    %p100 = scmp.eq.s32.totalorder %s14, 0
    %p101 = por %p99, %p100
    %p102 = scmp.ne.s32.totalorder %s88, %s89
    %p103 = scmp.eq.s32.totalorder %s15, 1
    %p104 = por %p102, %p103
    %p106 = scmp.ne.s32.totalorder %s89, %s105
    %p107 = scmp.eq.s32.totalorder %s15, 0
    %p108 = por %p106, %p107
    %s109 = ssub.s32 %s16, %s28
    %s110 = ssub.s32 %s17, %s24
    %s111 = sor.u32 %s109, %s110
    %p112 = scmp.eq.s32.totalorder %s111, 0
    %s114 = sadd.s32 %s113, 1
    %s115 = scalar_select %p112, %s113, %s114
    %p118 = pneg %p112
    %p119 = scmp.eq.s32.totalorder %s9, 1
    %p120 = por %p118, %p119
    %p121 = scmp.ne.s32.totalorder %s113, %s116
    %p122 = scmp.eq.s32.totalorder %s9, 0
    %p123 = por %p121, %p122
    %p124 = scmp.ne.s32.totalorder %s113, %s116
    %p125 = scmp.eq.s32.totalorder %s14, 1
    %p126 = por %p124, %p125
    %p127 = scmp.ne.s32.totalorder %s116, %s117
    %p128 = scmp.eq.s32.totalorder %s14, 0
    %p129 = por %p127, %p128
    %p130 = scmp.ne.s32.totalorder %s116, %s117
    %p131 = scmp.eq.s32.totalorder %s15, 1
    %p132 = por %p130, %p131
    %p134 = scmp.ne.s32.totalorder %s117, %s133
    %p135 = scmp.eq.s32.totalorder %s15, 0
    %p136 = por %p134, %p135
    %p137 = scmp.le.s32.totalorder 1, %s9
    %p138 = scmp.lt.s32.totalorder %s9, 3
    %p139 = pnand %p137, %p138
    %p140 = pneg %p139
    // Predicated region
    $region9: #{residual_block_forward.5} parent=5 // pred_check
      _
    $region10: #{residual_block_forward.5} parent=5 // pred_check_branch
      %142 = sbr.rel (%p139) target = $region12
    $region11: #{residual_block_forward.5} parent=5 // pred_region
      %s143 = ssub.s32 %s9, 1
    $region12: #{residual_block_forward.5} parent=5 // pred_fallthru
      _
    %p144 = scmp.lt.s32.totalorder %s9, 2
    // Predicated region
    $region13: #{residual_block_forward.5} parent=5 // pred_check
      %p145 = pneg %p144
    $region14: #{residual_block_forward.5} parent=5 // pred_check_branch
      %147 = sbr.rel (%p145) target = $region16
    $region15: #{residual_block_forward.5} parent=5 // pred_region
      // Predicated region
      $region17: #{residual_block_forward.5} parent=15 // pred_check
        %p148 = pneg %p43
      $region18: #{residual_block_forward.5} parent=15 // pred_check_branch
        %150 = sbr.rel (%p148) target = $region20
      $region19: #{residual_block_forward.5} parent=15 // pred_region
        %s151 = smul.u32 32, %s17
        %p152 = scmp.lt.s32.totalorder %s16, 1
        %s153 = scalar_select %p152, %s16, 1
        %p154 = scmp.lt.s32.totalorder %s151, 31
        %s155 = scalar_select %p154, %s151, 31
        %s156 = smul.addr %s153, 32
        %s157 = sadd.s32 %s155, %s156
        %s158 = smul.addr %s157, 4
        %s159 = scalar_lea.vmem %s0, %s158
        %s160 = smul.u32 32, %s17
      $region20: #{residual_block_forward.5} parent=15 // pred_fallthru
        _
      // Predicated region
      $region21: #{residual_block_forward.5} parent=15 // pred_check
        %p161 = pneg %p69
      $region22: #{residual_block_forward.5} parent=15 // pred_check_branch
        %163 = sbr.rel (%p161) target = $region24
      $region23: #{residual_block_forward.5} parent=15 // pred_region
        %p164 = scmp.lt.s32.totalorder %s16, 1
        %s165 = scalar_select %p164, %s16, 1
        %s166 = scalar_lea.vmem %s1, %s165
      $region24: #{residual_block_forward.5} parent=15 // pred_fallthru
        _
      // Predicated region
      $region25: #{residual_block_forward.5} parent=15 // pred_check
        %p167 = pneg %p95
      $region26: #{residual_block_forward.5} parent=15 // pred_check_branch
        %169 = sbr.rel (%p167) target = $region28
      $region27: #{residual_block_forward.5} parent=15 // pred_region
        %p170 = scmp.lt.s32.totalorder %s16, 1
        %s171 = scalar_select %p170, %s16, 1
        %s172 = scalar_lea.vmem %s2, %s171
      $region28: #{residual_block_forward.5} parent=15 // pred_fallthru
        _
    $region16: #{residual_block_forward.5} parent=5 // pred_fallthru
      _
    %p173 = scmp.le.s32.totalorder 1, %s9
    %p174 = scmp.lt.s32.totalorder %s9, 3
    %p175 = pnand %p173, %p174
    %p176 = pneg %p175
    // Predicated region
    $region29: #{residual_block_forward.5} parent=5 // pred_check
      _
    $region30: #{residual_block_forward.5} parent=5 // pred_check_branch
      %178 = sbr.rel (%p175) target = $region32
    $region31: #{residual_block_forward.5} parent=5 // pred_region
      %s179 = ssub.s32 %s9, 1
      %s180 = smul.u32 32, %s19
      %p181 = scmp.lt.s32.totalorder %s18, 1
      %s182 = scalar_select %p181, %s18, 1
      %p183 = scmp.lt.s32.totalorder %s180, 31
      %s184 = scalar_select %p183, %s180, 31
      %s185 = smul.addr %s182, 32
      %s186 = sadd.s32 %s184, %s185
      %s187 = smul.addr %s186, 4
      %s188 = scalar_lea.vmem %s0, %s187
      %p189 = pneg %p49
      %p190 = pneg %p46
      %p191 = scmp.lt.s32.totalorder %s18, 1
      %s192 = scalar_select %p191, %s18, 1
      %s193 = scalar_lea.vmem %s1, %s192
      %p194 = pneg %p75
      %p195 = pneg %p72
      %p196 = scmp.lt.s32.totalorder %s18, 1
      %s197 = scalar_select %p196, %s18, 1
      %s198 = scalar_lea.vmem %s2, %s197
      %p199 = pneg %p101
      %p200 = pneg %p98
      %p201 = pneg %p129
      %p202 = pneg %p126
      %s203 = smul.u32 32, %s19
      %p204 = scmp.lt.s32.totalorder %s18, 1
      %s205 = scalar_select %p204, %s18, 1
      %p206 = scmp.lt.s32.totalorder %s203, 31
      %s207 = scalar_select %p206, %s203, 31
      %s208 = smul.addr %s205, 32
      %s209 = sadd.s32 %s207, %s208
      %s210 = smul.addr %s209, 4
      %s211 = scalar_lea.vmem %s3, %s210
      %s212 = smul.u32 32, %s19
      %p213 = scmp.lt.s32.totalorder %s18, 1
      %s214 = scalar_select %p213, %s18, 1
      %p215 = scmp.lt.s32.totalorder %s212, 31
      %s216 = scalar_select %p215, %s212, 31
      %s217 = smul.addr %s214, 32
      %s218 = sadd.s32 %s216, %s217
      %s219 = smul.addr %s218, 4
      %s220 = scalar_lea.vmem %s0, %s219
      %s221 = smul.u32 32, %s19
      %p222 = scmp.lt.s32.totalorder %s18, 1
      %s223 = scalar_select %p222, %s18, 1
      %s224 = scalar_lea.vmem %s1, %s223
      %p225 = scmp.lt.s32.totalorder %s18, 1
      %s226 = scalar_select %p225, %s18, 1
      %s227 = scalar_lea.vmem %s2, %s226
      %s228 = smul.u32 32, %s19
      %p229 = scmp.lt.s32.totalorder %s18, 1
      %s230 = scalar_select %p229, %s18, 1
      %p231 = scmp.lt.s32.totalorder %s228, 31
      %s232 = scalar_select %p231, %s228, 31
      %s233 = smul.addr %s230, 32
      %s234 = sadd.s32 %s232, %s233
      %s235 = smul.addr %s234, 4
      %s236 = scalar_lea.vmem %s3, %s235
      %s237 = smul.u32 32, %s19
      %v238 = vld [vmem:[%s220] sm:$0xf]
      %v239 = vld [vmem:[%s220 + $0x4] sm:$0xf]
      %v240 = vld [vmem:[%s220 + $0x8] sm:$0xf]
      %v241 = vld [vmem:[%s220 + $0xc] sm:$0xf]
      %v242 = vld [vmem:[%s220 + $0x10] sm:$0xf]
      %v243 = vld [vmem:[%s220 + $0x14] sm:$0xf]
      %v244 = vld [vmem:[%s220 + $0x18] sm:$0xf]
      %v245 = vld [vmem:[%s220 + $0x1c] sm:$0xf]
      %v246 = vld [vmem:[%s220 + $0x20] sm:$0xf]
      %v247 = vld [vmem:[%s220 + $0x24] sm:$0xf]
      %v248 = vld [vmem:[%s220 + $0x28] sm:$0xf]
      %v249 = vld [vmem:[%s220 + $0x2c] sm:$0xf]
      %v250 = vld [vmem:[%s220 + $0x30] sm:$0xf]
      %v251 = vld [vmem:[%s220 + $0x34] sm:$0xf]
      %v252 = vld [vmem:[%s220 + $0x38] sm:$0xf]
      %v253 = vld [vmem:[%s220 + $0x3c] sm:$0xf]
      %v254 = vld [vmem:[%s220 + $0x40] sm:$0xf]
      %v255 = vld [vmem:[%s220 + $0x44] sm:$0xf]
      %v256 = vld [vmem:[%s220 + $0x48] sm:$0xf]
      %v257 = vld [vmem:[%s220 + $0x4c] sm:$0xf]
      %v258 = vld [vmem:[%s220 + $0x50] sm:$0xf]
      %v259 = vld [vmem:[%s220 + $0x54] sm:$0xf]
      %v260 = vld [vmem:[%s220 + $0x58] sm:$0xf]
      %v261 = vld [vmem:[%s220 + $0x5c] sm:$0xf]
      %v262 = vld [vmem:[%s220 + $0x60] sm:$0xf]
      %v263 = vld [vmem:[%s220 + $0x64] sm:$0xf]
      %v264 = vld [vmem:[%s220 + $0x68] sm:$0xf]
      %v265 = vld [vmem:[%s220 + $0x6c] sm:$0xf]
      %v266 = vld [vmem:[%s220 + $0x70] sm:$0xf]
      %v267 = vld [vmem:[%s220 + $0x74] sm:$0xf]
      %v268 = vld [vmem:[%s220 + $0x78] sm:$0xf]
      %v269 = vld [vmem:[%s220 + $0x7c] sm:$0xf]
      %v270 = vunpack.c.l.bf16 %v238
      %v271 = vunpack.c.l.bf16 %v239
      %v272 = vunpack.c.l.bf16 %v240
      %v273 = vunpack.c.l.bf16 %v241
      %v274 = vunpack.c.l.bf16 %v242
      %v275 = vunpack.c.l.bf16 %v243
      %v276 = vunpack.c.l.bf16 %v244
      %v277 = vunpack.c.l.bf16 %v245
      %v278 = vunpack.c.l.bf16 %v246
      %v279 = vunpack.c.l.bf16 %v247
      %v280 = vunpack.c.l.bf16 %v248
      %v281 = vunpack.c.l.bf16 %v249
      %v282 = vunpack.c.l.bf16 %v250
      %v283 = vunpack.c.l.bf16 %v251
      %v284 = vunpack.c.l.bf16 %v252
      %v285 = vunpack.c.l.bf16 %v253
      %v286 = vunpack.c.l.bf16 %v254
      %v287 = vunpack.c.l.bf16 %v255
      %v288 = vunpack.c.l.bf16 %v256
      %v289 = vunpack.c.l.bf16 %v257
      %v290 = vunpack.c.l.bf16 %v258
      %v291 = vunpack.c.l.bf16 %v259
      %v292 = vunpack.c.l.bf16 %v260
      %v293 = vunpack.c.l.bf16 %v261
      %v294 = vunpack.c.l.bf16 %v262
      %v295 = vunpack.c.l.bf16 %v263
      %v296 = vunpack.c.l.bf16 %v264
      %v297 = vunpack.c.l.bf16 %v265
      %v298 = vunpack.c.l.bf16 %v266
      %v299 = vunpack.c.l.bf16 %v267
      %v300 = vunpack.c.l.bf16 %v268
      %v301 = vunpack.c.l.bf16 %v269
      %v302 = vld [vmem:[%s224] sm:$0x1]
      %v304 = vlaneseq
      %v305 = vshrl.u32 %v304, 7
      %v306 = vsub.s32 0, %v305
      %v307 = vrot.slane %v302, %v306
      %v309 = vmul.f32 %v270, %v307
      %v310 = vmul.f32 %v271, %v307
      %v311 = vmul.f32 %v272, %v307
      %v312 = vmul.f32 %v273, %v307
      %v313 = vmul.f32 %v274, %v307
      %v314 = vmul.f32 %v275, %v307
      %v315 = vmul.f32 %v276, %v307
      %v316 = vmul.f32 %v277, %v307
      %v317 = vmul.f32 %v278, %v307
      %v318 = vmul.f32 %v279, %v307
      %v319 = vmul.f32 %v280, %v307
      %v320 = vmul.f32 %v281, %v307
      %v321 = vmul.f32 %v282, %v307
      %v322 = vmul.f32 %v283, %v307
      %v323 = vmul.f32 %v284, %v307
      %v324 = vmul.f32 %v285, %v307
      %v325 = vmul.f32 %v286, %v307
      %v326 = vmul.f32 %v287, %v307
      %v327 = vmul.f32 %v288, %v307
      %v328 = vmul.f32 %v289, %v307
      %v329 = vmul.f32 %v290, %v307
      %v330 = vmul.f32 %v291, %v307
      %v331 = vmul.f32 %v292, %v307
      %v332 = vmul.f32 %v293, %v307
      %v333 = vmul.f32 %v294, %v307
      %v334 = vmul.f32 %v295, %v307
      %v335 = vmul.f32 %v296, %v307
      %v336 = vmul.f32 %v297, %v307
      %v337 = vmul.f32 %v298, %v307
      %v338 = vmul.f32 %v299, %v307
      %v339 = vmul.f32 %v300, %v307
      %v340 = vmul.f32 %v301, %v307
      %v341 = vld [vmem:[%s227] sm:$0x1]
      %v343 = vlaneseq
      %v344 = vshrl.u32 %v343, 7
      %v345 = vsub.s32 0, %v344
      %v346 = vrot.slane %v341, %v345
      %v348 = vadd.f32 %v309, %v346
      %v349 = vadd.f32 %v310, %v346
      %v350 = vadd.f32 %v311, %v346
      %v351 = vadd.f32 %v312, %v346
      %v352 = vadd.f32 %v313, %v346
      %v353 = vadd.f32 %v314, %v346
      %v354 = vadd.f32 %v315, %v346
      %v355 = vadd.f32 %v316, %v346
      %v356 = vadd.f32 %v317, %v346
      %v357 = vadd.f32 %v318, %v346
      %v358 = vadd.f32 %v319, %v346
      %v359 = vadd.f32 %v320, %v346
      %v360 = vadd.f32 %v321, %v346
      %v361 = vadd.f32 %v322, %v346
      %v362 = vadd.f32 %v323, %v346
      %v363 = vadd.f32 %v324, %v346
      %v364 = vadd.f32 %v325, %v346
      %v365 = vadd.f32 %v326, %v346
      %v366 = vadd.f32 %v327, %v346
      %v367 = vadd.f32 %v328, %v346
      %v368 = vadd.f32 %v329, %v346
      %v369 = vadd.f32 %v330, %v346
      %v370 = vadd.f32 %v331, %v346
      %v371 = vadd.f32 %v332, %v346
      %v372 = vadd.f32 %v333, %v346
      %v373 = vadd.f32 %v334, %v346
      %v374 = vadd.f32 %v335, %v346
      %v375 = vadd.f32 %v336, %v346
      %v376 = vadd.f32 %v337, %v346
      %v377 = vadd.f32 %v338, %v346
      %v378 = vadd.f32 %v339, %v346
      %v379 = vadd.f32 %v340, %v346
      %v380 = vmax.f32 %v348, 0.0
      %v381 = vmax.f32 %v349, 0.0
      %v382 = vmax.f32 %v350, 0.0
      %v383 = vmax.f32 %v351, 0.0
      %v384 = vmax.f32 %v352, 0.0
      %v385 = vmax.f32 %v353, 0.0
      %v386 = vmax.f32 %v354, 0.0
      %v387 = vmax.f32 %v355, 0.0
      %v388 = vmax.f32 %v356, 0.0
      %v389 = vmax.f32 %v357, 0.0
      %v390 = vmax.f32 %v358, 0.0
      %v391 = vmax.f32 %v359, 0.0
      %v392 = vmax.f32 %v360, 0.0
      %v393 = vmax.f32 %v361, 0.0
      %v394 = vmax.f32 %v362, 0.0
      %v395 = vmax.f32 %v363, 0.0
      %v396 = vmax.f32 %v364, 0.0
      %v397 = vmax.f32 %v365, 0.0
      %v398 = vmax.f32 %v366, 0.0
      %v399 = vmax.f32 %v367, 0.0
      %v400 = vmax.f32 %v368, 0.0
      %v401 = vmax.f32 %v369, 0.0
      %v402 = vmax.f32 %v370, 0.0
      %v403 = vmax.f32 %v371, 0.0
      %v404 = vmax.f32 %v372, 0.0
      %v405 = vmax.f32 %v373, 0.0
      %v406 = vmax.f32 %v374, 0.0
      %v407 = vmax.f32 %v375, 0.0
      %v408 = vmax.f32 %v376, 0.0
      %v409 = vmax.f32 %v377, 0.0
      %v410 = vmax.f32 %v378, 0.0
      %v411 = vmax.f32 %v379, 0.0
      %v412 = vpack.c.bf16 %v381, %v380
      %v413 = vpack.c.bf16 %v383, %v382
      %v414 = vpack.c.bf16 %v385, %v384
      %v415 = vpack.c.bf16 %v387, %v386
      %v416 = vpack.c.bf16 %v389, %v388
      %v417 = vpack.c.bf16 %v391, %v390
      %v418 = vpack.c.bf16 %v393, %v392
      %v419 = vpack.c.bf16 %v395, %v394
      %v420 = vpack.c.bf16 %v397, %v396
      %v421 = vpack.c.bf16 %v399, %v398
      %v422 = vpack.c.bf16 %v401, %v400
      %v423 = vpack.c.bf16 %v403, %v402
      %v424 = vpack.c.bf16 %v405, %v404
      %v425 = vpack.c.bf16 %v407, %v406
      %v426 = vpack.c.bf16 %v409, %v408
      %v427 = vpack.c.bf16 %v411, %v410
      %v444 = vunpack.c.l.b16 %v412
      %v445 = vunpack.c.h.b16 %v412
      %v446 = vunpack.c.l.b16 %v413
      %v447 = vunpack.c.h.b16 %v413
      %v448 = vunpack.c.l.b16 %v414
      %v449 = vunpack.c.h.b16 %v414
      %v450 = vunpack.c.l.b16 %v415
      %v451 = vunpack.c.h.b16 %v415
      %v452 = vunpack.c.l.b16 %v416
      %v453 = vunpack.c.h.b16 %v416
      %v454 = vunpack.c.l.b16 %v417
      %v455 = vunpack.c.h.b16 %v417
      %v456 = vunpack.c.l.b16 %v418
      %v457 = vunpack.c.h.b16 %v418
      %v458 = vunpack.c.l.b16 %v419
      %v459 = vunpack.c.h.b16 %v419
      %v460 = vunpack.c.l.b16 %v420
      %v461 = vunpack.c.h.b16 %v420
      %v462 = vunpack.c.l.b16 %v421
      %v463 = vunpack.c.h.b16 %v421
      %v464 = vunpack.c.l.b16 %v422
      %v465 = vunpack.c.h.b16 %v422
      %v466 = vunpack.c.l.b16 %v423
      %v467 = vunpack.c.h.b16 %v423
      %v468 = vunpack.c.l.b16 %v424
      %v469 = vunpack.c.h.b16 %v424
      %v470 = vunpack.c.l.b16 %v425
      %v471 = vunpack.c.h.b16 %v425
      %v472 = vunpack.c.l.b16 %v426
      %v473 = vunpack.c.h.b16 %v426
      %v474 = vunpack.c.l.b16 %v427
      %v475 = vunpack.c.h.b16 %v427
      %v476 = vpack.c.b16 %v444, %v444
      %v477 = vpack.c.b16 %v445, %v445
      %v478 = vpack.c.b16 %v446, %v446
      %v479 = vpack.c.b16 %v447, %v447
      %v480 = vpack.c.b16 %v448, %v448
      %v481 = vpack.c.b16 %v449, %v449
      %v482 = vpack.c.b16 %v450, %v450
      %v483 = vpack.c.b16 %v451, %v451
      %v484 = vpack.c.b16 %v452, %v452
      %v485 = vpack.c.b16 %v453, %v453
      %v486 = vpack.c.b16 %v454, %v454
      %v487 = vpack.c.b16 %v455, %v455
      %v488 = vpack.c.b16 %v456, %v456
      %v489 = vpack.c.b16 %v457, %v457
      %v490 = vpack.c.b16 %v458, %v458
      %v491 = vpack.c.b16 %v459, %v459
      %v492 = vpack.c.b16 %v460, %v460
      %v493 = vpack.c.b16 %v461, %v461
      %v494 = vpack.c.b16 %v462, %v462
      %v495 = vpack.c.b16 %v463, %v463
      %v496 = vpack.c.b16 %v464, %v464
      %v497 = vpack.c.b16 %v465, %v465
      %v498 = vpack.c.b16 %v466, %v466
      %v499 = vpack.c.b16 %v467, %v467
      %v500 = vpack.c.b16 %v468, %v468
      %v501 = vpack.c.b16 %v469, %v469
      %v502 = vpack.c.b16 %v470, %v470
      %v503 = vpack.c.b16 %v471, %v471
      %v504 = vpack.c.b16 %v472, %v472
      %v505 = vpack.c.b16 %v473, %v473
      %v506 = vpack.c.b16 %v474, %v474
      %v507 = vpack.c.b16 %v475, %v475
      %540 = vst [vmem:[%s236] sm:$0xf] %v476
      %541 = vst [vmem:[%s236 + $0x4] sm:$0xf] %v477
      %542 = vst [vmem:[%s236 + $0x8] sm:$0xf] %v478
      %543 = vst [vmem:[%s236 + $0xc] sm:$0xf] %v479
      %544 = vst [vmem:[%s236 + $0x10] sm:$0xf] %v480
      %545 = vst [vmem:[%s236 + $0x14] sm:$0xf] %v481
      %546 = vst [vmem:[%s236 + $0x18] sm:$0xf] %v482
      %547 = vst [vmem:[%s236 + $0x1c] sm:$0xf] %v483
      %548 = vst [vmem:[%s236 + $0x20] sm:$0xf] %v484
      %549 = vst [vmem:[%s236 + $0x24] sm:$0xf] %v485
      %550 = vst [vmem:[%s236 + $0x28] sm:$0xf] %v486
      %551 = vst [vmem:[%s236 + $0x2c] sm:$0xf] %v487
      %552 = vst [vmem:[%s236 + $0x30] sm:$0xf] %v488
      %553 = vst [vmem:[%s236 + $0x34] sm:$0xf] %v489
      %554 = vst [vmem:[%s236 + $0x38] sm:$0xf] %v490
      %555 = vst [vmem:[%s236 + $0x3c] sm:$0xf] %v491
      %556 = vst [vmem:[%s236 + $0x40] sm:$0xf] %v492
      %557 = vst [vmem:[%s236 + $0x44] sm:$0xf] %v493
      %558 = vst [vmem:[%s236 + $0x48] sm:$0xf] %v494
      %559 = vst [vmem:[%s236 + $0x4c] sm:$0xf] %v495
      %560 = vst [vmem:[%s236 + $0x50] sm:$0xf] %v496
      %561 = vst [vmem:[%s236 + $0x54] sm:$0xf] %v497
      %562 = vst [vmem:[%s236 + $0x58] sm:$0xf] %v498
      %563 = vst [vmem:[%s236 + $0x5c] sm:$0xf] %v499
      %564 = vst [vmem:[%s236 + $0x60] sm:$0xf] %v500
      %565 = vst [vmem:[%s236 + $0x64] sm:$0xf] %v501
      %566 = vst [vmem:[%s236 + $0x68] sm:$0xf] %v502
      %567 = vst [vmem:[%s236 + $0x6c] sm:$0xf] %v503
      %568 = vst [vmem:[%s236 + $0x70] sm:$0xf] %v504
      %569 = vst [vmem:[%s236 + $0x74] sm:$0xf] %v505
      %570 = vst [vmem:[%s236 + $0x78] sm:$0xf] %v506
      %571 = vst [vmem:[%s236 + $0x7c] sm:$0xf] %v507
      %s572 = smul.u32 32, %s19
      %p573 = scmp.lt.s32.totalorder %s18, 1
      %s574 = scalar_select %p573, %s18, 1
      %p575 = scmp.lt.s32.totalorder %s572, 31
      %s576 = scalar_select %p575, %s572, 31
      %s577 = smul.addr %s574, 32
      %s578 = sadd.s32 %s576, %s577
      %s579 = smul.addr %s578, 4
      %s580 = scalar_lea.vmem %s3, %s579
      // Predicated region
      $region33: #{residual_block_forward.5} parent=31 // pred_check
        %p581 = pneg %p126
      $region34: #{residual_block_forward.5} parent=31 // pred_check_branch
        %583 = sbr.rel (%p581) target = $region36
      $region35: #{residual_block_forward.5} parent=31 // pred_region
        %s584 = smul.u32 32, %s19
      $region36: #{residual_block_forward.5} parent=31 // pred_fallthru
        _
    $region32: #{residual_block_forward.5} parent=5 // pred_fallthru
      _
    %p585 = scmp.le.s32.totalorder 2, %s9
    // Predicated region
    $region37: #{residual_block_forward.5} parent=5 // pred_check
      %p586 = pneg %p585
    $region38: #{residual_block_forward.5} parent=5 // pred_check_branch
      %588 = sbr.rel (%p586) target = $region40
    $region39: #{residual_block_forward.5} parent=5 // pred_region
      %s589 = ssub.s32 %s9, 2
      // Predicated region
      $region41: #{residual_block_forward.5} parent=39 // pred_check
        %p590 = pneg %p132
      $region42: #{residual_block_forward.5} parent=39 // pred_check_branch
        %592 = sbr.rel (%p590) target = $region44
      $region43: #{residual_block_forward.5} parent=39 // pred_region
        %s593 = smul.u32 32, %s21
        %p594 = scmp.lt.s32.totalorder %s20, 1
        %s595 = scalar_select %p594, %s20, 1
        %p596 = scmp.lt.s32.totalorder %s593, 31
        %s597 = scalar_select %p596, %s593, 31
        %s598 = smul.addr %s595, 32
        %s599 = sadd.s32 %s597, %s598
        %s600 = smul.addr %s599, 4
        %s601 = scalar_lea.vmem %s3, %s600
      $region44: #{residual_block_forward.5} parent=39 // pred_fallthru
        _
    $region40: #{residual_block_forward.5} parent=5 // pred_fallthru
      _
  $region6: #{residual_block_forward.5} parent=0 // loop_footer
    %s13 = sadd.s32 1, %s9
  $region7: #{residual_block_forward.5} parent=0 // loop_footer_branch
    %8 = sbr.rel target = $region3
  $region8: #{residual_block_forward.5} parent=0 // loop_exit
    _

// kernel: residual_block_forward.7
$region0: #{residual_block_forward.7}
  #allocation0 [shape = 'u32[]', space=smem, size = 0x4, offset = 0x4, fixed_abs, tag = 'smem constant byte address 0x4 - core index']
  #allocation1 [shape = 'u32[144,128]{1,0:T(1,128)}', space=vmem, size = 0x12000, scoped, tag = 'internal scratch']
  %s0 = inlined_call_operand.vmem [shape: bf16[2,256,128], index: 0, kind: input, shape index: {}]
  %s1 = inlined_call_operand.vmem [shape: f32[2,1,128], index: 1, kind: input, shape index: {}]
  %s2 = inlined_call_operand.vmem [shape: f32[2,1,128], index: 2, kind: input, shape index: {}]
  %s3 = inlined_call_operand.vmem [shape: f32[2,256,128], index: 3, kind: input, shape index: {}]
  %s4 = inlined_call_operand.vmem [shape: f32[2,256,128], index: 4, kind: output, shape index: {}]
  %s5 = sld [smem:[#allocation0]]
  $region49: #{residual_block_forward.7} parent=0
    _
  %s7 = ssub.s32 1, %s5
  %s8 = scalar_select 0, %s7, %s5
  loop: start=0, step=1, limit=4
  $region2: #{residual_block_forward.7} parent=0 // loop_pre_header
    _
  $region3: #{residual_block_forward.7} parent=0 // loop_header
    %s10 = sphi 0, %s14
    %p11 = scmp.ge.s32.totalorder %s10, 4
    %s17 = sphi 0, %s29
    %s18 = sphi 0, %s25
    %s19 = sphi 0, %s17
    %s20 = sphi 0, %s18
    %s21 = sphi 0, %s19
    %s22 = sphi 0, %s20
    %s34 = sphi 0, %s36
    %s37 = sphi 0, %s34
    %s38 = sphi 0, %s37
    %s54 = sphi 0, %s38
    %s60 = sphi 0, %s62
    %s63 = sphi 0, %s60
    %s64 = sphi 0, %s63
    %s80 = sphi 0, %s64
    %s86 = sphi 0, %s88
    %s89 = sphi 0, %s86
    %s90 = sphi 0, %s89
    %s106 = sphi 0, %s90
    %s114 = sphi 0, %s116
    %s117 = sphi 0, %s114
    %s118 = sphi 0, %s117
    %s134 = sphi 0, %s118
    %s142 = sphi 0, %s144
    %s145 = sphi 0, %s142
    %s146 = sphi 0, %s145
    %s162 = sphi 0, %s146
  $region4: #{residual_block_forward.7} parent=0 // loop_header_branch
    %13 = sbr.rel (%p11) target = $region8
  $region5: #{residual_block_forward.7} parent=0 // loop_body
    %s15 = ssub.s32 %s10, 1
    %s16 = ssub.s32 %s10, 2
    %s23 = sadd.s32 1, %s18
    %p24 = scmp.ge.s32.totalorder %s23, 1
    %s25 = scalar_select %p24, 0, %s23
    %s26 = sadd.s32 1, %s17
    %s27 = scalar_select %p24, %s26, %s17
    %p28 = scmp.ge.s32.totalorder %s27, 2
    %s29 = scalar_select %p28, 0, %s27
    %s30 = ssub.s32 %s17, %s29
    %s31 = ssub.s32 %s18, %s25
    %s32 = sor.u32 %s30, %s31
    %p33 = scmp.eq.s32.totalorder %s32, 0
    %s35 = sadd.s32 %s34, 1
    %s36 = scalar_select %p33, %s34, %s35
    %p39 = pneg %p33
    %p40 = scmp.eq.s32.totalorder %s10, 1
    %p41 = por %p39, %p40
    %p42 = scmp.ne.s32.totalorder %s34, %s37
    %p43 = scmp.eq.s32.totalorder %s10, 0
    %p44 = por %p42, %p43
    %p45 = scmp.ne.s32.totalorder %s34, %s37
    %p46 = scmp.eq.s32.totalorder %s15, 1
    %p47 = por %p45, %p46
    %p48 = scmp.ne.s32.totalorder %s37, %s38
    %p49 = scmp.eq.s32.totalorder %s15, 0
    %p50 = por %p48, %p49
    %p51 = scmp.ne.s32.totalorder %s37, %s38
    %p52 = scmp.eq.s32.totalorder %s16, 1
    %p53 = por %p51, %p52
    %p55 = scmp.ne.s32.totalorder %s38, %s54
    %p56 = scmp.eq.s32.totalorder %s16, 0
    %p57 = por %p55, %p56
    %s58 = ssub.s32 %s17, %s29
    %p59 = scmp.eq.s32.totalorder %s58, 0
    %s61 = sadd.s32 %s60, 1
    %s62 = scalar_select %p59, %s60, %s61
    %p65 = pneg %p59
    %p66 = scmp.eq.s32.totalorder %s10, 1
    %p67 = por %p65, %p66
    %p68 = scmp.ne.s32.totalorder %s60, %s63
    %p69 = scmp.eq.s32.totalorder %s10, 0
    %p70 = por %p68, %p69
    %p71 = scmp.ne.s32.totalorder %s60, %s63
    %p72 = scmp.eq.s32.totalorder %s15, 1
    %p73 = por %p71, %p72
    %p74 = scmp.ne.s32.totalorder %s63, %s64
    %p75 = scmp.eq.s32.totalorder %s15, 0
    %p76 = por %p74, %p75
    %p77 = scmp.ne.s32.totalorder %s63, %s64
    %p78 = scmp.eq.s32.totalorder %s16, 1
    %p79 = por %p77, %p78
    %p81 = scmp.ne.s32.totalorder %s64, %s80
    %p82 = scmp.eq.s32.totalorder %s16, 0
    %p83 = por %p81, %p82
    %s84 = ssub.s32 %s17, %s29
    %p85 = scmp.eq.s32.totalorder %s84, 0
    %s87 = sadd.s32 %s86, 1
    %s88 = scalar_select %p85, %s86, %s87
    %p91 = pneg %p85
    %p92 = scmp.eq.s32.totalorder %s10, 1
    %p93 = por %p91, %p92
    %p94 = scmp.ne.s32.totalorder %s86, %s89
    %p95 = scmp.eq.s32.totalorder %s10, 0
    %p96 = por %p94, %p95
    %p97 = scmp.ne.s32.totalorder %s86, %s89
    %p98 = scmp.eq.s32.totalorder %s15, 1
    %p99 = por %p97, %p98
    %p100 = scmp.ne.s32.totalorder %s89, %s90
    %p101 = scmp.eq.s32.totalorder %s15, 0
    %p102 = por %p100, %p101
    %p103 = scmp.ne.s32.totalorder %s89, %s90
    %p104 = scmp.eq.s32.totalorder %s16, 1
    %p105 = por %p103, %p104
    %p107 = scmp.ne.s32.totalorder %s90, %s106
    %p108 = scmp.eq.s32.totalorder %s16, 0
    %p109 = por %p107, %p108
    %s110 = ssub.s32 %s17, %s29
    %s111 = ssub.s32 %s18, %s25
    %s112 = sor.u32 %s110, %s111
    %p113 = scmp.eq.s32.totalorder %s112, 0
    %s115 = sadd.s32 %s114, 1
    %s116 = scalar_select %p113, %s114, %s115
    %p119 = pneg %p113
    %p120 = scmp.eq.s32.totalorder %s10, 1
    %p121 = por %p119, %p120
    %p122 = scmp.ne.s32.totalorder %s114, %s117
    %p123 = scmp.eq.s32.totalorder %s10, 0
    %p124 = por %p122, %p123
    %p125 = scmp.ne.s32.totalorder %s114, %s117
    %p126 = scmp.eq.s32.totalorder %s15, 1
    %p127 = por %p125, %p126
    %p128 = scmp.ne.s32.totalorder %s117, %s118
    %p129 = scmp.eq.s32.totalorder %s15, 0
    %p130 = por %p128, %p129
    %p131 = scmp.ne.s32.totalorder %s117, %s118
    %p132 = scmp.eq.s32.totalorder %s16, 1
    %p133 = por %p131, %p132
    %p135 = scmp.ne.s32.totalorder %s118, %s134
    %p136 = scmp.eq.s32.totalorder %s16, 0
    %p137 = por %p135, %p136
    %s138 = ssub.s32 %s17, %s29
    %s139 = ssub.s32 %s18, %s25
    %s140 = sor.u32 %s138, %s139
    %p141 = scmp.eq.s32.totalorder %s140, 0
    %s143 = sadd.s32 %s142, 1
    %s144 = scalar_select %p141, %s142, %s143
    %p147 = pneg %p141
    %p148 = scmp.eq.s32.totalorder %s10, 1
    %p149 = por %p147, %p148
    %p150 = scmp.ne.s32.totalorder %s142, %s145
    %p151 = scmp.eq.s32.totalorder %s10, 0
    %p152 = por %p150, %p151
    %p153 = scmp.ne.s32.totalorder %s142, %s145
    %p154 = scmp.eq.s32.totalorder %s15, 1
    %p155 = por %p153, %p154
    %p156 = scmp.ne.s32.totalorder %s145, %s146
    %p157 = scmp.eq.s32.totalorder %s15, 0
    %p158 = por %p156, %p157
    %p159 = scmp.ne.s32.totalorder %s145, %s146
    %p160 = scmp.eq.s32.totalorder %s16, 1
    %p161 = por %p159, %p160
    %p163 = scmp.ne.s32.totalorder %s146, %s162
    %p164 = scmp.eq.s32.totalorder %s16, 0
    %p165 = por %p163, %p164
    %p166 = scmp.le.s32.totalorder 1, %s10
    %p167 = scmp.lt.s32.totalorder %s10, 3
    %p168 = pnand %p166, %p167
    %p169 = pneg %p168
    // Predicated region
    $region9: #{residual_block_forward.7} parent=5 // pred_check
      _
    $region10: #{residual_block_forward.7} parent=5 // pred_check_branch
      %171 = sbr.rel (%p168) target = $region12
    $region11: #{residual_block_forward.7} parent=5 // pred_region
      %s172 = ssub.s32 %s10, 1
    $region12: #{residual_block_forward.7} parent=5 // pred_fallthru
      _
    %p173 = scmp.lt.s32.totalorder %s10, 2
    // Predicated region
    $region13: #{residual_block_forward.7} parent=5 // pred_check
      %p174 = pneg %p173
    $region14: #{residual_block_forward.7} parent=5 // pred_check_branch
      %176 = sbr.rel (%p174) target = $region16
    $region15: #{residual_block_forward.7} parent=5 // pred_region
      // Predicated region
      $region17: #{residual_block_forward.7} parent=15 // pred_check
        %p177 = pneg %p44
      $region18: #{residual_block_forward.7} parent=15 // pred_check_branch
        %179 = sbr.rel (%p177) target = $region20
      $region19: #{residual_block_forward.7} parent=15 // pred_region
        %s180 = smul.u32 32, %s18
        %p181 = scmp.lt.s32.totalorder %s17, 1
        %s182 = scalar_select %p181, %s17, 1
        %p183 = scmp.lt.s32.totalorder %s180, 31
        %s184 = scalar_select %p183, %s180, 31
        %s185 = smul.addr %s182, 32
        %s186 = sadd.s32 %s184, %s185
        %s187 = smul.addr %s186, 4
        %s188 = scalar_lea.vmem %s0, %s187
        %s189 = smul.u32 32, %s18
      $region20: #{residual_block_forward.7} parent=15 // pred_fallthru
        _
      // Predicated region
      $region21: #{residual_block_forward.7} parent=15 // pred_check
        %p190 = pneg %p70
      $region22: #{residual_block_forward.7} parent=15 // pred_check_branch
        %192 = sbr.rel (%p190) target = $region24
      $region23: #{residual_block_forward.7} parent=15 // pred_region
        %p193 = scmp.lt.s32.totalorder %s17, 1
        %s194 = scalar_select %p193, %s17, 1
        %s195 = scalar_lea.vmem %s1, %s194
      $region24: #{residual_block_forward.7} parent=15 // pred_fallthru
        _
      // Predicated region
      $region25: #{residual_block_forward.7} parent=15 // pred_check
        %p196 = pneg %p96
      $region26: #{residual_block_forward.7} parent=15 // pred_check_branch
        %198 = sbr.rel (%p196) target = $region28
      $region27: #{residual_block_forward.7} parent=15 // pred_region
        %p199 = scmp.lt.s32.totalorder %s17, 1
        %s200 = scalar_select %p199, %s17, 1
        %s201 = scalar_lea.vmem %s2, %s200
      $region28: #{residual_block_forward.7} parent=15 // pred_fallthru
        _
      // Predicated region
      $region29: #{residual_block_forward.7} parent=15 // pred_check
        %p202 = pneg %p124
      $region30: #{residual_block_forward.7} parent=15 // pred_check_branch
        %204 = sbr.rel (%p202) target = $region32
      $region31: #{residual_block_forward.7} parent=15 // pred_region
        %s205 = smul.u32 32, %s18
        %p206 = scmp.lt.s32.totalorder %s17, 1
        %s207 = scalar_select %p206, %s17, 1
        %p208 = scmp.lt.s32.totalorder %s205, 31
        %s209 = scalar_select %p208, %s205, 31
        %s210 = smul.addr %s207, 32
        %s211 = sadd.s32 %s209, %s210
        %s212 = smul.addr %s211, 8
        %s213 = scalar_lea.vmem %s3, %s212
        %s214 = smul.u32 32, %s18
      $region32: #{residual_block_forward.7} parent=15 // pred_fallthru
        _
    $region16: #{residual_block_forward.7} parent=5 // pred_fallthru
      _
    %p215 = scmp.le.s32.totalorder 1, %s10
    %p216 = scmp.lt.s32.totalorder %s10, 3
    %p217 = pnand %p215, %p216
    %p218 = pneg %p217
    // Predicated region
    $region33: #{residual_block_forward.7} parent=5 // pred_check
      _
    $region34: #{residual_block_forward.7} parent=5 // pred_check_branch
      %220 = sbr.rel (%p217) target = $region36
    $region35: #{residual_block_forward.7} parent=5 // pred_region
      %s221 = ssub.s32 %s10, 1
      %s222 = smul.u32 32, %s20
      %p223 = scmp.lt.s32.totalorder %s19, 1
      %s224 = scalar_select %p223, %s19, 1
      %p225 = scmp.lt.s32.totalorder %s222, 31
      %s226 = scalar_select %p225, %s222, 31
      %s227 = smul.addr %s224, 32
      %s228 = sadd.s32 %s226, %s227
      %s229 = smul.addr %s228, 4
      %s230 = scalar_lea.vmem %s0, %s229
      %p231 = pneg %p50
      %p232 = pneg %p47
      %p233 = scmp.lt.s32.totalorder %s19, 1
      %s234 = scalar_select %p233, %s19, 1
      %s235 = scalar_lea.vmem %s1, %s234
      %p236 = pneg %p76
      %p237 = pneg %p73
      %p238 = scmp.lt.s32.totalorder %s19, 1
      %s239 = scalar_select %p238, %s19, 1
      %s240 = scalar_lea.vmem %s2, %s239
      %p241 = pneg %p102
      %p242 = pneg %p99
      %s243 = smul.u32 32, %s20
      %p244 = scmp.lt.s32.totalorder %s19, 1
      %s245 = scalar_select %p244, %s19, 1
      %p246 = scmp.lt.s32.totalorder %s243, 31
      %s247 = scalar_select %p246, %s243, 31
      %s248 = smul.addr %s245, 32
      %s249 = sadd.s32 %s247, %s248
      %s250 = smul.addr %s249, 8
      %s251 = scalar_lea.vmem %s3, %s250
      %p252 = pneg %p130
      %p253 = pneg %p127
      %p254 = pneg %p158
      %p255 = pneg %p155
      %s256 = smul.u32 32, %s20
      %p257 = scmp.lt.s32.totalorder %s19, 1
      %s258 = scalar_select %p257, %s19, 1
      %p259 = scmp.lt.s32.totalorder %s256, 31
      %s260 = scalar_select %p259, %s256, 31
      %s261 = smul.addr %s258, 32
      %s262 = sadd.s32 %s260, %s261
      %s263 = smul.addr %s262, 8
      %s264 = scalar_lea.vmem %s4, %s263
      %s265 = smul.u32 32, %s20
      %p266 = scmp.lt.s32.totalorder %s19, 1
      %s267 = scalar_select %p266, %s19, 1
      %p268 = scmp.lt.s32.totalorder %s265, 31
      %s269 = scalar_select %p268, %s265, 31
      %s270 = smul.addr %s267, 32
      %s271 = sadd.s32 %s269, %s270
      %s272 = smul.addr %s271, 4
      %s273 = scalar_lea.vmem %s0, %s272
      %s274 = smul.u32 32, %s20
      %p275 = scmp.lt.s32.totalorder %s19, 1
      %s276 = scalar_select %p275, %s19, 1
      %s277 = scalar_lea.vmem %s1, %s276
      %p278 = scmp.lt.s32.totalorder %s19, 1
      %s279 = scalar_select %p278, %s19, 1
      %s280 = scalar_lea.vmem %s2, %s279
      %s281 = smul.u32 32, %s20
      %p282 = scmp.lt.s32.totalorder %s19, 1
      %s283 = scalar_select %p282, %s19, 1
      %p284 = scmp.lt.s32.totalorder %s281, 31
      %s285 = scalar_select %p284, %s281, 31
      %s286 = smul.addr %s283, 32
      %s287 = sadd.s32 %s285, %s286
      %s288 = smul.addr %s287, 8
      %s289 = scalar_lea.vmem %s3, %s288
      %s290 = smul.u32 32, %s20
      %s291 = smul.u32 32, %s20
      %p292 = scmp.lt.s32.totalorder %s19, 1
      %s293 = scalar_select %p292, %s19, 1
      %p294 = scmp.lt.s32.totalorder %s291, 31
      %s295 = scalar_select %p294, %s291, 31
      %s296 = smul.addr %s293, 32
      %s297 = sadd.s32 %s295, %s296
      %s298 = smul.addr %s297, 8
      %s299 = scalar_lea.vmem %s4, %s298
      %s300 = smul.u32 32, %s20
      %v301 = vld [vmem:[%s273] sm:$0xf]
      %v302 = vld [vmem:[%s273 + $0x4] sm:$0xf]
      %v303 = vld [vmem:[%s273 + $0x8] sm:$0xf]
      %v304 = vld [vmem:[%s273 + $0xc] sm:$0xf]
      %v305 = vld [vmem:[%s273 + $0x10] sm:$0xf]
      %v306 = vld [vmem:[%s273 + $0x14] sm:$0xf]
      %v307 = vld [vmem:[%s273 + $0x18] sm:$0xf]
      %v308 = vld [vmem:[%s273 + $0x1c] sm:$0xf]
      %v309 = vld [vmem:[%s273 + $0x20] sm:$0xf]
      %v310 = vld [vmem:[%s273 + $0x24] sm:$0xf]
      %v311 = vld [vmem:[%s273 + $0x28] sm:$0xf]
      %v312 = vld [vmem:[%s273 + $0x2c] sm:$0xf]
      %v313 = vld [vmem:[%s273 + $0x30] sm:$0xf]
      %v314 = vld [vmem:[%s273 + $0x34] sm:$0xf]
      %v315 = vld [vmem:[%s273 + $0x38] sm:$0xf]
      %v316 = vld [vmem:[%s273 + $0x3c] sm:$0xf]
      %v317 = vld [vmem:[%s273 + $0x40] sm:$0xf]
      %v318 = vld [vmem:[%s273 + $0x44] sm:$0xf]
      %v319 = vld [vmem:[%s273 + $0x48] sm:$0xf]
      %v320 = vld [vmem:[%s273 + $0x4c] sm:$0xf]
      %v321 = vld [vmem:[%s273 + $0x50] sm:$0xf]
      %v322 = vld [vmem:[%s273 + $0x54] sm:$0xf]
      %v323 = vld [vmem:[%s273 + $0x58] sm:$0xf]
      %v324 = vld [vmem:[%s273 + $0x5c] sm:$0xf]
      %v325 = vld [vmem:[%s273 + $0x60] sm:$0xf]
      %v326 = vld [vmem:[%s273 + $0x64] sm:$0xf]
      %v327 = vld [vmem:[%s273 + $0x68] sm:$0xf]
      %v328 = vld [vmem:[%s273 + $0x6c] sm:$0xf]
      %v329 = vld [vmem:[%s273 + $0x70] sm:$0xf]
      %v330 = vld [vmem:[%s273 + $0x74] sm:$0xf]
      %v331 = vld [vmem:[%s273 + $0x78] sm:$0xf]
      %v332 = vld [vmem:[%s273 + $0x7c] sm:$0xf]
      %v333 = vunpack.c.l.bf16 %v301
      %v334 = vunpack.c.l.bf16 %v302
      %v335 = vunpack.c.l.bf16 %v303
      %v336 = vunpack.c.l.bf16 %v304
      %v337 = vunpack.c.l.bf16 %v305
      %v338 = vunpack.c.l.bf16 %v306
      %v339 = vunpack.c.l.bf16 %v307
      %v340 = vunpack.c.l.bf16 %v308
      %v341 = vunpack.c.l.bf16 %v309
      %v342 = vunpack.c.l.bf16 %v310
      %v343 = vunpack.c.l.bf16 %v311
      %v344 = vunpack.c.l.bf16 %v312
      %v345 = vunpack.c.l.bf16 %v313
      %v346 = vunpack.c.l.bf16 %v314
      %v347 = vunpack.c.l.bf16 %v315
      %v348 = vunpack.c.l.bf16 %v316
      %v349 = vunpack.c.l.bf16 %v317
      %v350 = vunpack.c.l.bf16 %v318
      %v351 = vunpack.c.l.bf16 %v319
      %v352 = vunpack.c.l.bf16 %v320
      %v353 = vunpack.c.l.bf16 %v321
      %v354 = vunpack.c.l.bf16 %v322
      %v355 = vunpack.c.l.bf16 %v323
      %v356 = vunpack.c.l.bf16 %v324
      %v357 = vunpack.c.l.bf16 %v325
      %v358 = vunpack.c.l.bf16 %v326
      %v359 = vunpack.c.l.bf16 %v327
      %v360 = vunpack.c.l.bf16 %v328
      %v361 = vunpack.c.l.bf16 %v329
      %v362 = vunpack.c.l.bf16 %v330
      %v363 = vunpack.c.l.bf16 %v331
      %v364 = vunpack.c.l.bf16 %v332
      %v365 = vld [vmem:[%s277] sm:$0x1]
      %v367 = vlaneseq
      %v368 = vshrl.u32 %v367, 7
      %v369 = vsub.s32 0, %v368
      %v370 = vrot.slane %v365, %v369
      %v372 = vmul.f32 %v333, %v370
      %v373 = vmul.f32 %v334, %v370
      %v374 = vmul.f32 %v335, %v370
      %v375 = vmul.f32 %v336, %v370
      %v376 = vmul.f32 %v337, %v370
      %v377 = vmul.f32 %v338, %v370
      %v378 = vmul.f32 %v339, %v370
      %v379 = vmul.f32 %v340, %v370
      %v380 = vmul.f32 %v341, %v370
      %v381 = vmul.f32 %v342, %v370
      %v382 = vmul.f32 %v343, %v370
      %v383 = vmul.f32 %v344, %v370
      %v384 = vmul.f32 %v345, %v370
      %v385 = vmul.f32 %v346, %v370
      %v386 = vmul.f32 %v347, %v370
      %v387 = vmul.f32 %v348, %v370
      %v388 = vmul.f32 %v349, %v370
      %v389 = vmul.f32 %v350, %v370
      %v390 = vmul.f32 %v351, %v370
      %v391 = vmul.f32 %v352, %v370
      %v392 = vmul.f32 %v353, %v370
      %v393 = vmul.f32 %v354, %v370
      %v394 = vmul.f32 %v355, %v370
      %v395 = vmul.f32 %v356, %v370
      %v396 = vmul.f32 %v357, %v370
      %v397 = vmul.f32 %v358, %v370
      %v398 = vmul.f32 %v359, %v370
      %v399 = vmul.f32 %v360, %v370
      %v400 = vmul.f32 %v361, %v370
      %v401 = vmul.f32 %v362, %v370
      %v402 = vmul.f32 %v363, %v370
      %v403 = vmul.f32 %v364, %v370
      %v404 = vld [vmem:[%s280] sm:$0x1]
      %v406 = vlaneseq
      %v407 = vshrl.u32 %v406, 7
      %v408 = vsub.s32 0, %v407
      %v409 = vrot.slane %v404, %v408
      %v411 = vadd.f32 %v372, %v409
      %v412 = vadd.f32 %v373, %v409
      %v413 = vadd.f32 %v374, %v409
      %v414 = vadd.f32 %v375, %v409
      %v415 = vadd.f32 %v376, %v409
      %v416 = vadd.f32 %v377, %v409
      %v417 = vadd.f32 %v378, %v409
      %v418 = vadd.f32 %v379, %v409
      %v419 = vadd.f32 %v380, %v409
      %v420 = vadd.f32 %v381, %v409
      %v421 = vadd.f32 %v382, %v409
      %v422 = vadd.f32 %v383, %v409
      %v423 = vadd.f32 %v384, %v409
      %v424 = vadd.f32 %v385, %v409
      %v425 = vadd.f32 %v386, %v409
      %v426 = vadd.f32 %v387, %v409
      %v427 = vadd.f32 %v388, %v409
      %v428 = vadd.f32 %v389, %v409
      %v429 = vadd.f32 %v390, %v409
      %v430 = vadd.f32 %v391, %v409
      %v431 = vadd.f32 %v392, %v409
      %v432 = vadd.f32 %v393, %v409
      %v433 = vadd.f32 %v394, %v409
      %v434 = vadd.f32 %v395, %v409
      %v435 = vadd.f32 %v396, %v409
      %v436 = vadd.f32 %v397, %v409
      %v437 = vadd.f32 %v398, %v409
      %v438 = vadd.f32 %v399, %v409
      %v439 = vadd.f32 %v400, %v409
      %v440 = vadd.f32 %v401, %v409
      %v441 = vadd.f32 %v402, %v409
      %v442 = vadd.f32 %v403, %v409
      %v443 = vld [vmem:[%s289] sm:$0xff]
      %v444 = vld [vmem:[%s289 + $0x8] sm:$0xff]
      %v445 = vld [vmem:[%s289 + $0x10] sm:$0xff]
      %v446 = vld [vmem:[%s289 + $0x18] sm:$0xff]
      %v447 = vld [vmem:[%s289 + $0x20] sm:$0xff]
      %v448 = vld [vmem:[%s289 + $0x28] sm:$0xff]
      %v449 = vld [vmem:[%s289 + $0x30] sm:$0xff]
      %v450 = vld [vmem:[%s289 + $0x38] sm:$0xff]
      %v451 = vld [vmem:[%s289 + $0x40] sm:$0xff]
      %v452 = vld [vmem:[%s289 + $0x48] sm:$0xff]
      %v453 = vld [vmem:[%s289 + $0x50] sm:$0xff]
      %v454 = vld [vmem:[%s289 + $0x58] sm:$0xff]
      %v455 = vld [vmem:[%s289 + $0x60] sm:$0xff]
      %v456 = vld [vmem:[%s289 + $0x68] sm:$0xff]
      %v457 = vld [vmem:[%s289 + $0x70] sm:$0xff]
      %v458 = vld [vmem:[%s289 + $0x78] sm:$0xff]
      %v459 = vld [vmem:[%s289 + $0x80] sm:$0xff]
      %v460 = vld [vmem:[%s289 + $0x88] sm:$0xff]
      %v461 = vld [vmem:[%s289 + $0x90] sm:$0xff]
      %v462 = vld [vmem:[%s289 + $0x98] sm:$0xff]
      %v463 = vld [vmem:[%s289 + $0xa0] sm:$0xff]
      %v464 = vld [vmem:[%s289 + $0xa8] sm:$0xff]
      %v465 = vld [vmem:[%s289 + $0xb0] sm:$0xff]
      %v466 = vld [vmem:[%s289 + $0xb8] sm:$0xff]
      %v467 = vld [vmem:[%s289 + $0xc0] sm:$0xff]
      %v468 = vld [vmem:[%s289 + $0xc8] sm:$0xff]
      %v469 = vld [vmem:[%s289 + $0xd0] sm:$0xff]
      %v470 = vld [vmem:[%s289 + $0xd8] sm:$0xff]
      %v471 = vld [vmem:[%s289 + $0xe0] sm:$0xff]
      %v472 = vld [vmem:[%s289 + $0xe8] sm:$0xff]
      %v473 = vld [vmem:[%s289 + $0xf0] sm:$0xff]
      %v474 = vld [vmem:[%s289 + $0xf8] sm:$0xff]
      %v475 = vadd.f32 %v411, %v443
      %v476 = vadd.f32 %v412, %v444
      %v477 = vadd.f32 %v413, %v445
      %v478 = vadd.f32 %v414, %v446
      %v479 = vadd.f32 %v415, %v447
      %v480 = vadd.f32 %v416, %v448
      %v481 = vadd.f32 %v417, %v449
      %v482 = vadd.f32 %v418, %v450
      %v483 = vadd.f32 %v419, %v451
      %v484 = vadd.f32 %v420, %v452
      %v485 = vadd.f32 %v421, %v453
      %v486 = vadd.f32 %v422, %v454
      %v487 = vadd.f32 %v423, %v455
      %v488 = vadd.f32 %v424, %v456
      %v489 = vadd.f32 %v425, %v457
      %v490 = vadd.f32 %v426, %v458
      %v491 = vadd.f32 %v427, %v459
      %v492 = vadd.f32 %v428, %v460
      %v493 = vadd.f32 %v429, %v461
      %v494 = vadd.f32 %v430, %v462
      %v495 = vadd.f32 %v431, %v463
      %v496 = vadd.f32 %v432, %v464
      %v497 = vadd.f32 %v433, %v465
      %v498 = vadd.f32 %v434, %v466
      %v499 = vadd.f32 %v435, %v467
      %v500 = vadd.f32 %v436, %v468
      %v501 = vadd.f32 %v437, %v469
      %v502 = vadd.f32 %v438, %v470
      %v503 = vadd.f32 %v439, %v471
      %v504 = vadd.f32 %v440, %v472
      %v505 = vadd.f32 %v441, %v473
      %v506 = vadd.f32 %v442, %v474
      %507 = vst [vmem:[%s299] sm:$0xff] %v475
      %508 = vst [vmem:[%s299 + $0x8] sm:$0xff] %v476
      %509 = vst [vmem:[%s299 + $0x10] sm:$0xff] %v477
      %510 = vst [vmem:[%s299 + $0x18] sm:$0xff] %v478
      %511 = vst [vmem:[%s299 + $0x20] sm:$0xff] %v479
      %512 = vst [vmem:[%s299 + $0x28] sm:$0xff] %v480
      %513 = vst [vmem:[%s299 + $0x30] sm:$0xff] %v481
      %514 = vst [vmem:[%s299 + $0x38] sm:$0xff] %v482
      %515 = vst [vmem:[%s299 + $0x40] sm:$0xff] %v483
      %516 = vst [vmem:[%s299 + $0x48] sm:$0xff] %v484
      %517 = vst [vmem:[%s299 + $0x50] sm:$0xff] %v485
      %518 = vst [vmem:[%s299 + $0x58] sm:$0xff] %v486
      %519 = vst [vmem:[%s299 + $0x60] sm:$0xff] %v487
      %520 = vst [vmem:[%s299 + $0x68] sm:$0xff] %v488
      %521 = vst [vmem:[%s299 + $0x70] sm:$0xff] %v489
      %522 = vst [vmem:[%s299 + $0x78] sm:$0xff] %v490
      %523 = vst [vmem:[%s299 + $0x80] sm:$0xff] %v491
      %524 = vst [vmem:[%s299 + $0x88] sm:$0xff] %v492
      %525 = vst [vmem:[%s299 + $0x90] sm:$0xff] %v493
      %526 = vst [vmem:[%s299 + $0x98] sm:$0xff] %v494
      %527 = vst [vmem:[%s299 + $0xa0] sm:$0xff] %v495
      %528 = vst [vmem:[%s299 + $0xa8] sm:$0xff] %v496
      %529 = vst [vmem:[%s299 + $0xb0] sm:$0xff] %v497
      %530 = vst [vmem:[%s299 + $0xb8] sm:$0xff] %v498
      %531 = vst [vmem:[%s299 + $0xc0] sm:$0xff] %v499
      %532 = vst [vmem:[%s299 + $0xc8] sm:$0xff] %v500
      %533 = vst [vmem:[%s299 + $0xd0] sm:$0xff] %v501
      %534 = vst [vmem:[%s299 + $0xd8] sm:$0xff] %v502
      %535 = vst [vmem:[%s299 + $0xe0] sm:$0xff] %v503
      %536 = vst [vmem:[%s299 + $0xe8] sm:$0xff] %v504
      %537 = vst [vmem:[%s299 + $0xf0] sm:$0xff] %v505
      %538 = vst [vmem:[%s299 + $0xf8] sm:$0xff] %v506
      %s539 = smul.u32 32, %s20
      %p540 = scmp.lt.s32.totalorder %s19, 1
      %s541 = scalar_select %p540, %s19, 1
      %p542 = scmp.lt.s32.totalorder %s539, 31
      %s543 = scalar_select %p542, %s539, 31
      %s544 = smul.addr %s541, 32
      %s545 = sadd.s32 %s543, %s544
      %s546 = smul.addr %s545, 8
      %s547 = scalar_lea.vmem %s4, %s546
      // Predicated region
      $region37: #{residual_block_forward.7} parent=35 // pred_check
        %p548 = pneg %p155
      $region38: #{residual_block_forward.7} parent=35 // pred_check_branch
        %550 = sbr.rel (%p548) target = $region40
      $region39: #{residual_block_forward.7} parent=35 // pred_region
        %s551 = smul.u32 32, %s20
      $region40: #{residual_block_forward.7} parent=35 // pred_fallthru
        _
    $region36: #{residual_block_forward.7} parent=5 // pred_fallthru
      _
    %p552 = scmp.le.s32.totalorder 2, %s10
    // Predicated region
    $region41: #{residual_block_forward.7} parent=5 // pred_check
      %p553 = pneg %p552
    $region42: #{residual_block_forward.7} parent=5 // pred_check_branch
      %555 = sbr.rel (%p553) target = $region44
    $region43: #{residual_block_forward.7} parent=5 // pred_region
      %s556 = ssub.s32 %s10, 2
      // Predicated region
      $region45: #{residual_block_forward.7} parent=43 // pred_check
        %p557 = pneg %p161
      $region46: #{residual_block_forward.7} parent=43 // pred_check_branch
        %559 = sbr.rel (%p557) target = $region48
      $region47: #{residual_block_forward.7} parent=43 // pred_region
        %s560 = smul.u32 32, %s22
        %p561 = scmp.lt.s32.totalorder %s21, 1
        %s562 = scalar_select %p561, %s21, 1
        %p563 = scmp.lt.s32.totalorder %s560, 31
        %s564 = scalar_select %p563, %s560, 31
        %s565 = smul.addr %s562, 32
        %s566 = sadd.s32 %s564, %s565
        %s567 = smul.addr %s566, 8
        %s568 = scalar_lea.vmem %s4, %s567
      $region48: #{residual_block_forward.7} parent=43 // pred_fallthru
        _
    $region44: #{residual_block_forward.7} parent=5 // pred_fallthru
      _
  $region6: #{residual_block_forward.7} parent=0 // loop_footer
    %s14 = sadd.s32 1, %s10
  $region7: #{residual_block_forward.7} parent=0 // loop_footer_branch
    %9 = sbr.rel target = $region3
  $region8: #{residual_block_forward.7} parent=0 // loop_exit
    _

// kernel: residual_block_forward.4
$region0: #{residual_block_forward.4}
  #allocation0 [shape = 'u32[]', space=smem, size = 0x4, offset = 0x4, fixed_abs, tag = 'smem constant byte address 0x4 - core index']
  #allocation1 [shape = 'u32[144,128]{1,0:T(1,128)}', space=vmem, size = 0x12000, scoped, tag = 'internal scratch']
  %s0 = inlined_call_operand.vmem [shape: bf16[2,1,18,18,128], index: 0, kind: input, shape index: {}]
  %s1 = inlined_call_operand.vmem [shape: bf16[1152,128], index: 1, kind: input, shape index: {}]
  %s2 = inlined_call_operand.vmem [shape: bf16[2,256,128], index: 2, kind: output, shape index: {0}]
  %s3 = inlined_call_operand.vmem [shape: f32[2,1,8,128], index: 3, kind: output, shape index: {1}]
  %s4 = inlined_call_operand.vmem [shape: f32[2,1,8,128], index: 4, kind: output, shape index: {2}]
  %5 = xla_tuple %s2, %s3, %s4
  %s6 = sld [smem:[#allocation0]]
  $region57: #{residual_block_forward.4} parent=0
    _
  %s8 = ssub.s32 1, %s6
  %s9 = scalar_select 0, %s8, %s6
  loop: start=0, step=1, limit=4
  $region2: #{residual_block_forward.4} parent=0 // loop_pre_header
    _
  $region3: #{residual_block_forward.4} parent=0 // loop_header
    %s11 = sphi 0, %s15
    %p12 = scmp.ge.s32.totalorder %s11, 4
    %s18 = sphi 0, %s30
    %s19 = sphi 0, %s26
    %s20 = sphi 0, %s18
    %s21 = sphi 0, %s19
    %s22 = sphi 0, %s20
    %s23 = sphi 0, %s21
    %s35 = sphi 0, %s37
    %s38 = sphi 0, %s35
    %s39 = sphi 0, %s38
    %s55 = sphi 0, %s39
    %s59 = sphi 0, %s59
    %s61 = sphi 0, %s59
    %s62 = sphi 0, %s61
    %s76 = sphi 0, %s62
    %s84 = sphi 0, %s86
    %s87 = sphi 0, %s84
    %s88 = sphi 0, %s87
    %s104 = sphi 0, %s88
    %s112 = sphi 0, %s114
    %s115 = sphi 0, %s112
    %s116 = sphi 0, %s115
    %s132 = sphi 0, %s116
    %s140 = sphi 0, %s142
    %s143 = sphi 0, %s140
    %s144 = sphi 0, %s143
    %s160 = sphi 0, %s144
  $region4: #{residual_block_forward.4} parent=0 // loop_header_branch
    %14 = sbr.rel (%p12) target = $region8
  $region5: #{residual_block_forward.4} parent=0 // loop_body
    %s16 = ssub.s32 %s11, 1
    %s17 = ssub.s32 %s11, 2
    %s24 = sadd.s32 1, %s19
    %p25 = scmp.ge.s32.totalorder %s24, 1
    %s26 = scalar_select %p25, 0, %s24
    %s27 = sadd.s32 1, %s18
    %s28 = scalar_select %p25, %s27, %s18
    %p29 = scmp.ge.s32.totalorder %s28, 2
    %s30 = scalar_select %p29, 0, %s28
    %s31 = ssub.s32 %s18, %s30
    %s32 = ssub.s32 %s19, %s26
    %s33 = sor.u32 %s31, %s32
    %p34 = scmp.eq.s32.totalorder %s33, 0
    %s36 = sadd.s32 %s35, 1
    %s37 = scalar_select %p34, %s35, %s36
    %p40 = pneg %p34
    %p41 = scmp.eq.s32.totalorder %s11, 1
    %p42 = por %p40, %p41
    %p43 = scmp.ne.s32.totalorder %s35, %s38
    %p44 = scmp.eq.s32.totalorder %s11, 0
    %p45 = por %p43, %p44
    %p46 = scmp.ne.s32.totalorder %s35, %s38
    %p47 = scmp.eq.s32.totalorder %s16, 1
    %p48 = por %p46, %p47
    %p49 = scmp.ne.s32.totalorder %s38, %s39
    %p50 = scmp.eq.s32.totalorder %s16, 0
    %p51 = por %p49, %p50
    %p52 = scmp.ne.s32.totalorder %s38, %s39
    %p53 = scmp.eq.s32.totalorder %s17, 1
    %p54 = por %p52, %p53
    %p56 = scmp.ne.s32.totalorder %s39, %s55
    %p57 = scmp.eq.s32.totalorder %s17, 0
    %p58 = por %p56, %p57
    %s60 = sadd.s32 %s59, 1
    %p63 = scmp.eq.s32.totalorder %s11, 1
    %p64 = scmp.ne.s32.totalorder %s59, %s61
    %p65 = scmp.eq.s32.totalorder %s11, 0
    %p66 = por %p64, %p65
    %p67 = scmp.ne.s32.totalorder %s59, %s61
    %p68 = scmp.eq.s32.totalorder %s16, 1
    %p69 = por %p67, %p68
    %p70 = scmp.ne.s32.totalorder %s61, %s62
    %p71 = scmp.eq.s32.totalorder %s16, 0
    %p72 = por %p70, %p71
    %p73 = scmp.ne.s32.totalorder %s61, %s62
    %p74 = scmp.eq.s32.totalorder %s17, 1
    %p75 = por %p73, %p74
    %p77 = scmp.ne.s32.totalorder %s62, %s76
    %p78 = scmp.eq.s32.totalorder %s17, 0
    %p79 = por %p77, %p78
    %s80 = ssub.s32 %s18, %s30
    %s81 = ssub.s32 %s19, %s26
    %s82 = sor.u32 %s80, %s81
    %p83 = scmp.eq.s32.totalorder %s82, 0
    %s85 = sadd.s32 %s84, 1
    %s86 = scalar_select %p83, %s84, %s85
    %p89 = pneg %p83
    %p90 = scmp.eq.s32.totalorder %s11, 1
    %p91 = por %p89, %p90
    %p92 = scmp.ne.s32.totalorder %s84, %s87
    %p93 = scmp.eq.s32.totalorder %s11, 0
    %p94 = por %p92, %p93
    %p95 = scmp.ne.s32.totalorder %s84, %s87
    %p96 = scmp.eq.s32.totalorder %s16, 1
    %p97 = por %p95, %p96
    %p98 = scmp.ne.s32.totalorder %s87, %s88
    %p99 = scmp.eq.s32.totalorder %s16, 0
    %p100 = por %p98, %p99
    %p101 = scmp.ne.s32.totalorder %s87, %s88
    %p102 = scmp.eq.s32.totalorder %s17, 1
    %p103 = por %p101, %p102
    %p105 = scmp.ne.s32.totalorder %s88, %s104
    %p106 = scmp.eq.s32.totalorder %s17, 0
    %p107 = por %p105, %p106
    %s108 = ssub.s32 %s18, %s30
    %s109 = ssub.s32 %s19, %s26
    %s110 = sor.u32 %s108, %s109
    %p111 = scmp.eq.s32.totalorder %s110, 0
    %s113 = sadd.s32 %s112, 1
    %s114 = scalar_select %p111, %s112, %s113
    %p117 = pneg %p111
    %p118 = scmp.eq.s32.totalorder %s11, 1
    %p119 = por %p117, %p118
    %p120 = scmp.ne.s32.totalorder %s112, %s115
    %p121 = scmp.eq.s32.totalorder %s11, 0
    %p122 = por %p120, %p121
    %p123 = scmp.ne.s32.totalorder %s112, %s115
    %p124 = scmp.eq.s32.totalorder %s16, 1
    %p125 = por %p123, %p124
    %p126 = scmp.ne.s32.totalorder %s115, %s116
    %p127 = scmp.eq.s32.totalorder %s16, 0
    %p128 = por %p126, %p127
    %p129 = scmp.ne.s32.totalorder %s115, %s116
    %p130 = scmp.eq.s32.totalorder %s17, 1
    %p131 = por %p129, %p130
    %p133 = scmp.ne.s32.totalorder %s116, %s132
    %p134 = scmp.eq.s32.totalorder %s17, 0
    %p135 = por %p133, %p134
    %s136 = ssub.s32 %s18, %s30
    %s137 = ssub.s32 %s19, %s26
    %s138 = sor.u32 %s136, %s137
    %p139 = scmp.eq.s32.totalorder %s138, 0
    %s141 = sadd.s32 %s140, 1
    %s142 = scalar_select %p139, %s140, %s141
    %p145 = pneg %p139
    %p146 = scmp.eq.s32.totalorder %s11, 1
    %p147 = por %p145, %p146
    %p148 = scmp.ne.s32.totalorder %s140, %s143
    %p149 = scmp.eq.s32.totalorder %s11, 0
    %p150 = por %p148, %p149
    %p151 = scmp.ne.s32.totalorder %s140, %s143
    %p152 = scmp.eq.s32.totalorder %s16, 1
    %p153 = por %p151, %p152
    %p154 = scmp.ne.s32.totalorder %s143, %s144
    %p155 = scmp.eq.s32.totalorder %s16, 0
    %p156 = por %p154, %p155
    %p157 = scmp.ne.s32.totalorder %s143, %s144
    %p158 = scmp.eq.s32.totalorder %s17, 1
    %p159 = por %p157, %p158
    %p161 = scmp.ne.s32.totalorder %s144, %s160
    %p162 = scmp.eq.s32.totalorder %s17, 0
    %p163 = por %p161, %p162
    %p164 = scmp.le.s32.totalorder 1, %s11
    %p165 = scmp.lt.s32.totalorder %s11, 3
    %p166 = pnand %p164, %p165
    %p167 = pneg %p166
    // Predicated region
    $region9: #{residual_block_forward.4} parent=5 // pred_check
      _
    $region10: #{residual_block_forward.4} parent=5 // pred_check_branch
      %169 = sbr.rel (%p166) target = $region12
    $region11: #{residual_block_forward.4} parent=5 // pred_region
      %s170 = ssub.s32 %s11, 1
      // Predicated region
      $region13: #{residual_block_forward.4} parent=11 // pred_check
        %p171 = pneg %p72
      $region14: #{residual_block_forward.4} parent=11 // pred_check_branch
        %173 = sbr.rel (%p171) target = $region16
      $region15: #{residual_block_forward.4} parent=11 // pred_region
        _
      $region16: #{residual_block_forward.4} parent=11 // pred_fallthru
        _
    $region12: #{residual_block_forward.4} parent=5 // pred_fallthru
      _
    %p174 = scmp.lt.s32.totalorder %s11, 2
    // Predicated region
    $region17: #{residual_block_forward.4} parent=5 // pred_check
      %p175 = pneg %p174
    $region18: #{residual_block_forward.4} parent=5 // pred_check_branch
      %177 = sbr.rel (%p175) target = $region20
    $region19: #{residual_block_forward.4} parent=5 // pred_region
      // Predicated region
      $region21: #{residual_block_forward.4} parent=19 // pred_check
        %p178 = pneg %p45
      $region22: #{residual_block_forward.4} parent=19 // pred_check_branch
        %180 = sbr.rel (%p178) target = $region24
      $region23: #{residual_block_forward.4} parent=19 // pred_region
        %p181 = scmp.lt.s32.totalorder %s18, 1
        %s182 = scalar_select %p181, %s18, 1
        %p183 = scmp.lt.s32.totalorder %s19, 0
        %s184 = scalar_select %p183, %s19, 0
        %s185 = smul.addr %s184, 54
        %s186 = smul.addr %s182, 54
        %s187 = sadd.s32 %s185, %s186
        %s188 = smul.addr %s187, 4
        %s189 = scalar_lea.vmem %s0, %s188
      $region24: #{residual_block_forward.4} parent=19 // pred_fallthru
        _
    $region20: #{residual_block_forward.4} parent=5 // pred_fallthru
      _
    %p190 = scmp.le.s32.totalorder 1, %s11
    %p191 = scmp.lt.s32.totalorder %s11, 3
    %p192 = pnand %p190, %p191
    %p193 = pneg %p192
    // Predicated region
    $region25: #{residual_block_forward.4} parent=5 // pred_check
      _
    $region26: #{residual_block_forward.4} parent=5 // pred_check_branch
      %195 = sbr.rel (%p192) target = $region28
    $region27: #{residual_block_forward.4} parent=5 // pred_region
      %s196 = ssub.s32 %s11, 1
      %p197 = scmp.lt.s32.totalorder %s20, 1
      %s198 = scalar_select %p197, %s20, 1
      %p199 = scmp.lt.s32.totalorder %s21, 0
      %s200 = scalar_select %p199, %s21, 0
      %s201 = smul.addr %s200, 54
      %s202 = smul.addr %s198, 54
      %s203 = sadd.s32 %s201, %s202
      %s204 = smul.addr %s203, 4
      %s205 = scalar_lea.vmem %s0, %s204
      %p206 = pneg %p51
      %p207 = pneg %p48
      %p208 = pneg %p72
      %p209 = pneg %p69
      %p210 = pneg %p100
      %p211 = pneg %p97
      %s212 = smul.u32 32, %s21
      %p213 = scmp.lt.s32.totalorder %s20, 1
      %s214 = scalar_select %p213, %s20, 1
      %p215 = scmp.lt.s32.totalorder %s212, 31
      %s216 = scalar_select %p215, %s212, 31
      %s217 = smul.addr %s214, 32
      %s218 = sadd.s32 %s216, %s217
      %s219 = smul.addr %s218, 4
      %s220 = scalar_lea.vmem %s2, %s219
      %p221 = pneg %p128
      %p222 = pneg %p125
      %p223 = scmp.lt.s32.totalorder %s20, 1
      %s224 = scalar_select %p223, %s20, 1
      %p225 = scmp.lt.s32.totalorder %s21, 0
      %s226 = scalar_select %p225, %s21, 0
      %s227 = sadd.s32 %s226, %s224
      %s228 = smul.addr %s227, 8
      %s229 = scalar_lea.vmem %s3, %s228
      %p230 = pneg %p156
      %p231 = pneg %p153
      %p232 = scmp.lt.s32.totalorder %s20, 1
      %s233 = scalar_select %p232, %s20, 1
      %p234 = scmp.lt.s32.totalorder %s21, 0
      %s235 = scalar_select %p234, %s21, 0
      %s236 = sadd.s32 %s235, %s233
      %s237 = smul.addr %s236, 8
      %s238 = scalar_lea.vmem %s4, %s237
      %p239 = scmp.lt.s32.totalorder %s20, 1
      %s240 = scalar_select %p239, %s20, 1
      %p241 = scmp.lt.s32.totalorder %s21, 0
      %s242 = scalar_select %p241, %s21, 0
      %s243 = smul.addr %s242, 54
      %s244 = smul.addr %s240, 54
      %s245 = sadd.s32 %s243, %s244
      %s246 = smul.addr %s245, 4
      %s247 = scalar_lea.vmem %s0, %s246
      %s248 = smul.u32 32, %s21
      %p249 = scmp.lt.s32.totalorder %s20, 1
      %s250 = scalar_select %p249, %s20, 1
      %p251 = scmp.lt.s32.totalorder %s248, 31
      %s252 = scalar_select %p251, %s248, 31
      %s253 = smul.addr %s250, 32
      %s254 = sadd.s32 %s252, %s253
      %s255 = smul.addr %s254, 4
      %s256 = scalar_lea.vmem %s2, %s255
      %s257 = smul.u32 32, %s21
      %p258 = scmp.lt.s32.totalorder %s20, 1
      %s259 = scalar_select %p258, %s20, 1
      %p260 = scmp.lt.s32.totalorder %s21, 0
      %s261 = scalar_select %p260, %s21, 0
      %s262 = sadd.s32 %s261, %s259
      %s263 = smul.addr %s262, 8
      %s264 = scalar_lea.vmem %s3, %s263
      %p265 = scmp.lt.s32.totalorder %s20, 1
      %s266 = scalar_select %p265, %s20, 1
      %p267 = scmp.lt.s32.totalorder %s21, 0
      %s268 = scalar_select %p267, %s21, 0
      %s269 = sadd.s32 %s268, %s266
      %s270 = smul.addr %s269, 8
      %s271 = scalar_lea.vmem %s4, %s270
      %v273 = vld [vmem:[%s247] sm:$0xf]
      %v274 = vld [vmem:[%s247 + $0x4] sm:$0xf]
      %v275 = vld [vmem:[%s247 + $0xc] sm:$0xf]
      %v276 = vld [vmem:[%s247 + $0x10] sm:$0xf]
      %v277 = vld [vmem:[%s247 + $0x18] sm:$0xf]
      %v278 = vld [vmem:[%s247 + $0x1c] sm:$0xf]
      %v279 = vld [vmem:[%s247 + $0x24] sm:$0xf]
      %v280 = vld [vmem:[%s247 + $0x28] sm:$0xf]
      %v281 = vld [vmem:[%s247 + $0x30] sm:$0xf]
      %v282 = vld [vmem:[%s247 + $0x34] sm:$0xf]
      %v283 = vld [vmem:[%s247 + $0x3c] sm:$0xf]
      %v284 = vld [vmem:[%s247 + $0x40] sm:$0xf]
      %v285 = vld [vmem:[%s247 + $0x48] sm:$0xf]
      %v286 = vld [vmem:[%s247 + $0x4c] sm:$0xf]
      %v287 = vld [vmem:[%s247 + $0x54] sm:$0xf]
      %v288 = vld [vmem:[%s247 + $0x58] sm:$0xf]
      %v289 = vld [vmem:[%s247 + $0x60] sm:$0xf]
      %v290 = vld [vmem:[%s247 + $0x64] sm:$0xf]
      %v291 = vld [vmem:[%s247 + $0x6c] sm:$0xf]
      %v292 = vld [vmem:[%s247 + $0x70] sm:$0xf]
      %v293 = vld [vmem:[%s247 + $0x78] sm:$0xf]
      %v294 = vld [vmem:[%s247 + $0x7c] sm:$0xf]
      %v295 = vld [vmem:[%s247 + $0x84] sm:$0xf]
      %v296 = vld [vmem:[%s247 + $0x88] sm:$0xf]
      %v297 = vld [vmem:[%s247 + $0x90] sm:$0xf]
      %v298 = vld [vmem:[%s247 + $0x94] sm:$0xf]
      %v299 = vld [vmem:[%s247 + $0x9c] sm:$0xf]
      %v300 = vld [vmem:[%s247 + $0xa0] sm:$0xf]
      %v301 = vld [vmem:[%s247 + $0xa8] sm:$0xf]
      %v302 = vld [vmem:[%s247 + $0xac] sm:$0xf]
      %v303 = vld [vmem:[%s247 + $0xb4] sm:$0xf]
      %v304 = vld [vmem:[%s247 + $0xb8] sm:$0xf]
      %v305 = vld [vmem:[%s247 + $0x8] sm:$0x1]
      %v306 = vld [vmem:[%s247 + $0x14] sm:$0x1]
      %v307 = vld [vmem:[%s247 + $0x20] sm:$0x1]
      %v308 = vld [vmem:[%s247 + $0x2c] sm:$0x1]
      %v309 = vld [vmem:[%s247 + $0x38] sm:$0x1]
      %v310 = vld [vmem:[%s247 + $0x44] sm:$0x1]
      %v311 = vld [vmem:[%s247 + $0x50] sm:$0x1]
      %v312 = vld [vmem:[%s247 + $0x5c] sm:$0x1]
      %v313 = vld [vmem:[%s247 + $0x68] sm:$0x1]
      %v314 = vld [vmem:[%s247 + $0x74] sm:$0x1]
      %v315 = vld [vmem:[%s247 + $0x80] sm:$0x1]
      %v316 = vld [vmem:[%s247 + $0x8c] sm:$0x1]
      %v317 = vld [vmem:[%s247 + $0x98] sm:$0x1]
      %v318 = vld [vmem:[%s247 + $0xa4] sm:$0x1]
      %v319 = vld [vmem:[%s247 + $0xb0] sm:$0x1]
      %v320 = vld [vmem:[%s247 + $0xbc] sm:$0x1]
      %v321 = vld [vmem:[%s247] sm:$0xe]
      %v322 = vld [vmem:[%s247 + $0xc] sm:$0xe]
      %v323 = vld [vmem:[%s247 + $0x18] sm:$0xe]
      %v324 = vld [vmem:[%s247 + $0x24] sm:$0xe]
      %v325 = vld [vmem:[%s247 + $0x30] sm:$0xe]
      %v326 = vld [vmem:[%s247 + $0x3c] sm:$0xe]
      %v327 = vld [vmem:[%s247 + $0x48] sm:$0xe]
      %v328 = vld [vmem:[%s247 + $0x54] sm:$0xe]
      %v329 = vld [vmem:[%s247 + $0x60] sm:$0xe]
      %v330 = vld [vmem:[%s247 + $0x6c] sm:$0xe]
      %v331 = vld [vmem:[%s247 + $0x78] sm:$0xe]
      %v332 = vld [vmem:[%s247 + $0x84] sm:$0xe]
      %v333 = vld [vmem:[%s247 + $0x90] sm:$0xe]
      %v334 = vld [vmem:[%s247 + $0x9c] sm:$0xe]
      %v335 = vld [vmem:[%s247 + $0xa8] sm:$0xe]
      %v336 = vld [vmem:[%s247 + $0xb4] sm:$0xe]
      %v369 = vunpack.c.l.b16 %v273
      %v370 = vunpack.c.l.b16 %v274
      %v371 = vunpack.c.l.b16 %v275
      %v372 = vunpack.c.l.b16 %v276
      %v373 = vunpack.c.l.b16 %v277
      %v374 = vunpack.c.l.b16 %v278
      %v375 = vunpack.c.l.b16 %v279
      %v376 = vunpack.c.l.b16 %v280
      %v377 = vunpack.c.l.b16 %v281
      %v378 = vunpack.c.l.b16 %v282
      %v379 = vunpack.c.l.b16 %v283
      %v380 = vunpack.c.l.b16 %v284
      %v381 = vunpack.c.l.b16 %v285
      %v382 = vunpack.c.l.b16 %v286
      %v383 = vunpack.c.l.b16 %v287
      %v384 = vunpack.c.l.b16 %v288
      %v385 = vunpack.c.l.b16 %v289
      %v386 = vunpack.c.l.b16 %v290
      %v387 = vunpack.c.l.b16 %v291
      %v388 = vunpack.c.l.b16 %v292
      %v389 = vunpack.c.l.b16 %v293
      %v390 = vunpack.c.l.b16 %v294
      %v391 = vunpack.c.l.b16 %v295
      %v392 = vunpack.c.l.b16 %v296
      %v393 = vunpack.c.l.b16 %v297
      %v394 = vunpack.c.l.b16 %v298
      %v395 = vunpack.c.l.b16 %v299
      %v396 = vunpack.c.l.b16 %v300
      %v397 = vunpack.c.l.b16 %v301
      %v398 = vunpack.c.l.b16 %v302
      %v399 = vunpack.c.l.b16 %v303
      %v400 = vunpack.c.l.b16 %v304
      %v401 = vpack.c.b16 %v370, %v369
      %v402 = vpack.c.b16 %v372, %v371
      %v403 = vpack.c.b16 %v374, %v373
      %v404 = vpack.c.b16 %v376, %v375
      %v405 = vpack.c.b16 %v378, %v377
      %v406 = vpack.c.b16 %v380, %v379
      %v407 = vpack.c.b16 %v382, %v381
      %v408 = vpack.c.b16 %v384, %v383
      %v409 = vpack.c.b16 %v386, %v385
      %v410 = vpack.c.b16 %v388, %v387
      %v411 = vpack.c.b16 %v390, %v389
      %v412 = vpack.c.b16 %v392, %v391
      %v413 = vpack.c.b16 %v394, %v393
      %v414 = vpack.c.b16 %v396, %v395
      %v415 = vpack.c.b16 %v398, %v397
      %v416 = vpack.c.b16 %v400, %v399
      %v449 = vunpack.c.l.b16 %v305
      %v450 = vunpack.c.l.b16 %v306
      %v451 = vunpack.c.l.b16 %v307
      %v452 = vunpack.c.l.b16 %v308
      %v453 = vunpack.c.l.b16 %v309
      %v454 = vunpack.c.l.b16 %v310
      %v455 = vunpack.c.l.b16 %v311
      %v456 = vunpack.c.l.b16 %v312
      %v457 = vunpack.c.l.b16 %v313
      %v458 = vunpack.c.l.b16 %v314
      %v459 = vunpack.c.l.b16 %v315
      %v460 = vunpack.c.l.b16 %v316
      %v461 = vunpack.c.l.b16 %v317
      %v462 = vunpack.c.l.b16 %v318
      %v463 = vunpack.c.l.b16 %v319
      %v464 = vunpack.c.l.b16 %v320
      %v465 = vpack.c.b16 %v449, %v449
      %v466 = vpack.c.b16 %v450, %v450
      %v467 = vpack.c.b16 %v451, %v451
      %v468 = vpack.c.b16 %v452, %v452
      %v469 = vpack.c.b16 %v453, %v453
      %v470 = vpack.c.b16 %v454, %v454
      %v471 = vpack.c.b16 %v455, %v455
      %v472 = vpack.c.b16 %v456, %v456
      %v473 = vpack.c.b16 %v457, %v457
      %v474 = vpack.c.b16 %v458, %v458
      %v475 = vpack.c.b16 %v459, %v459
      %v476 = vpack.c.b16 %v460, %v460
      %v477 = vpack.c.b16 %v461, %v461
      %v478 = vpack.c.b16 %v462, %v462
      %v479 = vpack.c.b16 %v463, %v463
      %v480 = vpack.c.b16 %v464, %v464
      %vm481 = vsmask.f32 7424
      %v483 = vshrl.u32 %v401, 16
      %v485 = vshll.u32 %v401, 16
      %v487 = vrot.slane %v485, 1
      %v488 = vor.u32 %v483, %v487
      %v490 = vshll.u32 %v465, 16
      %v492 = vrot.slane %v490, 1
      %v493 = vsel %vm481, %v488, %v492
      %v495 = vshrl.u32 %v402, 16
      %v497 = vshll.u32 %v402, 16
      %v499 = vrot.slane %v497, 1
      %v500 = vor.u32 %v495, %v499
      %v502 = vshll.u32 %v466, 16
      %v504 = vrot.slane %v502, 1
      %v505 = vsel %vm481, %v500, %v504
      %v507 = vshrl.u32 %v403, 16
      %v509 = vshll.u32 %v403, 16
      %v511 = vrot.slane %v509, 1
      %v512 = vor.u32 %v507, %v511
      %v514 = vshll.u32 %v467, 16
      %v516 = vrot.slane %v514, 1
      %v517 = vsel %vm481, %v512, %v516
      %v519 = vshrl.u32 %v404, 16
      %v521 = vshll.u32 %v404, 16
      %v523 = vrot.slane %v521, 1
      %v524 = vor.u32 %v519, %v523
      %v526 = vshll.u32 %v468, 16
      %v528 = vrot.slane %v526, 1
      %v529 = vsel %vm481, %v524, %v528
      %v531 = vshrl.u32 %v405, 16
      %v533 = vshll.u32 %v405, 16
      %v535 = vrot.slane %v533, 1
      %v536 = vor.u32 %v531, %v535
      %v538 = vshll.u32 %v469, 16
      %v540 = vrot.slane %v538, 1
      %v541 = vsel %vm481, %v536, %v540
      %v543 = vshrl.u32 %v406, 16
      %v545 = vshll.u32 %v406, 16
      %v547 = vrot.slane %v545, 1
      %v548 = vor.u32 %v543, %v547
      %v550 = vshll.u32 %v470, 16
      %v552 = vrot.slane %v550, 1
      %v553 = vsel %vm481, %v548, %v552
      %v555 = vshrl.u32 %v407, 16
      %v557 = vshll.u32 %v407, 16
      %v559 = vrot.slane %v557, 1
      %v560 = vor.u32 %v555, %v559
      %v562 = vshll.u32 %v471, 16
      %v564 = vrot.slane %v562, 1
      %v565 = vsel %vm481, %v560, %v564
      %v567 = vshrl.u32 %v408, 16
      %v569 = vshll.u32 %v408, 16
      %v571 = vrot.slane %v569, 1
      %v572 = vor.u32 %v567, %v571
      %v574 = vshll.u32 %v472, 16
      %v576 = vrot.slane %v574, 1
      %v577 = vsel %vm481, %v572, %v576
      %v579 = vshrl.u32 %v409, 16
      %v581 = vshll.u32 %v409, 16
      %v583 = vrot.slane %v581, 1
      %v584 = vor.u32 %v579, %v583
      %v586 = vshll.u32 %v473, 16
      %v588 = vrot.slane %v586, 1
      %v589 = vsel %vm481, %v584, %v588
      %v591 = vshrl.u32 %v410, 16
      %v593 = vshll.u32 %v410, 16
      %v595 = vrot.slane %v593, 1
      %v596 = vor.u32 %v591, %v595
      %v598 = vshll.u32 %v474, 16
      %v600 = vrot.slane %v598, 1
      %v601 = vsel %vm481, %v596, %v600
      %v603 = vshrl.u32 %v411, 16
      %v605 = vshll.u32 %v411, 16
      %v607 = vrot.slane %v605, 1
      %v608 = vor.u32 %v603, %v607
      %v610 = vshll.u32 %v475, 16
      %v612 = vrot.slane %v610, 1
      %v613 = vsel %vm481, %v608, %v612
      %v615 = vshrl.u32 %v412, 16
      %v617 = vshll.u32 %v412, 16
      %v619 = vrot.slane %v617, 1
      %v620 = vor.u32 %v615, %v619
      %v622 = vshll.u32 %v476, 16
      %v624 = vrot.slane %v622, 1
      %v625 = vsel %vm481, %v620, %v624
      %v627 = vshrl.u32 %v413, 16
      %v629 = vshll.u32 %v413, 16
      %v631 = vrot.slane %v629, 1
      %v632 = vor.u32 %v627, %v631
      %v634 = vshll.u32 %v477, 16
      %v636 = vrot.slane %v634, 1
      %v637 = vsel %vm481, %v632, %v636
      %v639 = vshrl.u32 %v414, 16
      %v641 = vshll.u32 %v414, 16
      %v643 = vrot.slane %v641, 1
      %v644 = vor.u32 %v639, %v643
      %v646 = vshll.u32 %v478, 16
      %v648 = vrot.slane %v646, 1
      %v649 = vsel %vm481, %v644, %v648
      %v651 = vshrl.u32 %v415, 16
      %v653 = vshll.u32 %v415, 16
      %v655 = vrot.slane %v653, 1
      %v656 = vor.u32 %v651, %v655
      %v658 = vshll.u32 %v479, 16
      %v660 = vrot.slane %v658, 1
      %v661 = vsel %vm481, %v656, %v660
      %v663 = vshrl.u32 %v416, 16
      %v665 = vshll.u32 %v416, 16
      %v667 = vrot.slane %v665, 1
      %v668 = vor.u32 %v663, %v667
      %v670 = vshll.u32 %v480, 16
      %v672 = vrot.slane %v670, 1
      %v673 = vsel %vm481, %v668, %v672
      %v706 = vunpack.c.l.b16 %v321
      %v707 = vunpack.c.l.b16 %v322
      %v708 = vunpack.c.l.b16 %v323
      %v709 = vunpack.c.l.b16 %v324
      %v710 = vunpack.c.l.b16 %v325
      %v711 = vunpack.c.l.b16 %v326
      %v712 = vunpack.c.l.b16 %v327
      %v713 = vunpack.c.l.b16 %v328
      %v714 = vunpack.c.l.b16 %v329
      %v715 = vunpack.c.l.b16 %v330
      %v716 = vunpack.c.l.b16 %v331
      %v717 = vunpack.c.l.b16 %v332
      %v718 = vunpack.c.l.b16 %v333
      %v719 = vunpack.c.l.b16 %v334
      %v720 = vunpack.c.l.b16 %v335
      %v721 = vunpack.c.l.b16 %v336
      %v722 = vpack.c.b16 %v370, %v706
      %v723 = vpack.c.b16 %v372, %v707
      %v724 = vpack.c.b16 %v374, %v708
      %v725 = vpack.c.b16 %v376, %v709
      %v726 = vpack.c.b16 %v378, %v710
      %v727 = vpack.c.b16 %v380, %v711
      %v728 = vpack.c.b16 %v382, %v712
      %v729 = vpack.c.b16 %v384, %v713
      %v730 = vpack.c.b16 %v386, %v714
      %v731 = vpack.c.b16 %v388, %v715
      %v732 = vpack.c.b16 %v390, %v716
      %v733 = vpack.c.b16 %v392, %v717
      %v734 = vpack.c.b16 %v394, %v718
      %v735 = vpack.c.b16 %v396, %v719
      %v736 = vpack.c.b16 %v398, %v720
      %v737 = vpack.c.b16 %v400, %v721
      %vm738 = vcmask 1046528
      %v739 = vrot.slane %v722, 1
      %v740 = vrot.slane %v465, 1
      %v741 = vsel %vm738, %v739, %v740
      %v742 = vrot.slane %v723, 1
      %v743 = vrot.slane %v466, 1
      %v744 = vsel %vm738, %v742, %v743
      %v745 = vrot.slane %v724, 1
      %v746 = vrot.slane %v467, 1
      %v747 = vsel %vm738, %v745, %v746
      %v748 = vrot.slane %v725, 1
      %v749 = vrot.slane %v468, 1
      %v750 = vsel %vm738, %v748, %v749
      %v751 = vrot.slane %v726, 1
      %v752 = vrot.slane %v469, 1
      %v753 = vsel %vm738, %v751, %v752
      %v754 = vrot.slane %v727, 1
      %v755 = vrot.slane %v470, 1
      %v756 = vsel %vm738, %v754, %v755
      %v757 = vrot.slane %v728, 1
      %v758 = vrot.slane %v471, 1
      %v759 = vsel %vm738, %v757, %v758
      %v760 = vrot.slane %v729, 1
      %v761 = vrot.slane %v472, 1
      %v762 = vsel %vm738, %v760, %v761
      %v763 = vrot.slane %v730, 1
      %v764 = vrot.slane %v473, 1
      %v765 = vsel %vm738, %v763, %v764
      %v766 = vrot.slane %v731, 1
      %v767 = vrot.slane %v474, 1
      %v768 = vsel %vm738, %v766, %v767
      %v769 = vrot.slane %v732, 1
      %v770 = vrot.slane %v475, 1
      %v771 = vsel %vm738, %v769, %v770
      %v772 = vrot.slane %v733, 1
      %v773 = vrot.slane %v476, 1
      %v774 = vsel %vm738, %v772, %v773
      %v775 = vrot.slane %v734, 1
      %v776 = vrot.slane %v477, 1
      %v777 = vsel %vm738, %v775, %v776
      %v778 = vrot.slane %v735, 1
      %v779 = vrot.slane %v478, 1
      %v780 = vsel %vm738, %v778, %v779
      %v781 = vrot.slane %v736, 1
      %v782 = vrot.slane %v479, 1
      %v783 = vsel %vm738, %v781, %v782
      %v784 = vrot.slane %v737, 1
      %v785 = vrot.slane %v480, 1
      %v786 = vsel %vm738, %v784, %v785
      %v803 = vld [vmem:[%s1] sm:$0xf]
      %v804 = vld [vmem:[%s1 + $0x4] sm:$0xf]
      %v805 = vld [vmem:[%s1 + $0x8] sm:$0xf]
      %v806 = vld [vmem:[%s1 + $0xc] sm:$0xf]
      %v807 = vld [vmem:[%s1 + $0x10] sm:$0xf]
      %v808 = vld [vmem:[%s1 + $0x14] sm:$0xf]
      %v809 = vld [vmem:[%s1 + $0x18] sm:$0xf]
      %v810 = vld [vmem:[%s1 + $0x1c] sm:$0xf]
      %v811 = vld [vmem:[%s1 + $0x20] sm:$0xf]
      %v812 = vld [vmem:[%s1 + $0x24] sm:$0xf]
      %v813 = vld [vmem:[%s1 + $0x28] sm:$0xf]
      %v814 = vld [vmem:[%s1 + $0x2c] sm:$0xf]
      %v815 = vld [vmem:[%s1 + $0x30] sm:$0xf]
      %v816 = vld [vmem:[%s1 + $0x34] sm:$0xf]
      %v817 = vld [vmem:[%s1 + $0x38] sm:$0xf]
      %v818 = vld [vmem:[%s1 + $0x3c] sm:$0xf]
      %v819 = vld [vmem:[%s1 + $0x40] sm:$0xf]
      %v820 = vld [vmem:[%s1 + $0x44] sm:$0xf]
      %v821 = vld [vmem:[%s1 + $0x48] sm:$0xf]
      %v822 = vld [vmem:[%s1 + $0x4c] sm:$0xf]
      %v823 = vld [vmem:[%s1 + $0x50] sm:$0xf]
      %v824 = vld [vmem:[%s1 + $0x54] sm:$0xf]
      %v825 = vld [vmem:[%s1 + $0x58] sm:$0xf]
      %v826 = vld [vmem:[%s1 + $0x5c] sm:$0xf]
      %v827 = vld [vmem:[%s1 + $0x60] sm:$0xf]
      %v828 = vld [vmem:[%s1 + $0x64] sm:$0xf]
      %v829 = vld [vmem:[%s1 + $0x68] sm:$0xf]
      %v830 = vld [vmem:[%s1 + $0x6c] sm:$0xf]
      %v831 = vld [vmem:[%s1 + $0x70] sm:$0xf]
      %v832 = vld [vmem:[%s1 + $0x74] sm:$0xf]
      %v833 = vld [vmem:[%s1 + $0x78] sm:$0xf]
      %v834 = vld [vmem:[%s1 + $0x7c] sm:$0xf]
      %v835 = vld [vmem:[%s1 + $0x80] sm:$0xf]
      %v836 = vld [vmem:[%s1 + $0x84] sm:$0xf]
      %v837 = vld [vmem:[%s1 + $0x88] sm:$0xf]
      %v838 = vld [vmem:[%s1 + $0x8c] sm:$0xf]
      %v839 = vld [vmem:[%s1 + $0x90] sm:$0xf]
      %v840 = vld [vmem:[%s1 + $0x94] sm:$0xf]
      %v841 = vld [vmem:[%s1 + $0x98] sm:$0xf]
      %v842 = vld [vmem:[%s1 + $0x9c] sm:$0xf]
      %v843 = vld [vmem:[%s1 + $0xa0] sm:$0xf]
      %v844 = vld [vmem:[%s1 + $0xa4] sm:$0xf]
      %v845 = vld [vmem:[%s1 + $0xa8] sm:$0xf]
      %v846 = vld [vmem:[%s1 + $0xac] sm:$0xf]
      %v847 = vld [vmem:[%s1 + $0xb0] sm:$0xf]
      %v848 = vld [vmem:[%s1 + $0xb4] sm:$0xf]
      %v849 = vld [vmem:[%s1 + $0xb8] sm:$0xf]
      %v850 = vld [vmem:[%s1 + $0xbc] sm:$0xf]
      %s851 = scalar_lea.vmem %s247, 12
      %v852 = vld [vmem:[%s851] sm:$0xf]
      %v853 = vld [vmem:[%s851 + $0x4] sm:$0xf]
      %v854 = vld [vmem:[%s851 + $0xc] sm:$0xf]
      %v855 = vld [vmem:[%s851 + $0x10] sm:$0xf]
      %v856 = vld [vmem:[%s851 + $0x18] sm:$0xf]
      %v857 = vld [vmem:[%s851 + $0x1c] sm:$0xf]
      %v858 = vld [vmem:[%s851 + $0x24] sm:$0xf]
      %v859 = vld [vmem:[%s851 + $0x28] sm:$0xf]
      %v860 = vld [vmem:[%s851 + $0x30] sm:$0xf]
      %v861 = vld [vmem:[%s851 + $0x34] sm:$0xf]
      %v862 = vld [vmem:[%s851 + $0x3c] sm:$0xf]
      %v863 = vld [vmem:[%s851 + $0x40] sm:$0xf]
      %v864 = vld [vmem:[%s851 + $0x48] sm:$0xf]
      %v865 = vld [vmem:[%s851 + $0x4c] sm:$0xf]
      %v866 = vld [vmem:[%s851 + $0x54] sm:$0xf]
      %v867 = vld [vmem:[%s851 + $0x58] sm:$0xf]
      %v868 = vld [vmem:[%s851 + $0x60] sm:$0xf]
      %v869 = vld [vmem:[%s851 + $0x64] sm:$0xf]
      %v870 = vld [vmem:[%s851 + $0x6c] sm:$0xf]
      %v871 = vld [vmem:[%s851 + $0x70] sm:$0xf]
      %v872 = vld [vmem:[%s851 + $0x78] sm:$0xf]
      %v873 = vld [vmem:[%s851 + $0x7c] sm:$0xf]
      %v874 = vld [vmem:[%s851 + $0x84] sm:$0xf]
      %v875 = vld [vmem:[%s851 + $0x88] sm:$0xf]
      %v876 = vld [vmem:[%s851 + $0x90] sm:$0xf]
      %v877 = vld [vmem:[%s851 + $0x94] sm:$0xf]
      %v878 = vld [vmem:[%s851 + $0x9c] sm:$0xf]
      %v879 = vld [vmem:[%s851 + $0xa0] sm:$0xf]
      %v880 = vld [vmem:[%s851 + $0xa8] sm:$0xf]
      %v881 = vld [vmem:[%s851 + $0xac] sm:$0xf]
      %v882 = vld [vmem:[%s851 + $0xb4] sm:$0xf]
      %v883 = vld [vmem:[%s851 + $0xb8] sm:$0xf]
      %v884 = vld [vmem:[%s851 + $0x8] sm:$0x1]
      %v885 = vld [vmem:[%s851 + $0x14] sm:$0x1]
      %v886 = vld [vmem:[%s851 + $0x20] sm:$0x1]
      %v887 = vld [vmem:[%s851 + $0x2c] sm:$0x1]
      %v888 = vld [vmem:[%s851 + $0x38] sm:$0x1]
      %v889 = vld [vmem:[%s851 + $0x44] sm:$0x1]
      %v890 = vld [vmem:[%s851 + $0x50] sm:$0x1]
      %v891 = vld [vmem:[%s851 + $0x5c] sm:$0x1]
      %v892 = vld [vmem:[%s851 + $0x68] sm:$0x1]
      %v893 = vld [vmem:[%s851 + $0x74] sm:$0x1]
      %v894 = vld [vmem:[%s851 + $0x80] sm:$0x1]
      %v895 = vld [vmem:[%s851 + $0x8c] sm:$0x1]
      %v896 = vld [vmem:[%s851 + $0x98] sm:$0x1]
      %v897 = vld [vmem:[%s851 + $0xa4] sm:$0x1]
      %v898 = vld [vmem:[%s851 + $0xb0] sm:$0x1]
      %v899 = vld [vmem:[%s851 + $0xbc] sm:$0x1]
      %v900 = vld [vmem:[%s851] sm:$0xe]
      %v901 = vld [vmem:[%s851 + $0xc] sm:$0xe]
      %v902 = vld [vmem:[%s851 + $0x18] sm:$0xe]
      %v903 = vld [vmem:[%s851 + $0x24] sm:$0xe]
      %v904 = vld [vmem:[%s851 + $0x30] sm:$0xe]
      %v905 = vld [vmem:[%s851 + $0x3c] sm:$0xe]
      %v906 = vld [vmem:[%s851 + $0x48] sm:$0xe]
      %v907 = vld [vmem:[%s851 + $0x54] sm:$0xe]
      %v908 = vld [vmem:[%s851 + $0x60] sm:$0xe]
      %v909 = vld [vmem:[%s851 + $0x6c] sm:$0xe]
      %v910 = vld [vmem:[%s851 + $0x78] sm:$0xe]
      %v911 = vld [vmem:[%s851 + $0x84] sm:$0xe]
      %v912 = vld [vmem:[%s851 + $0x90] sm:$0xe]
      %v913 = vld [vmem:[%s851 + $0x9c] sm:$0xe]
      %v914 = vld [vmem:[%s851 + $0xa8] sm:$0xe]
      %v915 = vld [vmem:[%s851 + $0xb4] sm:$0xe]
      %v948 = vunpack.c.l.b16 %v852
      %v949 = vunpack.c.l.b16 %v853
      %v950 = vunpack.c.l.b16 %v854
      %v951 = vunpack.c.l.b16 %v855
      %v952 = vunpack.c.l.b16 %v856
      %v953 = vunpack.c.l.b16 %v857
      %v954 = vunpack.c.l.b16 %v858
      %v955 = vunpack.c.l.b16 %v859
      %v956 = vunpack.c.l.b16 %v860
      %v957 = vunpack.c.l.b16 %v861
      %v958 = vunpack.c.l.b16 %v862
      %v959 = vunpack.c.l.b16 %v863
      %v960 = vunpack.c.l.b16 %v864
      %v961 = vunpack.c.l.b16 %v865
      %v962 = vunpack.c.l.b16 %v866
      %v963 = vunpack.c.l.b16 %v867
      %v964 = vunpack.c.l.b16 %v868
      %v965 = vunpack.c.l.b16 %v869
      %v966 = vunpack.c.l.b16 %v870
      %v967 = vunpack.c.l.b16 %v871
      %v968 = vunpack.c.l.b16 %v872
      %v969 = vunpack.c.l.b16 %v873
      %v970 = vunpack.c.l.b16 %v874
      %v971 = vunpack.c.l.b16 %v875
      %v972 = vunpack.c.l.b16 %v876
      %v973 = vunpack.c.l.b16 %v877
      %v974 = vunpack.c.l.b16 %v878
      %v975 = vunpack.c.l.b16 %v879
      %v976 = vunpack.c.l.b16 %v880
      %v977 = vunpack.c.l.b16 %v881
      %v978 = vunpack.c.l.b16 %v882
      %v979 = vunpack.c.l.b16 %v883
      %v980 = vpack.c.b16 %v949, %v948
      %v981 = vpack.c.b16 %v951, %v950
      %v982 = vpack.c.b16 %v953, %v952
      %v983 = vpack.c.b16 %v955, %v954
      %v984 = vpack.c.b16 %v957, %v956
      %v985 = vpack.c.b16 %v959, %v958
      %v986 = vpack.c.b16 %v961, %v960
      %v987 = vpack.c.b16 %v963, %v962
      %v988 = vpack.c.b16 %v965, %v964
      %v989 = vpack.c.b16 %v967, %v966
      %v990 = vpack.c.b16 %v969, %v968
      %v991 = vpack.c.b16 %v971, %v970
      %v992 = vpack.c.b16 %v973, %v972
      %v993 = vpack.c.b16 %v975, %v974
      %v994 = vpack.c.b16 %v977, %v976
      %v995 = vpack.c.b16 %v979, %v978
      %v1028 = vunpack.c.l.b16 %v884
      %v1029 = vunpack.c.l.b16 %v885
      %v1030 = vunpack.c.l.b16 %v886
      %v1031 = vunpack.c.l.b16 %v887
      %v1032 = vunpack.c.l.b16 %v888
      %v1033 = vunpack.c.l.b16 %v889
      %v1034 = vunpack.c.l.b16 %v890
      %v1035 = vunpack.c.l.b16 %v891
      %v1036 = vunpack.c.l.b16 %v892
      %v1037 = vunpack.c.l.b16 %v893
      %v1038 = vunpack.c.l.b16 %v894
      %v1039 = vunpack.c.l.b16 %v895
      %v1040 = vunpack.c.l.b16 %v896
      %v1041 = vunpack.c.l.b16 %v897
      %v1042 = vunpack.c.l.b16 %v898
      %v1043 = vunpack.c.l.b16 %v899
      %v1044 = vpack.c.b16 %v1028, %v1028
      %v1045 = vpack.c.b16 %v1029, %v1029
      %v1046 = vpack.c.b16 %v1030, %v1030
      %v1047 = vpack.c.b16 %v1031, %v1031
      %v1048 = vpack.c.b16 %v1032, %v1032
      %v1049 = vpack.c.b16 %v1033, %v1033
      %v1050 = vpack.c.b16 %v1034, %v1034
      %v1051 = vpack.c.b16 %v1035, %v1035
      %v1052 = vpack.c.b16 %v1036, %v1036
      %v1053 = vpack.c.b16 %v1037, %v1037
      %v1054 = vpack.c.b16 %v1038, %v1038
      %v1055 = vpack.c.b16 %v1039, %v1039
      %v1056 = vpack.c.b16 %v1040, %v1040
      %v1057 = vpack.c.b16 %v1041, %v1041
      %v1058 = vpack.c.b16 %v1042, %v1042
      %v1059 = vpack.c.b16 %v1043, %v1043
      %v1061 = vshrl.u32 %v980, 16
      %v1063 = vshll.u32 %v980, 16
      %v1065 = vrot.slane %v1063, 1
      %v1066 = vor.u32 %v1061, %v1065
      %v1068 = vshll.u32 %v1044, 16
      %v1070 = vrot.slane %v1068, 1
      %v1071 = vsel %vm481, %v1066, %v1070
      %v1073 = vshrl.u32 %v981, 16
      %v1075 = vshll.u32 %v981, 16
      %v1077 = vrot.slane %v1075, 1
      %v1078 = vor.u32 %v1073, %v1077
      %v1080 = vshll.u32 %v1045, 16
      %v1082 = vrot.slane %v1080, 1
      %v1083 = vsel %vm481, %v1078, %v1082
      %v1085 = vshrl.u32 %v982, 16
      %v1087 = vshll.u32 %v982, 16
      %v1089 = vrot.slane %v1087, 1
      %v1090 = vor.u32 %v1085, %v1089
      %v1092 = vshll.u32 %v1046, 16
      %v1094 = vrot.slane %v1092, 1
      %v1095 = vsel %vm481, %v1090, %v1094
      %v1097 = vshrl.u32 %v983, 16
      %v1099 = vshll.u32 %v983, 16
      %v1101 = vrot.slane %v1099, 1
      %v1102 = vor.u32 %v1097, %v1101
      %v1104 = vshll.u32 %v1047, 16
      %v1106 = vrot.slane %v1104, 1
      %v1107 = vsel %vm481, %v1102, %v1106
      %v1109 = vshrl.u32 %v984, 16
      %v1111 = vshll.u32 %v984, 16
      %v1113 = vrot.slane %v1111, 1
      %v1114 = vor.u32 %v1109, %v1113
      %v1116 = vshll.u32 %v1048, 16
      %v1118 = vrot.slane %v1116, 1
      %v1119 = vsel %vm481, %v1114, %v1118
      %v1121 = vshrl.u32 %v985, 16
      %v1123 = vshll.u32 %v985, 16
      %v1125 = vrot.slane %v1123, 1
      %v1126 = vor.u32 %v1121, %v1125
      %v1128 = vshll.u32 %v1049, 16
      %v1130 = vrot.slane %v1128, 1
      %v1131 = vsel %vm481, %v1126, %v1130
      %v1133 = vshrl.u32 %v986, 16
      %v1135 = vshll.u32 %v986, 16
      %v1137 = vrot.slane %v1135, 1
      %v1138 = vor.u32 %v1133, %v1137
      %v1140 = vshll.u32 %v1050, 16
      %v1142 = vrot.slane %v1140, 1
      %v1143 = vsel %vm481, %v1138, %v1142
      %v1145 = vshrl.u32 %v987, 16
      %v1147 = vshll.u32 %v987, 16
      %v1149 = vrot.slane %v1147, 1
      %v1150 = vor.u32 %v1145, %v1149
      %v1152 = vshll.u32 %v1051, 16
      %v1154 = vrot.slane %v1152, 1
      %v1155 = vsel %vm481, %v1150, %v1154
      %v1157 = vshrl.u32 %v988, 16
      %v1159 = vshll.u32 %v988, 16
      %v1161 = vrot.slane %v1159, 1
      %v1162 = vor.u32 %v1157, %v1161
      %v1164 = vshll.u32 %v1052, 16
      %v1166 = vrot.slane %v1164, 1
      %v1167 = vsel %vm481, %v1162, %v1166
      %v1169 = vshrl.u32 %v989, 16
      %v1171 = vshll.u32 %v989, 16
      %v1173 = vrot.slane %v1171, 1
      %v1174 = vor.u32 %v1169, %v1173
      %v1176 = vshll.u32 %v1053, 16
      %v1178 = vrot.slane %v1176, 1
      %v1179 = vsel %vm481, %v1174, %v1178
      %v1181 = vshrl.u32 %v990, 16
      %v1183 = vshll.u32 %v990, 16
      %v1185 = vrot.slane %v1183, 1
      %v1186 = vor.u32 %v1181, %v1185
      %v1188 = vshll.u32 %v1054, 16
      %v1190 = vrot.slane %v1188, 1
      %v1191 = vsel %vm481, %v1186, %v1190
      %v1193 = vshrl.u32 %v991, 16
      %v1195 = vshll.u32 %v991, 16
      %v1197 = vrot.slane %v1195, 1
      %v1198 = vor.u32 %v1193, %v1197
      %v1200 = vshll.u32 %v1055, 16
      %v1202 = vrot.slane %v1200, 1
      %v1203 = vsel %vm481, %v1198, %v1202
      %v1205 = vshrl.u32 %v992, 16
      %v1207 = vshll.u32 %v992, 16
      %v1209 = vrot.slane %v1207, 1
      %v1210 = vor.u32 %v1205, %v1209
      %v1212 = vshll.u32 %v1056, 16
      %v1214 = vrot.slane %v1212, 1
      %v1215 = vsel %vm481, %v1210, %v1214
      %v1217 = vshrl.u32 %v993, 16
      %v1219 = vshll.u32 %v993, 16
      %v1221 = vrot.slane %v1219, 1
      %v1222 = vor.u32 %v1217, %v1221
      %v1224 = vshll.u32 %v1057, 16
      %v1226 = vrot.slane %v1224, 1
      %v1227 = vsel %vm481, %v1222, %v1226
      %v1229 = vshrl.u32 %v994, 16
      %v1231 = vshll.u32 %v994, 16
      %v1233 = vrot.slane %v1231, 1
      %v1234 = vor.u32 %v1229, %v1233
      %v1236 = vshll.u32 %v1058, 16
      %v1238 = vrot.slane %v1236, 1
      %v1239 = vsel %vm481, %v1234, %v1238
      %v1241 = vshrl.u32 %v995, 16
      %v1243 = vshll.u32 %v995, 16
      %v1245 = vrot.slane %v1243, 1
      %v1246 = vor.u32 %v1241, %v1245
      %v1248 = vshll.u32 %v1059, 16
      %v1250 = vrot.slane %v1248, 1
      %v1251 = vsel %vm481, %v1246, %v1250
      %v1284 = vunpack.c.l.b16 %v900
      %v1285 = vunpack.c.l.b16 %v901
      %v1286 = vunpack.c.l.b16 %v902
      %v1287 = vunpack.c.l.b16 %v903
      %v1288 = vunpack.c.l.b16 %v904
      %v1289 = vunpack.c.l.b16 %v905
      %v1290 = vunpack.c.l.b16 %v906
      %v1291 = vunpack.c.l.b16 %v907
      %v1292 = vunpack.c.l.b16 %v908
      %v1293 = vunpack.c.l.b16 %v909
      %v1294 = vunpack.c.l.b16 %v910
      %v1295 = vunpack.c.l.b16 %v911
      %v1296 = vunpack.c.l.b16 %v912
      %v1297 = vunpack.c.l.b16 %v913
      %v1298 = vunpack.c.l.b16 %v914
      %v1299 = vunpack.c.l.b16 %v915
      %v1300 = vpack.c.b16 %v949, %v1284
      %v1301 = vpack.c.b16 %v951, %v1285
      %v1302 = vpack.c.b16 %v953, %v1286
      %v1303 = vpack.c.b16 %v955, %v1287
      %v1304 = vpack.c.b16 %v957, %v1288
      %v1305 = vpack.c.b16 %v959, %v1289
      %v1306 = vpack.c.b16 %v961, %v1290
      %v1307 = vpack.c.b16 %v963, %v1291
      %v1308 = vpack.c.b16 %v965, %v1292
      %v1309 = vpack.c.b16 %v967, %v1293
      %v1310 = vpack.c.b16 %v969, %v1294
      %v1311 = vpack.c.b16 %v971, %v1295
      %v1312 = vpack.c.b16 %v973, %v1296
      %v1313 = vpack.c.b16 %v975, %v1297
      %v1314 = vpack.c.b16 %v977, %v1298
      %v1315 = vpack.c.b16 %v979, %v1299
      %v1316 = vrot.slane %v1300, 1
      %v1317 = vrot.slane %v1044, 1
      %v1318 = vsel %vm738, %v1316, %v1317
      %v1319 = vrot.slane %v1301, 1
      %v1320 = vrot.slane %v1045, 1
      %v1321 = vsel %vm738, %v1319, %v1320
      %v1322 = vrot.slane %v1302, 1
      %v1323 = vrot.slane %v1046, 1
      %v1324 = vsel %vm738, %v1322, %v1323
      %v1325 = vrot.slane %v1303, 1
      %v1326 = vrot.slane %v1047, 1
      %v1327 = vsel %vm738, %v1325, %v1326
      %v1328 = vrot.slane %v1304, 1
      %v1329 = vrot.slane %v1048, 1
      %v1330 = vsel %vm738, %v1328, %v1329
      %v1331 = vrot.slane %v1305, 1
      %v1332 = vrot.slane %v1049, 1
      %v1333 = vsel %vm738, %v1331, %v1332
      %v1334 = vrot.slane %v1306, 1
      %v1335 = vrot.slane %v1050, 1
      %v1336 = vsel %vm738, %v1334, %v1335
      %v1337 = vrot.slane %v1307, 1
      %v1338 = vrot.slane %v1051, 1
      %v1339 = vsel %vm738, %v1337, %v1338
      %v1340 = vrot.slane %v1308, 1
      %v1341 = vrot.slane %v1052, 1
      %v1342 = vsel %vm738, %v1340, %v1341
      %v1343 = vrot.slane %v1309, 1
      %v1344 = vrot.slane %v1053, 1
      %v1345 = vsel %vm738, %v1343, %v1344
      %v1346 = vrot.slane %v1310, 1
      %v1347 = vrot.slane %v1054, 1
      %v1348 = vsel %vm738, %v1346, %v1347
      %v1349 = vrot.slane %v1311, 1
      %v1350 = vrot.slane %v1055, 1
      %v1351 = vsel %vm738, %v1349, %v1350
      %v1352 = vrot.slane %v1312, 1
      %v1353 = vrot.slane %v1056, 1
      %v1354 = vsel %vm738, %v1352, %v1353
      %v1355 = vrot.slane %v1313, 1
      %v1356 = vrot.slane %v1057, 1
      %v1357 = vsel %vm738, %v1355, %v1356
      %v1358 = vrot.slane %v1314, 1
      %v1359 = vrot.slane %v1058, 1
      %v1360 = vsel %vm738, %v1358, %v1359
      %v1361 = vrot.slane %v1315, 1
      %v1362 = vrot.slane %v1059, 1
      %v1363 = vsel %vm738, %v1361, %v1362
      %v1380 = vld [vmem:[%s1 + $0xc0] sm:$0xf]
      %v1381 = vld [vmem:[%s1 + $0xc4] sm:$0xf]
      %v1382 = vld [vmem:[%s1 + $0xc8] sm:$0xf]
      %v1383 = vld [vmem:[%s1 + $0xcc] sm:$0xf]
      %v1384 = vld [vmem:[%s1 + $0xd0] sm:$0xf]
      %v1385 = vld [vmem:[%s1 + $0xd4] sm:$0xf]
      %v1386 = vld [vmem:[%s1 + $0xd8] sm:$0xf]
      %v1387 = vld [vmem:[%s1 + $0xdc] sm:$0xf]
      %v1388 = vld [vmem:[%s1 + $0xe0] sm:$0xf]
      %v1389 = vld [vmem:[%s1 + $0xe4] sm:$0xf]
      %v1390 = vld [vmem:[%s1 + $0xe8] sm:$0xf]
      %v1391 = vld [vmem:[%s1 + $0xec] sm:$0xf]
      %v1392 = vld [vmem:[%s1 + $0xf0] sm:$0xf]
      %v1393 = vld [vmem:[%s1 + $0xf4] sm:$0xf]
      %v1394 = vld [vmem:[%s1 + $0xf8] sm:$0xf]
      %v1395 = vld [vmem:[%s1 + $0xfc] sm:$0xf]
      %v1396 = vld [vmem:[%s1 + $0x100] sm:$0xf]
      %v1397 = vld [vmem:[%s1 + $0x104] sm:$0xf]
      %v1398 = vld [vmem:[%s1 + $0x108] sm:$0xf]
      %v1399 = vld [vmem:[%s1 + $0x10c] sm:$0xf]
      %v1400 = vld [vmem:[%s1 + $0x110] sm:$0xf]
      %v1401 = vld [vmem:[%s1 + $0x114] sm:$0xf]
      %v1402 = vld [vmem:[%s1 + $0x118] sm:$0xf]
      %v1403 = vld [vmem:[%s1 + $0x11c] sm:$0xf]
      %v1404 = vld [vmem:[%s1 + $0x120] sm:$0xf]
      %v1405 = vld [vmem:[%s1 + $0x124] sm:$0xf]
      %v1406 = vld [vmem:[%s1 + $0x128] sm:$0xf]
      %v1407 = vld [vmem:[%s1 + $0x12c] sm:$0xf]
      %v1408 = vld [vmem:[%s1 + $0x130] sm:$0xf]
      %v1409 = vld [vmem:[%s1 + $0x134] sm:$0xf]
      %v1410 = vld [vmem:[%s1 + $0x138] sm:$0xf]
      %v1411 = vld [vmem:[%s1 + $0x13c] sm:$0xf]
      %v1412 = vld [vmem:[%s1 + $0x140] sm:$0xf]
      %v1413 = vld [vmem:[%s1 + $0x144] sm:$0xf]
      %v1414 = vld [vmem:[%s1 + $0x148] sm:$0xf]
      %v1415 = vld [vmem:[%s1 + $0x14c] sm:$0xf]
      %v1416 = vld [vmem:[%s1 + $0x150] sm:$0xf]
      %v1417 = vld [vmem:[%s1 + $0x154] sm:$0xf]
      %v1418 = vld [vmem:[%s1 + $0x158] sm:$0xf]
      %v1419 = vld [vmem:[%s1 + $0x15c] sm:$0xf]
      %v1420 = vld [vmem:[%s1 + $0x160] sm:$0xf]
      %v1421 = vld [vmem:[%s1 + $0x164] sm:$0xf]
      %v1422 = vld [vmem:[%s1 + $0x168] sm:$0xf]
      %v1423 = vld [vmem:[%s1 + $0x16c] sm:$0xf]
      %v1424 = vld [vmem:[%s1 + $0x170] sm:$0xf]
      %v1425 = vld [vmem:[%s1 + $0x174] sm:$0xf]
      %v1426 = vld [vmem:[%s1 + $0x178] sm:$0xf]
      %v1427 = vld [vmem:[%s1 + $0x17c] sm:$0xf]
      %v1476 = vunpack.c.l.b16 %v1380
      %v1477 = vunpack.c.l.b16 %v1381
      %v1478 = vunpack.c.l.b16 %v1382
      %v1479 = vunpack.c.l.b16 %v1383
      %v1480 = vunpack.c.l.b16 %v1384
      %v1481 = vunpack.c.l.b16 %v1385
      %v1482 = vunpack.c.l.b16 %v1386
      %v1483 = vunpack.c.l.b16 %v1387
      %v1484 = vunpack.c.l.b16 %v1388
      %v1485 = vunpack.c.l.b16 %v1389
      %v1486 = vunpack.c.l.b16 %v1390
      %v1487 = vunpack.c.l.b16 %v1391
      %v1488 = vunpack.c.l.b16 %v1392
      %v1489 = vunpack.c.l.b16 %v1393
      %v1490 = vunpack.c.l.b16 %v1394
      %v1491 = vunpack.c.l.b16 %v1395
      %v1492 = vunpack.c.l.b16 %v1396
      %v1493 = vunpack.c.l.b16 %v1397
      %v1494 = vunpack.c.l.b16 %v1398
      %v1495 = vunpack.c.l.b16 %v1399
      %v1496 = vunpack.c.l.b16 %v1400
      %v1497 = vunpack.c.l.b16 %v1401
      %v1498 = vunpack.c.l.b16 %v1402
      %v1499 = vunpack.c.l.b16 %v1403
      %v1500 = vunpack.c.l.b16 %v1404
      %v1501 = vunpack.c.l.b16 %v1405
      %v1502 = vunpack.c.l.b16 %v1406
      %v1503 = vunpack.c.l.b16 %v1407
      %v1504 = vunpack.c.l.b16 %v1408
      %v1505 = vunpack.c.l.b16 %v1409
      %v1506 = vunpack.c.l.b16 %v1410
      %v1507 = vunpack.c.l.b16 %v1411
      %v1508 = vunpack.c.l.b16 %v1412
      %v1509 = vunpack.c.l.b16 %v1413
      %v1510 = vunpack.c.l.b16 %v1414
      %v1511 = vunpack.c.l.b16 %v1415
      %v1512 = vunpack.c.l.b16 %v1416
      %v1513 = vunpack.c.l.b16 %v1417
      %v1514 = vunpack.c.l.b16 %v1418
      %v1515 = vunpack.c.l.b16 %v1419
      %v1516 = vunpack.c.l.b16 %v1420
      %v1517 = vunpack.c.l.b16 %v1421
      %v1518 = vunpack.c.l.b16 %v1422
      %v1519 = vunpack.c.l.b16 %v1423
      %v1520 = vunpack.c.l.b16 %v1424
      %v1521 = vunpack.c.l.b16 %v1425
      %v1522 = vunpack.c.l.b16 %v1426
      %v1523 = vunpack.c.l.b16 %v1427
      %v1524 = vpack.c.b16 %v1477, %v1476
      %v1525 = vpack.c.b16 %v1479, %v1478
      %v1526 = vpack.c.b16 %v1481, %v1480
      %v1527 = vpack.c.b16 %v1483, %v1482
      %v1528 = vpack.c.b16 %v1485, %v1484
      %v1529 = vpack.c.b16 %v1487, %v1486
      %v1530 = vpack.c.b16 %v1489, %v1488
      %v1531 = vpack.c.b16 %v1491, %v1490
      %v1532 = vpack.c.b16 %v1493, %v1492
      %v1533 = vpack.c.b16 %v1495, %v1494
      %v1534 = vpack.c.b16 %v1497, %v1496
      %v1535 = vpack.c.b16 %v1499, %v1498
      %v1536 = vpack.c.b16 %v1501, %v1500
      %v1537 = vpack.c.b16 %v1503, %v1502
      %v1538 = vpack.c.b16 %v1505, %v1504
      %v1539 = vpack.c.b16 %v1507, %v1506
      %v1540 = vpack.c.b16 %v1509, %v1508
      %v1541 = vpack.c.b16 %v1511, %v1510
      %v1542 = vpack.c.b16 %v1513, %v1512
      %v1543 = vpack.c.b16 %v1515, %v1514
      %v1544 = vpack.c.b16 %v1517, %v1516
      %v1545 = vpack.c.b16 %v1519, %v1518
      %v1546 = vpack.c.b16 %v1521, %v1520
      %v1547 = vpack.c.b16 %v1523, %v1522
      %1572 = vmatprep.subr.bf16.mxu0 0
      %1573 = vmatpush1.bf16.msra.mxu0 %v1524
      %1574 = vmatprep.subr.bf16.mxu0 0
      %1575 = vmatpush1.bf16.msra.mxu0 %v1525
      %1576 = vmatprep.subr.bf16.mxu0 0
      %1577 = vmatpush1.bf16.msra.mxu0 %v1526
      %1578 = vmatprep.subr.bf16.mxu0 0
      %1579 = vmatpush1.bf16.msra.mxu0 %v1527
      %1580 = vmatprep.subr.bf16.mxu0 0
      %1581 = vmatpush1.bf16.msra.mxu0 %v1528
      %1582 = vmatprep.subr.bf16.mxu0 0
      %1583 = vmatpush1.bf16.msra.mxu0 %v1529
      %1584 = vmatprep.subr.bf16.mxu0 0
      %1585 = vmatpush1.bf16.msra.mxu0 %v1530
      %1586 = vmatprep.subr.bf16.mxu0 0
      %1587 = vmatpush1.bf16.msra.mxu0 %v1531
      %1588 = vmatprep.subr.bf16.mxu0 0
      %1589 = vmatpush1.bf16.msra.mxu0 %v1532
      %1590 = vmatprep.subr.bf16.mxu0 0
      %1591 = vmatpush1.bf16.msra.mxu0 %v1533
      %1592 = vmatprep.subr.bf16.mxu0 0
      %1593 = vmatpush1.bf16.msra.mxu0 %v1534
      %1594 = vmatprep.subr.bf16.mxu0 0
      %1595 = vmatpush1.bf16.msra.mxu0 %v1535
      %1596 = vmatprep.subr.bf16.mxu0 0
      %1597 = vmatpush1.bf16.msra.mxu0 %v1536
      %1598 = vmatprep.subr.bf16.mxu0 0
      %1599 = vmatpush1.bf16.msra.mxu0 %v1537
      %1600 = vmatprep.subr.bf16.mxu0 0
      %1601 = vmatpush1.bf16.msra.mxu0 %v1538
      %1602 = vmatprep.subr.bf16.mxu0 0
      %1603 = vmatpush1.bf16.msra.mxu0 %v1539
      %1604 = vmatprep.mubr.bf16.mxu0 %v1071
      %1605 = vmatmul.mubr.bf16.gmra.mrb[0].mxu0 %v980
      %v1606 = vpop.f32.mrb[0].mxu0
      %v1607 = vadd.f32 0.0, %v1606
      %v1608 = vpop.f32.mrb[0].mxu0
      %v1609 = vpop.f32.mrb[0].mxu0
      %v1610 = vadd.f32 0.0, %v1609
      %v1611 = vpop.f32.mrb[0].mxu0
      %1612 = vmatprep.mubr.bf16.mxu0 %v1083
      %1613 = vmatmul.mubr.bf16.gmra.mrb[0].mxu0 %v981
      %v1614 = vpop.f32.mrb[0].mxu0
      %v1615 = vadd.f32 0.0, %v1614
      %v1616 = vpop.f32.mrb[0].mxu0
      %v1617 = vpop.f32.mrb[0].mxu0
      %v1618 = vadd.f32 0.0, %v1617
      %v1619 = vpop.f32.mrb[0].mxu0
      %1620 = vmatprep.mubr.bf16.mxu0 %v1095
      %1621 = vmatmul.mubr.bf16.gmra.mrb[0].mxu0 %v982
      %v1622 = vpop.f32.mrb[0].mxu0
      %v1623 = vadd.f32 0.0, %v1622
      %v1624 = vpop.f32.mrb[0].mxu0
      %v1625 = vpop.f32.mrb[0].mxu0
      %v1626 = vadd.f32 0.0, %v1625
      %v1627 = vpop.f32.mrb[0].mxu0
      %1628 = vmatprep.mubr.bf16.mxu0 %v1107
      %1629 = vmatmul.mubr.bf16.gmra.mrb[0].mxu0 %v983
      %v1630 = vpop.f32.mrb[0].mxu0
      %v1631 = vadd.f32 0.0, %v1630
      %v1632 = vpop.f32.mrb[0].mxu0
      %v1633 = vpop.f32.mrb[0].mxu0
      %v1634 = vadd.f32 0.0, %v1633
      %v1635 = vpop.f32.mrb[0].mxu0
      %1636 = vmatprep.mubr.bf16.mxu0 %v1119
      %1637 = vmatmul.mubr.bf16.gmra.mrb[0].mxu0 %v984
      %v1638 = vpop.f32.mrb[0].mxu0
      %v1639 = vadd.f32 0.0, %v1638
      %v1640 = vpop.f32.mrb[0].mxu0
      %v1641 = vpop.f32.mrb[0].mxu0
      %v1642 = vadd.f32 0.0, %v1641
      %v1643 = vpop.f32.mrb[0].mxu0
      %1644 = vmatprep.mubr.bf16.mxu0 %v1131
      %1645 = vmatmul.mubr.bf16.gmra.mrb[0].mxu0 %v985
      %v1646 = vpop.f32.mrb[0].mxu0
      %v1647 = vadd.f32 0.0, %v1646
      %v1648 = vpop.f32.mrb[0].mxu0
      %v1649 = vpop.f32.mrb[0].mxu0
      %v1650 = vadd.f32 0.0, %v1649
      %v1651 = vpop.f32.mrb[0].mxu0
      %1652 = vmatprep.mubr.bf16.mxu0 %v1143
      %1653 = vmatmul.mubr.bf16.gmra.mrb[0].mxu0 %v986
      %v1654 = vpop.f32.mrb[0].mxu0
      %v1655 = vadd.f32 0.0, %v1654
      %v1656 = vpop.f32.mrb[0].mxu0
      %v1657 = vpop.f32.mrb[0].mxu0
      %v1658 = vadd.f32 0.0, %v1657
      %v1659 = vpop.f32.mrb[0].mxu0
      %1660 = vmatprep.mubr.bf16.mxu0 %v1155
      %1661 = vmatmul.mubr.bf16.gmra.mrb[0].mxu0 %v987
      %v1662 = vpop.f32.mrb[0].mxu0
      %v1663 = vadd.f32 0.0, %v1662
      %v1664 = vpop.f32.mrb[0].mxu0
      %v1665 = vpop.f32.mrb[0].mxu0
      %v1666 = vadd.f32 0.0, %v1665
      %v1667 = vpop.f32.mrb[0].mxu0
      %1668 = vmatprep.mubr.bf16.mxu0 %v1167
      %1669 = vmatmul.mubr.bf16.gmra.mrb[0].mxu0 %v988
      %v1670 = vpop.f32.mrb[0].mxu0
      %v1671 = vadd.f32 0.0, %v1670
      %v1672 = vpop.f32.mrb[0].mxu0
      %v1673 = vpop.f32.mrb[0].mxu0
      %v1674 = vadd.f32 0.0, %v1673
      %v1675 = vpop.f32.mrb[0].mxu0
      %1676 = vmatprep.mubr.bf16.mxu0 %v1179
      %1677 = vmatmul.mubr.bf16.gmra.mrb[0].mxu0 %v989
      %v1678 = vpop.f32.mrb[0].mxu0
      %v1679 = vadd.f32 0.0, %v1678
      %v1680 = vpop.f32.mrb[0].mxu0
      %v1681 = vpop.f32.mrb[0].mxu0
      %v1682 = vadd.f32 0.0, %v1681
      %v1683 = vpop.f32.mrb[0].mxu0
      %1684 = vmatprep.mubr.bf16.mxu0 %v1191
      %1685 = vmatmul.mubr.bf16.gmra.mrb[0].mxu0 %v990
      %v1686 = vpop.f32.mrb[0].mxu0
      %v1687 = vadd.f32 0.0, %v1686
      %v1688 = vpop.f32.mrb[0].mxu0
      %v1689 = vpop.f32.mrb[0].mxu0
      %v1690 = vadd.f32 0.0, %v1689
      %v1691 = vpop.f32.mrb[0].mxu0
      %1692 = vmatprep.mubr.bf16.mxu0 %v1203
      %1693 = vmatmul.mubr.bf16.gmra.mrb[0].mxu0 %v991
      %v1694 = vpop.f32.mrb[0].mxu0
      %v1695 = vadd.f32 0.0, %v1694
      %v1696 = vpop.f32.mrb[0].mxu0
      %v1697 = vpop.f32.mrb[0].mxu0
      %v1698 = vadd.f32 0.0, %v1697
      %v1699 = vpop.f32.mrb[0].mxu0
      %1700 = vmatprep.mubr.bf16.mxu0 %v1215
      %1701 = vmatmul.mubr.bf16.gmra.mrb[0].mxu0 %v992
      %v1702 = vpop.f32.mrb[0].mxu0
      %v1703 = vadd.f32 0.0, %v1702
      %v1704 = vpop.f32.mrb[0].mxu0
      %v1705 = vpop.f32.mrb[0].mxu0
      %v1706 = vadd.f32 0.0, %v1705
      %v1707 = vpop.f32.mrb[0].mxu0
      %1708 = vmatprep.mubr.bf16.mxu0 %v1227
      %1709 = vmatmul.mubr.bf16.gmra.mrb[0].mxu0 %v993
      %v1710 = vpop.f32.mrb[0].mxu0
      %v1711 = vadd.f32 0.0, %v1710
      %v1712 = vpop.f32.mrb[0].mxu0
      %v1713 = vpop.f32.mrb[0].mxu0
      %v1714 = vadd.f32 0.0, %v1713
      %v1715 = vpop.f32.mrb[0].mxu0
      %1716 = vmatprep.mubr.bf16.mxu0 %v1239
      %1717 = vmatmul.mubr.bf16.gmra.mrb[0].mxu0 %v994
      %v1718 = vpop.f32.mrb[0].mxu0
      %v1719 = vadd.f32 0.0, %v1718
      %v1720 = vpop.f32.mrb[0].mxu0
      %v1721 = vpop.f32.mrb[0].mxu0
      %v1722 = vadd.f32 0.0, %v1721
      %v1723 = vpop.f32.mrb[0].mxu0
      %1724 = vmatprep.mubr.bf16.mxu0 %v1251
      %1725 = vmatmul.mubr.bf16.gmra.mrb[0].mxu0 %v995
      %v1726 = vpop.f32.mrb[0].mxu0
      %v1727 = vadd.f32 0.0, %v1726
      %v1728 = vpop.f32.mrb[0].mxu0
      %v1729 = vpop.f32.mrb[0].mxu0
      %v1730 = vadd.f32 0.0, %v1729
      %v1731 = vpop.f32.mrb[0].mxu0
      %1732 = vdwg.mxu0
      %1733 = vmatprep.subr.bf16.mxu0 0
      %1734 = vmatpush1.bf16.msra.mxu0 %v1540
      %1735 = vmatprep.subr.bf16.mxu0 0
      %1736 = vmatpush1.bf16.msra.mxu0 %v1541
      %1737 = vmatprep.subr.bf16.mxu0 0
      %1738 = vmatpush1.bf16.msra.mxu0 %v1542
      %1739 = vmatprep.subr.bf16.mxu0 0
      %1740 = vmatpush1.bf16.msra.mxu0 %v1543
      %1741 = vmatprep.subr.bf16.mxu0 0
      %1742 = vmatpush1.bf16.msra.mxu0 %v1544
      %1743 = vmatprep.subr.bf16.mxu0 0
      %1744 = vmatpush1.bf16.msra.mxu0 %v1545
      %1745 = vmatprep.subr.bf16.mxu0 0
      %1746 = vmatpush1.bf16.msra.mxu0 %v1546
      %1747 = vmatprep.subr.bf16.mxu0 0
      %1748 = vmatpush1.bf16.msra.mxu0 %v1547
      %1749 = vmatprep.subr.bf16.mxu0 0
      %1750 = vmatpush1.bf16.msra.mxu0 0
      %1751 = vmatprep.subr.bf16.mxu0 0
      %1752 = vmatpush1.bf16.msra.mxu0 0
      %1753 = vmatprep.subr.bf16.mxu0 0
      %1754 = vmatpush1.bf16.msra.mxu0 0
      %1755 = vmatprep.subr.bf16.mxu0 0
      %1756 = vmatpush1.bf16.msra.mxu0 0
      %1757 = vmatprep.subr.bf16.mxu0 0
      %1758 = vmatpush1.bf16.msra.mxu0 0
      %1759 = vmatprep.subr.bf16.mxu0 0
      %1760 = vmatpush1.bf16.msra.mxu0 0
      %1761 = vmatprep.subr.bf16.mxu0 0
      %1762 = vmatpush1.bf16.msra.mxu0 0
      %1763 = vmatprep.subr.bf16.mxu0 0
      %1764 = vmatpush1.bf16.msra.mxu0 0
      %1765 = vmatprep.mubr.bf16.mxu0 0
      %1766 = vmatmul.mubr.bf16.gmra.mrb[0].mxu0 %v1318
      %v1767 = vpop.f32.mrb[0].mxu0
      %v1768 = vadd.f32 %v1607, %v1767
      %v1769 = vpop.f32.mrb[0].mxu0
      %v1770 = vpop.f32.mrb[0].mxu0
      %v1771 = vadd.f32 %v1610, %v1770
      %v1772 = vpop.f32.mrb[0].mxu0
      %1773 = vmatprep.mubr.bf16.mxu0 0
      %1774 = vmatmul.mubr.bf16.gmra.mrb[0].mxu0 %v1321
      %v1775 = vpop.f32.mrb[0].mxu0
      %v1776 = vadd.f32 %v1615, %v1775
      %v1777 = vpop.f32.mrb[0].mxu0
      %v1778 = vpop.f32.mrb[0].mxu0
      %v1779 = vadd.f32 %v1618, %v1778
      %v1780 = vpop.f32.mrb[0].mxu0
      %1781 = vmatprep.mubr.bf16.mxu0 0
      %1782 = vmatmul.mubr.bf16.gmra.mrb[0].mxu0 %v1324
      %v1783 = vpop.f32.mrb[0].mxu0
      %v1784 = vadd.f32 %v1623, %v1783
      %v1785 = vpop.f32.mrb[0].mxu0
      %v1786 = vpop.f32.mrb[0].mxu0
      %v1787 = vadd.f32 %v1626, %v1786
      %v1788 = vpop.f32.mrb[0].mxu0
      %1789 = vmatprep.mubr.bf16.mxu0 0
      %1790 = vmatmul.mubr.bf16.gmra.mrb[0].mxu0 %v1327
      %v1791 = vpop.f32.mrb[0].mxu0
      %v1792 = vadd.f32 %v1631, %v1791
      %v1793 = vpop.f32.mrb[0].mxu0
      %v1794 = vpop.f32.mrb[0].mxu0
      %v1795 = vadd.f32 %v1634, %v1794
      %v1796 = vpop.f32.mrb[0].mxu0
      %1797 = vmatprep.mubr.bf16.mxu0 0
      %1798 = vmatmul.mubr.bf16.gmra.mrb[0].mxu0 %v1330
      %v1799 = vpop.f32.mrb[0].mxu0
      %v1800 = vadd.f32 %v1639, %v1799
      %v1801 = vpop.f32.mrb[0].mxu0
      %v1802 = vpop.f32.mrb[0].mxu0
      %v1803 = vadd.f32 %v1642, %v1802
      %v1804 = vpop.f32.mrb[0].mxu0
      %1805 = vmatprep.mubr.bf16.mxu0 0
      %1806 = vmatmul.mubr.bf16.gmra.mrb[0].mxu0 %v1333
      %v1807 = vpop.f32.mrb[0].mxu0
      %v1808 = vadd.f32 %v1647, %v1807
      %v1809 = vpop.f32.mrb[0].mxu0
      %v1810 = vpop.f32.mrb[0].mxu0
      %v1811 = vadd.f32 %v1650, %v1810
      %v1812 = vpop.f32.mrb[0].mxu0
      %1813 = vmatprep.mubr.bf16.mxu0 0
      %1814 = vmatmul.mubr.bf16.gmra.mrb[0].mxu0 %v1336
      %v1815 = vpop.f32.mrb[0].mxu0
      %v1816 = vadd.f32 %v1655, %v1815
      %v1817 = vpop.f32.mrb[0].mxu0
      %v1818 = vpop.f32.mrb[0].mxu0
      %v1819 = vadd.f32 %v1658, %v1818
      %v1820 = vpop.f32.mrb[0].mxu0
      %1821 = vmatprep.mubr.bf16.mxu0 0
      %1822 = vmatmul.mubr.bf16.gmra.mrb[0].mxu0 %v1339
      %v1823 = vpop.f32.mrb[0].mxu0
      %v1824 = vadd.f32 %v1663, %v1823
      %v1825 = vpop.f32.mrb[0].mxu0
      %v1826 = vpop.f32.mrb[0].mxu0
      %v1827 = vadd.f32 %v1666, %v1826
      %v1828 = vpop.f32.mrb[0].mxu0
      %1829 = vmatprep.mubr.bf16.mxu0 0
      %1830 = vmatmul.mubr.bf16.gmra.mrb[0].mxu0 %v1342
      %v1831 = vpop.f32.mrb[0].mxu0
      %v1832 = vadd.f32 %v1671, %v1831
      %v1833 = vpop.f32.mrb[0].mxu0
      %v1834 = vpop.f32.mrb[0].mxu0
      %v1835 = vadd.f32 %v1674, %v1834
      %v1836 = vpop.f32.mrb[0].mxu0
      %1837 = vmatprep.mubr.bf16.mxu0 0
      %1838 = vmatmul.mubr.bf16.gmra.mrb[0].mxu0 %v1345
      %v1839 = vpop.f32.mrb[0].mxu0
      %v1840 = vadd.f32 %v1679, %v1839
      %v1841 = vpop.f32.mrb[0].mxu0
      %v1842 = vpop.f32.mrb[0].mxu0
      %v1843 = vadd.f32 %v1682, %v1842
      %v1844 = vpop.f32.mrb[0].mxu0
      %1845 = vmatprep.mubr.bf16.mxu0 0
      %1846 = vmatmul.mubr.bf16.gmra.mrb[0].mxu0 %v1348
      %v1847 = vpop.f32.mrb[0].mxu0
      %v1848 = vadd.f32 %v1687, %v1847
      %v1849 = vpop.f32.mrb[0].mxu0
      %v1850 = vpop.f32.mrb[0].mxu0
      %v1851 = vadd.f32 %v1690, %v1850
      %v1852 = vpop.f32.mrb[0].mxu0
      %1853 = vmatprep.mubr.bf16.mxu0 0
      %1854 = vmatmul.mubr.bf16.gmra.mrb[0].mxu0 %v1351
      %v1855 = vpop.f32.mrb[0].mxu0
      %v1856 = vadd.f32 %v1695, %v1855
      %v1857 = vpop.f32.mrb[0].mxu0
      %v1858 = vpop.f32.mrb[0].mxu0
      %v1859 = vadd.f32 %v1698, %v1858
      %v1860 = vpop.f32.mrb[0].mxu0
      %1861 = vmatprep.mubr.bf16.mxu0 0
      %1862 = vmatmul.mubr.bf16.gmra.mrb[0].mxu0 %v1354
      %v1863 = vpop.f32.mrb[0].mxu0
      %v1864 = vadd.f32 %v1703, %v1863
      %v1865 = vpop.f32.mrb[0].mxu0
      %v1866 = vpop.f32.mrb[0].mxu0
      %v1867 = vadd.f32 %v1706, %v1866
      %v1868 = vpop.f32.mrb[0].mxu0
      %1869 = vmatprep.mubr.bf16.mxu0 0
      %1870 = vmatmul.mubr.bf16.gmra.mrb[0].mxu0 %v1357
      %v1871 = vpop.f32.mrb[0].mxu0
      %v1872 = vadd.f32 %v1711, %v1871
      %v1873 = vpop.f32.mrb[0].mxu0
      %v1874 = vpop.f32.mrb[0].mxu0
      %v1875 = vadd.f32 %v1714, %v1874
      %v1876 = vpop.f32.mrb[0].mxu0
      %1877 = vmatprep.mubr.bf16.mxu0 0
      %1878 = vmatmul.mubr.bf16.gmra.mrb[0].mxu0 %v1360
      %v1879 = vpop.f32.mrb[0].mxu0
      %v1880 = vadd.f32 %v1719, %v1879
      %v1881 = vpop.f32.mrb[0].mxu0
      %v1882 = vpop.f32.mrb[0].mxu0
      %v1883 = vadd.f32 %v1722, %v1882
      %v1884 = vpop.f32.mrb[0].mxu0
      %1885 = vmatprep.mubr.bf16.mxu0 0
      %1886 = vmatmul.mubr.bf16.gmra.mrb[0].mxu0 %v1363
      %v1887 = vpop.f32.mrb[0].mxu0
      %v1888 = vadd.f32 %v1727, %v1887
      %v1889 = vpop.f32.mrb[0].mxu0
      %v1890 = vpop.f32.mrb[0].mxu0
      %v1891 = vadd.f32 %v1730, %v1890
      %v1892 = vpop.f32.mrb[0].mxu0
      %1893 = vdwg.mxu0
      %v1942 = vunpack.c.l.b16 %v803
      %v1943 = vunpack.c.l.b16 %v804
      %v1944 = vunpack.c.l.b16 %v805
      %v1945 = vunpack.c.l.b16 %v806
      %v1946 = vunpack.c.l.b16 %v807
      %v1947 = vunpack.c.l.b16 %v808
      %v1948 = vunpack.c.l.b16 %v809
      %v1949 = vunpack.c.l.b16 %v810
      %v1950 = vunpack.c.l.b16 %v811
      %v1951 = vunpack.c.l.b16 %v812
      %v1952 = vunpack.c.l.b16 %v813
      %v1953 = vunpack.c.l.b16 %v814
      %v1954 = vunpack.c.l.b16 %v815
      %v1955 = vunpack.c.l.b16 %v816
      %v1956 = vunpack.c.l.b16 %v817
      %v1957 = vunpack.c.l.b16 %v818
      %v1958 = vunpack.c.l.b16 %v819
      %v1959 = vunpack.c.l.b16 %v820
      %v1960 = vunpack.c.l.b16 %v821
      %v1961 = vunpack.c.l.b16 %v822
      %v1962 = vunpack.c.l.b16 %v823
      %v1963 = vunpack.c.l.b16 %v824
      %v1964 = vunpack.c.l.b16 %v825
      %v1965 = vunpack.c.l.b16 %v826
      %v1966 = vunpack.c.l.b16 %v827
      %v1967 = vunpack.c.l.b16 %v828
      %v1968 = vunpack.c.l.b16 %v829
      %v1969 = vunpack.c.l.b16 %v830
      %v1970 = vunpack.c.l.b16 %v831
      %v1971 = vunpack.c.l.b16 %v832
      %v1972 = vunpack.c.l.b16 %v833
      %v1973 = vunpack.c.l.b16 %v834
      %v1974 = vunpack.c.l.b16 %v835
      %v1975 = vunpack.c.l.b16 %v836
      %v1976 = vunpack.c.l.b16 %v837
      %v1977 = vunpack.c.l.b16 %v838
      %v1978 = vunpack.c.l.b16 %v839
      %v1979 = vunpack.c.l.b16 %v840
      %v1980 = vunpack.c.l.b16 %v841
      %v1981 = vunpack.c.l.b16 %v842
      %v1982 = vunpack.c.l.b16 %v843
      %v1983 = vunpack.c.l.b16 %v844
      %v1984 = vunpack.c.l.b16 %v845
      %v1985 = vunpack.c.l.b16 %v846
      %v1986 = vunpack.c.l.b16 %v847
      %v1987 = vunpack.c.l.b16 %v848
      %v1988 = vunpack.c.l.b16 %v849
      %v1989 = vunpack.c.l.b16 %v850
      %v1990 = vpack.c.b16 %v1943, %v1942
      %v1991 = vpack.c.b16 %v1945, %v1944
      %v1992 = vpack.c.b16 %v1947, %v1946
      %v1993 = vpack.c.b16 %v1949, %v1948
      %v1994 = vpack.c.b16 %v1951, %v1950
      %v1995 = vpack.c.b16 %v1953, %v1952
      %v1996 = vpack.c.b16 %v1955, %v1954
      %v1997 = vpack.c.b16 %v1957, %v1956
      %v1998 = vpack.c.b16 %v1959, %v1958
      %v1999 = vpack.c.b16 %v1961, %v1960
      %v2000 = vpack.c.b16 %v1963, %v1962
      %v2001 = vpack.c.b16 %v1965, %v1964
      %v2002 = vpack.c.b16 %v1967, %v1966
      %v2003 = vpack.c.b16 %v1969, %v1968
      %v2004 = vpack.c.b16 %v1971, %v1970
      %v2005 = vpack.c.b16 %v1973, %v1972
      %v2006 = vpack.c.b16 %v1975, %v1974
      %v2007 = vpack.c.b16 %v1977, %v1976
      %v2008 = vpack.c.b16 %v1979, %v1978
      %v2009 = vpack.c.b16 %v1981, %v1980
      %v2010 = vpack.c.b16 %v1983, %v1982
      %v2011 = vpack.c.b16 %v1985, %v1984
      %v2012 = vpack.c.b16 %v1987, %v1986
      %v2013 = vpack.c.b16 %v1989, %v1988
      %2038 = vmatprep.subr.bf16.mxu0 0
      %2039 = vmatpush1.bf16.msra.mxu0 %v1990
      %2040 = vmatprep.subr.bf16.mxu0 0
      %2041 = vmatpush1.bf16.msra.mxu0 %v1991
      %2042 = vmatprep.subr.bf16.mxu0 0
      %2043 = vmatpush1.bf16.msra.mxu0 %v1992
      %2044 = vmatprep.subr.bf16.mxu0 0
      %2045 = vmatpush1.bf16.msra.mxu0 %v1993
      %2046 = vmatprep.subr.bf16.mxu0 0
      %2047 = vmatpush1.bf16.msra.mxu0 %v1994
      %2048 = vmatprep.subr.bf16.mxu0 0
      %2049 = vmatpush1.bf16.msra.mxu0 %v1995
      %2050 = vmatprep.subr.bf16.mxu0 0
      %2051 = vmatpush1.bf16.msra.mxu0 %v1996
      %2052 = vmatprep.subr.bf16.mxu0 0
      %2053 = vmatpush1.bf16.msra.mxu0 %v1997
      %2054 = vmatprep.subr.bf16.mxu0 0
      %2055 = vmatpush1.bf16.msra.mxu0 %v1998
      %2056 = vmatprep.subr.bf16.mxu0 0
      %2057 = vmatpush1.bf16.msra.mxu0 %v1999
      %2058 = vmatprep.subr.bf16.mxu0 0
      %2059 = vmatpush1.bf16.msra.mxu0 %v2000
      %2060 = vmatprep.subr.bf16.mxu0 0
      %2061 = vmatpush1.bf16.msra.mxu0 %v2001
      %2062 = vmatprep.subr.bf16.mxu0 0
      %2063 = vmatpush1.bf16.msra.mxu0 %v2002
      %2064 = vmatprep.subr.bf16.mxu0 0
      %2065 = vmatpush1.bf16.msra.mxu0 %v2003
      %2066 = vmatprep.subr.bf16.mxu0 0
      %2067 = vmatpush1.bf16.msra.mxu0 %v2004
      %2068 = vmatprep.subr.bf16.mxu0 0
      %2069 = vmatpush1.bf16.msra.mxu0 %v2005
      %2070 = vmatprep.mubr.bf16.mxu0 %v493
      %2071 = vmatmul.mubr.bf16.gmra.mrb[0].mxu0 %v401
      %v2072 = vpop.f32.mrb[0].mxu0
      %v2073 = vadd.f32 %v1768, %v2072
      %v2074 = vpop.f32.mrb[0].mxu0
      %v2075 = vpop.f32.mrb[0].mxu0
      %v2076 = vadd.f32 %v1771, %v2075
      %v2077 = vpop.f32.mrb[0].mxu0
      %2078 = vmatprep.mubr.bf16.mxu0 %v505
      %2079 = vmatmul.mubr.bf16.gmra.mrb[0].mxu0 %v402
      %v2080 = vpop.f32.mrb[0].mxu0
      %v2081 = vadd.f32 %v1776, %v2080
      %v2082 = vpop.f32.mrb[0].mxu0
      %v2083 = vpop.f32.mrb[0].mxu0
      %v2084 = vadd.f32 %v1779, %v2083
      %v2085 = vpop.f32.mrb[0].mxu0
      %2086 = vmatprep.mubr.bf16.mxu0 %v517
      %2087 = vmatmul.mubr.bf16.gmra.mrb[0].mxu0 %v403
      %v2088 = vpop.f32.mrb[0].mxu0
      %v2089 = vadd.f32 %v1784, %v2088
      %v2090 = vpop.f32.mrb[0].mxu0
      %v2091 = vpop.f32.mrb[0].mxu0
      %v2092 = vadd.f32 %v1787, %v2091
      %v2093 = vpop.f32.mrb[0].mxu0
      %2094 = vmatprep.mubr.bf16.mxu0 %v529
      %2095 = vmatmul.mubr.bf16.gmra.mrb[0].mxu0 %v404
      %v2096 = vpop.f32.mrb[0].mxu0
      %v2097 = vadd.f32 %v1792, %v2096
      %v2098 = vpop.f32.mrb[0].mxu0
      %v2099 = vpop.f32.mrb[0].mxu0
      %v2100 = vadd.f32 %v1795, %v2099
      %v2101 = vpop.f32.mrb[0].mxu0
      %2102 = vmatprep.mubr.bf16.mxu0 %v541
      %2103 = vmatmul.mubr.bf16.gmra.mrb[0].mxu0 %v405
      %v2104 = vpop.f32.mrb[0].mxu0
      %v2105 = vadd.f32 %v1800, %v2104
      %v2106 = vpop.f32.mrb[0].mxu0
      %v2107 = vpop.f32.mrb[0].mxu0
      %v2108 = vadd.f32 %v1803, %v2107
      %v2109 = vpop.f32.mrb[0].mxu0
      %2110 = vmatprep.mubr.bf16.mxu0 %v553
      %2111 = vmatmul.mubr.bf16.gmra.mrb[0].mxu0 %v406
      %v2112 = vpop.f32.mrb[0].mxu0
      %v2113 = vadd.f32 %v1808, %v2112
      %v2114 = vpop.f32.mrb[0].mxu0
      %v2115 = vpop.f32.mrb[0].mxu0
      %v2116 = vadd.f32 %v1811, %v2115
      %v2117 = vpop.f32.mrb[0].mxu0
      %2118 = vmatprep.mubr.bf16.mxu0 %v565
      %2119 = vmatmul.mubr.bf16.gmra.mrb[0].mxu0 %v407
      %v2120 = vpop.f32.mrb[0].mxu0
      %v2121 = vadd.f32 %v1816, %v2120
      %v2122 = vpop.f32.mrb[0].mxu0
      %v2123 = vpop.f32.mrb[0].mxu0
      %v2124 = vadd.f32 %v1819, %v2123
      %v2125 = vpop.f32.mrb[0].mxu0
      %2126 = vmatprep.mubr.bf16.mxu0 %v577
      %2127 = vmatmul.mubr.bf16.gmra.mrb[0].mxu0 %v408
      %v2128 = vpop.f32.mrb[0].mxu0
      %v2129 = vadd.f32 %v1824, %v2128
      %v2130 = vpop.f32.mrb[0].mxu0
      %v2131 = vpop.f32.mrb[0].mxu0
      %v2132 = vadd.f32 %v1827, %v2131
      %v2133 = vpop.f32.mrb[0].mxu0
      %2134 = vmatprep.mubr.bf16.mxu0 %v589
      %2135 = vmatmul.mubr.bf16.gmra.mrb[0].mxu0 %v409
      %v2136 = vpop.f32.mrb[0].mxu0
      %v2137 = vadd.f32 %v1832, %v2136
      %v2138 = vpop.f32.mrb[0].mxu0
      %v2139 = vpop.f32.mrb[0].mxu0
      %v2140 = vadd.f32 %v1835, %v2139
      %v2141 = vpop.f32.mrb[0].mxu0
      %2142 = vmatprep.mubr.bf16.mxu0 %v601
      %2143 = vmatmul.mubr.bf16.gmra.mrb[0].mxu0 %v410
      %v2144 = vpop.f32.mrb[0].mxu0
      %v2145 = vadd.f32 %v1840, %v2144
      %v2146 = vpop.f32.mrb[0].mxu0
      %v2147 = vpop.f32.mrb[0].mxu0
      %v2148 = vadd.f32 %v1843, %v2147
      %v2149 = vpop.f32.mrb[0].mxu0
      %2150 = vmatprep.mubr.bf16.mxu0 %v613
      %2151 = vmatmul.mubr.bf16.gmra.mrb[0].mxu0 %v411
      %v2152 = vpop.f32.mrb[0].mxu0
      %v2153 = vadd.f32 %v1848, %v2152
      %v2154 = vpop.f32.mrb[0].mxu0
      %v2155 = vpop.f32.mrb[0].mxu0
      %v2156 = vadd.f32 %v1851, %v2155
      %v2157 = vpop.f32.mrb[0].mxu0
      %2158 = vmatprep.mubr.bf16.mxu0 %v625
      %2159 = vmatmul.mubr.bf16.gmra.mrb[0].mxu0 %v412
      %v2160 = vpop.f32.mrb[0].mxu0
      %v2161 = vadd.f32 %v1856, %v2160
      %v2162 = vpop.f32.mrb[0].mxu0
      %v2163 = vpop.f32.mrb[0].mxu0
      %v2164 = vadd.f32 %v1859, %v2163
      %v2165 = vpop.f32.mrb[0].mxu0
      %2166 = vmatprep.mubr.bf16.mxu0 %v637
      %2167 = vmatmul.mubr.bf16.gmra.mrb[0].mxu0 %v413
      %v2168 = vpop.f32.mrb[0].mxu0
      %v2169 = vadd.f32 %v1864, %v2168
      %v2170 = vpop.f32.mrb[0].mxu0
      %v2171 = vpop.f32.mrb[0].mxu0
      %v2172 = vadd.f32 %v1867, %v2171
      %v2173 = vpop.f32.mrb[0].mxu0
      %2174 = vmatprep.mubr.bf16.mxu0 %v649
      %2175 = vmatmul.mubr.bf16.gmra.mrb[0].mxu0 %v414
      %v2176 = vpop.f32.mrb[0].mxu0
      %v2177 = vadd.f32 %v1872, %v2176
      %v2178 = vpop.f32.mrb[0].mxu0
      %v2179 = vpop.f32.mrb[0].mxu0
      %v2180 = vadd.f32 %v1875, %v2179
      %v2181 = vpop.f32.mrb[0].mxu0
      %2182 = vmatprep.mubr.bf16.mxu0 %v661
      %2183 = vmatmul.mubr.bf16.gmra.mrb[0].mxu0 %v415
      %v2184 = vpop.f32.mrb[0].mxu0
      %v2185 = vadd.f32 %v1880, %v2184
      %v2186 = vpop.f32.mrb[0].mxu0
      %v2187 = vpop.f32.mrb[0].mxu0
      %v2188 = vadd.f32 %v1883, %v2187
      %v2189 = vpop.f32.mrb[0].mxu0
      %2190 = vmatprep.mubr.bf16.mxu0 %v673
      %2191 = vmatmul.mubr.bf16.gmra.mrb[0].mxu0 %v416
      %v2192 = vpop.f32.mrb[0].mxu0
      %v2193 = vadd.f32 %v1888, %v2192
      %v2194 = vpop.f32.mrb[0].mxu0
      %v2195 = vpop.f32.mrb[0].mxu0
      %v2196 = vadd.f32 %v1891, %v2195
      %v2197 = vpop.f32.mrb[0].mxu0
      %2198 = vdwg.mxu0
      %2199 = vmatprep.subr.bf16.mxu0 0
      %2200 = vmatpush1.bf16.msra.mxu0 %v2006
      %2201 = vmatprep.subr.bf16.mxu0 0
      %2202 = vmatpush1.bf16.msra.mxu0 %v2007
      %2203 = vmatprep.subr.bf16.mxu0 0
      %2204 = vmatpush1.bf16.msra.mxu0 %v2008
      %2205 = vmatprep.subr.bf16.mxu0 0
      %2206 = vmatpush1.bf16.msra.mxu0 %v2009
      %2207 = vmatprep.subr.bf16.mxu0 0
      %2208 = vmatpush1.bf16.msra.mxu0 %v2010
      %2209 = vmatprep.subr.bf16.mxu0 0
      %2210 = vmatpush1.bf16.msra.mxu0 %v2011
      %2211 = vmatprep.subr.bf16.mxu0 0
      %2212 = vmatpush1.bf16.msra.mxu0 %v2012
      %2213 = vmatprep.subr.bf16.mxu0 0
      %2214 = vmatpush1.bf16.msra.mxu0 %v2013
      %2215 = vmatprep.subr.bf16.mxu0 0
      %2216 = vmatpush1.bf16.msra.mxu0 0
      %2217 = vmatprep.subr.bf16.mxu0 0
      %2218 = vmatpush1.bf16.msra.mxu0 0
      %2219 = vmatprep.subr.bf16.mxu0 0
      %2220 = vmatpush1.bf16.msra.mxu0 0
      %2221 = vmatprep.subr.bf16.mxu0 0
      %2222 = vmatpush1.bf16.msra.mxu0 0
      %2223 = vmatprep.subr.bf16.mxu0 0
      %2224 = vmatpush1.bf16.msra.mxu0 0
      %2225 = vmatprep.subr.bf16.mxu0 0
      %2226 = vmatpush1.bf16.msra.mxu0 0
      %2227 = vmatprep.subr.bf16.mxu0 0
      %2228 = vmatpush1.bf16.msra.mxu0 0
      %2229 = vmatprep.subr.bf16.mxu0 0
      %2230 = vmatpush1.bf16.msra.mxu0 0
      %2231 = vmatprep.mubr.bf16.mxu0 0
      %2232 = vmatmul.mubr.bf16.gmra.mrb[0].mxu0 %v741
      %v2233 = vpop.f32.mrb[0].mxu0
      %v2234 = vadd.f32 %v2073, %v2233
      %v2235 = vpop.f32.mrb[0].mxu0
      %v2236 = vpop.f32.mrb[0].mxu0
      %v2237 = vadd.f32 %v2076, %v2236
      %v2238 = vpop.f32.mrb[0].mxu0
      %2239 = vmatprep.mubr.bf16.mxu0 0
      %2240 = vmatmul.mubr.bf16.gmra.mrb[0].mxu0 %v744
      %v2241 = vpop.f32.mrb[0].mxu0
      %v2242 = vadd.f32 %v2081, %v2241
      %v2243 = vpop.f32.mrb[0].mxu0
      %v2244 = vpop.f32.mrb[0].mxu0
      %v2245 = vadd.f32 %v2084, %v2244
      %v2246 = vpop.f32.mrb[0].mxu0
      %2247 = vmatprep.mubr.bf16.mxu0 0
      %2248 = vmatmul.mubr.bf16.gmra.mrb[0].mxu0 %v747
      %v2249 = vpop.f32.mrb[0].mxu0
      %v2250 = vadd.f32 %v2089, %v2249
      %v2251 = vpop.f32.mrb[0].mxu0
      %v2252 = vpop.f32.mrb[0].mxu0
      %v2253 = vadd.f32 %v2092, %v2252
      %v2254 = vpop.f32.mrb[0].mxu0
      %2255 = vmatprep.mubr.bf16.mxu0 0
      %2256 = vmatmul.mubr.bf16.gmra.mrb[0].mxu0 %v750
      %v2257 = vpop.f32.mrb[0].mxu0
      %v2258 = vadd.f32 %v2097, %v2257
      %v2259 = vpop.f32.mrb[0].mxu0
      %v2260 = vpop.f32.mrb[0].mxu0
      %v2261 = vadd.f32 %v2100, %v2260
      %v2262 = vpop.f32.mrb[0].mxu0
      %2263 = vmatprep.mubr.bf16.mxu0 0
      %2264 = vmatmul.mubr.bf16.gmra.mrb[0].mxu0 %v753
      %v2265 = vpop.f32.mrb[0].mxu0
      %v2266 = vadd.f32 %v2105, %v2265
      %v2267 = vpop.f32.mrb[0].mxu0
      %v2268 = vpop.f32.mrb[0].mxu0
      %v2269 = vadd.f32 %v2108, %v2268
      %v2270 = vpop.f32.mrb[0].mxu0
      %2271 = vmatprep.mubr.bf16.mxu0 0
      %2272 = vmatmul.mubr.bf16.gmra.mrb[0].mxu0 %v756
      %v2273 = vpop.f32.mrb[0].mxu0
      %v2274 = vadd.f32 %v2113, %v2273
      %v2275 = vpop.f32.mrb[0].mxu0
      %v2276 = vpop.f32.mrb[0].mxu0
      %v2277 = vadd.f32 %v2116, %v2276
      %v2278 = vpop.f32.mrb[0].mxu0
      %2279 = vmatprep.mubr.bf16.mxu0 0
      %2280 = vmatmul.mubr.bf16.gmra.mrb[0].mxu0 %v759
      %v2281 = vpop.f32.mrb[0].mxu0
      %v2282 = vadd.f32 %v2121, %v2281
      %v2283 = vpop.f32.mrb[0].mxu0
      %v2284 = vpop.f32.mrb[0].mxu0
      %v2285 = vadd.f32 %v2124, %v2284
      %v2286 = vpop.f32.mrb[0].mxu0
      %2287 = vmatprep.mubr.bf16.mxu0 0
      %2288 = vmatmul.mubr.bf16.gmra.mrb[0].mxu0 %v762
      %v2289 = vpop.f32.mrb[0].mxu0
      %v2290 = vadd.f32 %v2129, %v2289
      %v2291 = vpop.f32.mrb[0].mxu0
      %v2292 = vpop.f32.mrb[0].mxu0
      %v2293 = vadd.f32 %v2132, %v2292
      %v2294 = vpop.f32.mrb[0].mxu0
      %2295 = vmatprep.mubr.bf16.mxu0 0
      %2296 = vmatmul.mubr.bf16.gmra.mrb[0].mxu0 %v765
      %v2297 = vpop.f32.mrb[0].mxu0
      %v2298 = vadd.f32 %v2137, %v2297
      %v2299 = vpop.f32.mrb[0].mxu0
      %v2300 = vpop.f32.mrb[0].mxu0
      %v2301 = vadd.f32 %v2140, %v2300
      %v2302 = vpop.f32.mrb[0].mxu0
      %2303 = vmatprep.mubr.bf16.mxu0 0
      %2304 = vmatmul.mubr.bf16.gmra.mrb[0].mxu0 %v768
      %v2305 = vpop.f32.mrb[0].mxu0
      %v2306 = vadd.f32 %v2145, %v2305
      %v2307 = vpop.f32.mrb[0].mxu0
      %v2308 = vpop.f32.mrb[0].mxu0
      %v2309 = vadd.f32 %v2148, %v2308
      %v2310 = vpop.f32.mrb[0].mxu0
      %2311 = vmatprep.mubr.bf16.mxu0 0
      %2312 = vmatmul.mubr.bf16.gmra.mrb[0].mxu0 %v771
      %v2313 = vpop.f32.mrb[0].mxu0
      %v2314 = vadd.f32 %v2153, %v2313
      %v2315 = vpop.f32.mrb[0].mxu0
      %v2316 = vpop.f32.mrb[0].mxu0
      %v2317 = vadd.f32 %v2156, %v2316
      %v2318 = vpop.f32.mrb[0].mxu0
      %2319 = vmatprep.mubr.bf16.mxu0 0
      %2320 = vmatmul.mubr.bf16.gmra.mrb[0].mxu0 %v774
      %v2321 = vpop.f32.mrb[0].mxu0
      %v2322 = vadd.f32 %v2161, %v2321
      %v2323 = vpop.f32.mrb[0].mxu0
      %v2324 = vpop.f32.mrb[0].mxu0
      %v2325 = vadd.f32 %v2164, %v2324
      %v2326 = vpop.f32.mrb[0].mxu0
      %2327 = vmatprep.mubr.bf16.mxu0 0
      %2328 = vmatmul.mubr.bf16.gmra.mrb[0].mxu0 %v777
      %v2329 = vpop.f32.mrb[0].mxu0
      %v2330 = vadd.f32 %v2169, %v2329
      %v2331 = vpop.f32.mrb[0].mxu0
      %v2332 = vpop.f32.mrb[0].mxu0
      %v2333 = vadd.f32 %v2172, %v2332
      %v2334 = vpop.f32.mrb[0].mxu0
      %2335 = vmatprep.mubr.bf16.mxu0 0
      %2336 = vmatmul.mubr.bf16.gmra.mrb[0].mxu0 %v780
      %v2337 = vpop.f32.mrb[0].mxu0
      %v2338 = vadd.f32 %v2177, %v2337
      %v2339 = vpop.f32.mrb[0].mxu0
      %v2340 = vpop.f32.mrb[0].mxu0
      %v2341 = vadd.f32 %v2180, %v2340
      %v2342 = vpop.f32.mrb[0].mxu0
      %2343 = vmatprep.mubr.bf16.mxu0 0
      %2344 = vmatmul.mubr.bf16.gmra.mrb[0].mxu0 %v783
      %v2345 = vpop.f32.mrb[0].mxu0
      %v2346 = vadd.f32 %v2185, %v2345
      %v2347 = vpop.f32.mrb[0].mxu0
      %v2348 = vpop.f32.mrb[0].mxu0
      %v2349 = vadd.f32 %v2188, %v2348
      %v2350 = vpop.f32.mrb[0].mxu0
      %2351 = vmatprep.mubr.bf16.mxu0 0
      %2352 = vmatmul.mubr.bf16.gmra.mrb[0].mxu0 %v786
      %v2353 = vpop.f32.mrb[0].mxu0
      %v2354 = vadd.f32 %v2193, %v2353
      %v2355 = vpop.f32.mrb[0].mxu0
      %v2356 = vpop.f32.mrb[0].mxu0
      %v2357 = vadd.f32 %v2196, %v2356
      %v2358 = vpop.f32.mrb[0].mxu0
      %2359 = vdwg.mxu0
      %s2360 = scalar_lea.vmem %s247, 24
      %v2361 = vld [vmem:[%s2360] sm:$0xf]
      %v2362 = vld [vmem:[%s2360 + $0x4] sm:$0xf]
      %v2363 = vld [vmem:[%s2360 + $0xc] sm:$0xf]
      %v2364 = vld [vmem:[%s2360 + $0x10] sm:$0xf]
      %v2365 = vld [vmem:[%s2360 + $0x18] sm:$0xf]
      %v2366 = vld [vmem:[%s2360 + $0x1c] sm:$0xf]
      %v2367 = vld [vmem:[%s2360 + $0x24] sm:$0xf]
      %v2368 = vld [vmem:[%s2360 + $0x28] sm:$0xf]
      %v2369 = vld [vmem:[%s2360 + $0x30] sm:$0xf]
      %v2370 = vld [vmem:[%s2360 + $0x34] sm:$0xf]
      %v2371 = vld [vmem:[%s2360 + $0x3c] sm:$0xf]
      %v2372 = vld [vmem:[%s2360 + $0x40] sm:$0xf]
      %v2373 = vld [vmem:[%s2360 + $0x48] sm:$0xf]
      %v2374 = vld [vmem:[%s2360 + $0x4c] sm:$0xf]
      %v2375 = vld [vmem:[%s2360 + $0x54] sm:$0xf]
      %v2376 = vld [vmem:[%s2360 + $0x58] sm:$0xf]
      %v2377 = vld [vmem:[%s2360 + $0x60] sm:$0xf]
      %v2378 = vld [vmem:[%s2360 + $0x64] sm:$0xf]
      %v2379 = vld [vmem:[%s2360 + $0x6c] sm:$0xf]
      %v2380 = vld [vmem:[%s2360 + $0x70] sm:$0xf]
      %v2381 = vld [vmem:[%s2360 + $0x78] sm:$0xf]
      %v2382 = vld [vmem:[%s2360 + $0x7c] sm:$0xf]
      %v2383 = vld [vmem:[%s2360 + $0x84] sm:$0xf]
      %v2384 = vld [vmem:[%s2360 + $0x88] sm:$0xf]
      %v2385 = vld [vmem:[%s2360 + $0x90] sm:$0xf]
      %v2386 = vld [vmem:[%s2360 + $0x94] sm:$0xf]
      %v2387 = vld [vmem:[%s2360 + $0x9c] sm:$0xf]
      %v2388 = vld [vmem:[%s2360 + $0xa0] sm:$0xf]
      %v2389 = vld [vmem:[%s2360 + $0xa8] sm:$0xf]
      %v2390 = vld [vmem:[%s2360 + $0xac] sm:$0xf]
      %v2391 = vld [vmem:[%s2360 + $0xb4] sm:$0xf]
      %v2392 = vld [vmem:[%s2360 + $0xb8] sm:$0xf]
      %v2393 = vld [vmem:[%s2360 + $0x8] sm:$0x1]
      %v2394 = vld [vmem:[%s2360 + $0x14] sm:$0x1]
      %v2395 = vld [vmem:[%s2360 + $0x20] sm:$0x1]
      %v2396 = vld [vmem:[%s2360 + $0x2c] sm:$0x1]
      %v2397 = vld [vmem:[%s2360 + $0x38] sm:$0x1]
      %v2398 = vld [vmem:[%s2360 + $0x44] sm:$0x1]
      %v2399 = vld [vmem:[%s2360 + $0x50] sm:$0x1]
      %v2400 = vld [vmem:[%s2360 + $0x5c] sm:$0x1]
      %v2401 = vld [vmem:[%s2360 + $0x68] sm:$0x1]
      %v2402 = vld [vmem:[%s2360 + $0x74] sm:$0x1]
      %v2403 = vld [vmem:[%s2360 + $0x80] sm:$0x1]
      %v2404 = vld [vmem:[%s2360 + $0x8c] sm:$0x1]
      %v2405 = vld [vmem:[%s2360 + $0x98] sm:$0x1]
      %v2406 = vld [vmem:[%s2360 + $0xa4] sm:$0x1]
      %v2407 = vld [vmem:[%s2360 + $0xb0] sm:$0x1]
      %v2408 = vld [vmem:[%s2360 + $0xbc] sm:$0x1]
      %v2409 = vld [vmem:[%s2360] sm:$0xe]
      %v2410 = vld [vmem:[%s2360 + $0xc] sm:$0xe]
      %v2411 = vld [vmem:[%s2360 + $0x18] sm:$0xe]
      %v2412 = vld [vmem:[%s2360 + $0x24] sm:$0xe]
      %v2413 = vld [vmem:[%s2360 + $0x30] sm:$0xe]
      %v2414 = vld [vmem:[%s2360 + $0x3c] sm:$0xe]
      %v2415 = vld [vmem:[%s2360 + $0x48] sm:$0xe]
      %v2416 = vld [vmem:[%s2360 + $0x54] sm:$0xe]
      %v2417 = vld [vmem:[%s2360 + $0x60] sm:$0xe]
      %v2418 = vld [vmem:[%s2360 + $0x6c] sm:$0xe]
      %v2419 = vld [vmem:[%s2360 + $0x78] sm:$0xe]
      %v2420 = vld [vmem:[%s2360 + $0x84] sm:$0xe]
      %v2421 = vld [vmem:[%s2360 + $0x90] sm:$0xe]
      %v2422 = vld [vmem:[%s2360 + $0x9c] sm:$0xe]
      %v2423 = vld [vmem:[%s2360 + $0xa8] sm:$0xe]
      %v2424 = vld [vmem:[%s2360 + $0xb4] sm:$0xe]
      %v2457 = vunpack.c.l.b16 %v2361
      %v2458 = vunpack.c.l.b16 %v2362
      %v2459 = vunpack.c.l.b16 %v2363
      %v2460 = vunpack.c.l.b16 %v2364
      %v2461 = vunpack.c.l.b16 %v2365
      %v2462 = vunpack.c.l.b16 %v2366
      %v2463 = vunpack.c.l.b16 %v2367
      %v2464 = vunpack.c.l.b16 %v2368
      %v2465 = vunpack.c.l.b16 %v2369
      %v2466 = vunpack.c.l.b16 %v2370
      %v2467 = vunpack.c.l.b16 %v2371
      %v2468 = vunpack.c.l.b16 %v2372
      %v2469 = vunpack.c.l.b16 %v2373
      %v2470 = vunpack.c.l.b16 %v2374
      %v2471 = vunpack.c.l.b16 %v2375
      %v2472 = vunpack.c.l.b16 %v2376
      %v2473 = vunpack.c.l.b16 %v2377
      %v2474 = vunpack.c.l.b16 %v2378
      %v2475 = vunpack.c.l.b16 %v2379
      %v2476 = vunpack.c.l.b16 %v2380
      %v2477 = vunpack.c.l.b16 %v2381
      %v2478 = vunpack.c.l.b16 %v2382
      %v2479 = vunpack.c.l.b16 %v2383
      %v2480 = vunpack.c.l.b16 %v2384
      %v2481 = vunpack.c.l.b16 %v2385
      %v2482 = vunpack.c.l.b16 %v2386
      %v2483 = vunpack.c.l.b16 %v2387
      %v2484 = vunpack.c.l.b16 %v2388
      %v2485 = vunpack.c.l.b16 %v2389
      %v2486 = vunpack.c.l.b16 %v2390
      %v2487 = vunpack.c.l.b16 %v2391
      %v2488 = vunpack.c.l.b16 %v2392
      %v2489 = vpack.c.b16 %v2458, %v2457
      %v2490 = vpack.c.b16 %v2460, %v2459
      %v2491 = vpack.c.b16 %v2462, %v2461
      %v2492 = vpack.c.b16 %v2464, %v2463
      %v2493 = vpack.c.b16 %v2466, %v2465
      %v2494 = vpack.c.b16 %v2468, %v2467
      %v2495 = vpack.c.b16 %v2470, %v2469
      %v2496 = vpack.c.b16 %v2472, %v2471
      %v2497 = vpack.c.b16 %v2474, %v2473
      %v2498 = vpack.c.b16 %v2476, %v2475
      %v2499 = vpack.c.b16 %v2478, %v2477
      %v2500 = vpack.c.b16 %v2480, %v2479
      %v2501 = vpack.c.b16 %v2482, %v2481
      %v2502 = vpack.c.b16 %v2484, %v2483
      %v2503 = vpack.c.b16 %v2486, %v2485
      %v2504 = vpack.c.b16 %v2488, %v2487
      %v2537 = vunpack.c.l.b16 %v2393
      %v2538 = vunpack.c.l.b16 %v2394
      %v2539 = vunpack.c.l.b16 %v2395
      %v2540 = vunpack.c.l.b16 %v2396
      %v2541 = vunpack.c.l.b16 %v2397
      %v2542 = vunpack.c.l.b16 %v2398
      %v2543 = vunpack.c.l.b16 %v2399
      %v2544 = vunpack.c.l.b16 %v2400
      %v2545 = vunpack.c.l.b16 %v2401
      %v2546 = vunpack.c.l.b16 %v2402
      %v2547 = vunpack.c.l.b16 %v2403
      %v2548 = vunpack.c.l.b16 %v2404
      %v2549 = vunpack.c.l.b16 %v2405
      %v2550 = vunpack.c.l.b16 %v2406
      %v2551 = vunpack.c.l.b16 %v2407
      %v2552 = vunpack.c.l.b16 %v2408
      %v2553 = vpack.c.b16 %v2537, %v2537
      %v2554 = vpack.c.b16 %v2538, %v2538
      %v2555 = vpack.c.b16 %v2539, %v2539
      %v2556 = vpack.c.b16 %v2540, %v2540
      %v2557 = vpack.c.b16 %v2541, %v2541
      %v2558 = vpack.c.b16 %v2542, %v2542
      %v2559 = vpack.c.b16 %v2543, %v2543
      %v2560 = vpack.c.b16 %v2544, %v2544
      %v2561 = vpack.c.b16 %v2545, %v2545
      %v2562 = vpack.c.b16 %v2546, %v2546
      %v2563 = vpack.c.b16 %v2547, %v2547
      %v2564 = vpack.c.b16 %v2548, %v2548
      %v2565 = vpack.c.b16 %v2549, %v2549
      %v2566 = vpack.c.b16 %v2550, %v2550
      %v2567 = vpack.c.b16 %v2551, %v2551
      %v2568 = vpack.c.b16 %v2552, %v2552
      %v2570 = vshrl.u32 %v2489, 16
      %v2572 = vshll.u32 %v2489, 16
      %v2574 = vrot.slane %v2572, 1
      %v2575 = vor.u32 %v2570, %v2574
      %v2577 = vshll.u32 %v2553, 16
      %v2579 = vrot.slane %v2577, 1
      %v2580 = vsel %vm481, %v2575, %v2579
      %v2582 = vshrl.u32 %v2490, 16
      %v2584 = vshll.u32 %v2490, 16
      %v2586 = vrot.slane %v2584, 1
      %v2587 = vor.u32 %v2582, %v2586
      %v2589 = vshll.u32 %v2554, 16
      %v2591 = vrot.slane %v2589, 1
      %v2592 = vsel %vm481, %v2587, %v2591
      %v2594 = vshrl.u32 %v2491, 16
      %v2596 = vshll.u32 %v2491, 16
      %v2598 = vrot.slane %v2596, 1
      %v2599 = vor.u32 %v2594, %v2598
      %v2601 = vshll.u32 %v2555, 16
      %v2603 = vrot.slane %v2601, 1
      %v2604 = vsel %vm481, %v2599, %v2603
      %v2606 = vshrl.u32 %v2492, 16
      %v2608 = vshll.u32 %v2492, 16
      %v2610 = vrot.slane %v2608, 1
      %v2611 = vor.u32 %v2606, %v2610
      %v2613 = vshll.u32 %v2556, 16
      %v2615 = vrot.slane %v2613, 1
      %v2616 = vsel %vm481, %v2611, %v2615
      %v2618 = vshrl.u32 %v2493, 16
      %v2620 = vshll.u32 %v2493, 16
      %v2622 = vrot.slane %v2620, 1
      %v2623 = vor.u32 %v2618, %v2622
      %v2625 = vshll.u32 %v2557, 16
      %v2627 = vrot.slane %v2625, 1
      %v2628 = vsel %vm481, %v2623, %v2627
      %v2630 = vshrl.u32 %v2494, 16
      %v2632 = vshll.u32 %v2494, 16
      %v2634 = vrot.slane %v2632, 1
      %v2635 = vor.u32 %v2630, %v2634
      %v2637 = vshll.u32 %v2558, 16
      %v2639 = vrot.slane %v2637, 1
      %v2640 = vsel %vm481, %v2635, %v2639
      %v2642 = vshrl.u32 %v2495, 16
      %v2644 = vshll.u32 %v2495, 16
      %v2646 = vrot.slane %v2644, 1
      %v2647 = vor.u32 %v2642, %v2646
      %v2649 = vshll.u32 %v2559, 16
      %v2651 = vrot.slane %v2649, 1
      %v2652 = vsel %vm481, %v2647, %v2651
      %v2654 = vshrl.u32 %v2496, 16
      %v2656 = vshll.u32 %v2496, 16
      %v2658 = vrot.slane %v2656, 1
      %v2659 = vor.u32 %v2654, %v2658
      %v2661 = vshll.u32 %v2560, 16
      %v2663 = vrot.slane %v2661, 1
      %v2664 = vsel %vm481, %v2659, %v2663
      %v2666 = vshrl.u32 %v2497, 16
      %v2668 = vshll.u32 %v2497, 16
      %v2670 = vrot.slane %v2668, 1
      %v2671 = vor.u32 %v2666, %v2670
      %v2673 = vshll.u32 %v2561, 16
      %v2675 = vrot.slane %v2673, 1
      %v2676 = vsel %vm481, %v2671, %v2675
      %v2678 = vshrl.u32 %v2498, 16
      %v2680 = vshll.u32 %v2498, 16
      %v2682 = vrot.slane %v2680, 1
      %v2683 = vor.u32 %v2678, %v2682
      %v2685 = vshll.u32 %v2562, 16
      %v2687 = vrot.slane %v2685, 1
      %v2688 = vsel %vm481, %v2683, %v2687
      %v2690 = vshrl.u32 %v2499, 16
      %v2692 = vshll.u32 %v2499, 16
      %v2694 = vrot.slane %v2692, 1
      %v2695 = vor.u32 %v2690, %v2694
      %v2697 = vshll.u32 %v2563, 16
      %v2699 = vrot.slane %v2697, 1
      %v2700 = vsel %vm481, %v2695, %v2699
      %v2702 = vshrl.u32 %v2500, 16
      %v2704 = vshll.u32 %v2500, 16
      %v2706 = vrot.slane %v2704, 1
      %v2707 = vor.u32 %v2702, %v2706
      %v2709 = vshll.u32 %v2564, 16
      %v2711 = vrot.slane %v2709, 1
      %v2712 = vsel %vm481, %v2707, %v2711
      %v2714 = vshrl.u32 %v2501, 16
      %v2716 = vshll.u32 %v2501, 16
      %v2718 = vrot.slane %v2716, 1
      %v2719 = vor.u32 %v2714, %v2718
      %v2721 = vshll.u32 %v2565, 16
      %v2723 = vrot.slane %v2721, 1
      %v2724 = vsel %vm481, %v2719, %v2723
      %v2726 = vshrl.u32 %v2502, 16
      %v2728 = vshll.u32 %v2502, 16
      %v2730 = vrot.slane %v2728, 1
      %v2731 = vor.u32 %v2726, %v2730
      %v2733 = vshll.u32 %v2566, 16
      %v2735 = vrot.slane %v2733, 1
      %v2736 = vsel %vm481, %v2731, %v2735
      %v2738 = vshrl.u32 %v2503, 16
      %v2740 = vshll.u32 %v2503, 16
      %v2742 = vrot.slane %v2740, 1
      %v2743 = vor.u32 %v2738, %v2742
      %v2745 = vshll.u32 %v2567, 16
      %v2747 = vrot.slane %v2745, 1
      %v2748 = vsel %vm481, %v2743, %v2747
      %v2750 = vshrl.u32 %v2504, 16
      %v2752 = vshll.u32 %v2504, 16
      %v2754 = vrot.slane %v2752, 1
      %v2755 = vor.u32 %v2750, %v2754
      %v2757 = vshll.u32 %v2568, 16
      %v2759 = vrot.slane %v2757, 1
      %v2760 = vsel %vm481, %v2755, %v2759
      %v2793 = vunpack.c.l.b16 %v2409
      %v2794 = vunpack.c.l.b16 %v2410
      %v2795 = vunpack.c.l.b16 %v2411
      %v2796 = vunpack.c.l.b16 %v2412
      %v2797 = vunpack.c.l.b16 %v2413
      %v2798 = vunpack.c.l.b16 %v2414
      %v2799 = vunpack.c.l.b16 %v2415
      %v2800 = vunpack.c.l.b16 %v2416
      %v2801 = vunpack.c.l.b16 %v2417
      %v2802 = vunpack.c.l.b16 %v2418
      %v2803 = vunpack.c.l.b16 %v2419
      %v2804 = vunpack.c.l.b16 %v2420
      %v2805 = vunpack.c.l.b16 %v2421
      %v2806 = vunpack.c.l.b16 %v2422
      %v2807 = vunpack.c.l.b16 %v2423
      %v2808 = vunpack.c.l.b16 %v2424
      %v2809 = vpack.c.b16 %v2458, %v2793
      %v2810 = vpack.c.b16 %v2460, %v2794
      %v2811 = vpack.c.b16 %v2462, %v2795
      %v2812 = vpack.c.b16 %v2464, %v2796
      %v2813 = vpack.c.b16 %v2466, %v2797
      %v2814 = vpack.c.b16 %v2468, %v2798
      %v2815 = vpack.c.b16 %v2470, %v2799
      %v2816 = vpack.c.b16 %v2472, %v2800
      %v2817 = vpack.c.b16 %v2474, %v2801
      %v2818 = vpack.c.b16 %v2476, %v2802
      %v2819 = vpack.c.b16 %v2478, %v2803
      %v2820 = vpack.c.b16 %v2480, %v2804
      %v2821 = vpack.c.b16 %v2482, %v2805
      %v2822 = vpack.c.b16 %v2484, %v2806
      %v2823 = vpack.c.b16 %v2486, %v2807
      %v2824 = vpack.c.b16 %v2488, %v2808
      %v2825 = vrot.slane %v2809, 1
      %v2826 = vrot.slane %v2553, 1
      %v2827 = vsel %vm738, %v2825, %v2826
      %v2828 = vrot.slane %v2810, 1
      %v2829 = vrot.slane %v2554, 1
      %v2830 = vsel %vm738, %v2828, %v2829
      %v2831 = vrot.slane %v2811, 1
      %v2832 = vrot.slane %v2555, 1
      %v2833 = vsel %vm738, %v2831, %v2832
      %v2834 = vrot.slane %v2812, 1
      %v2835 = vrot.slane %v2556, 1
      %v2836 = vsel %vm738, %v2834, %v2835
      %v2837 = vrot.slane %v2813, 1
      %v2838 = vrot.slane %v2557, 1
      %v2839 = vsel %vm738, %v2837, %v2838
      %v2840 = vrot.slane %v2814, 1
      %v2841 = vrot.slane %v2558, 1
      %v2842 = vsel %vm738, %v2840, %v2841
      %v2843 = vrot.slane %v2815, 1
      %v2844 = vrot.slane %v2559, 1
      %v2845 = vsel %vm738, %v2843, %v2844
      %v2846 = vrot.slane %v2816, 1
      %v2847 = vrot.slane %v2560, 1
      %v2848 = vsel %vm738, %v2846, %v2847
      %v2849 = vrot.slane %v2817, 1
      %v2850 = vrot.slane %v2561, 1
      %v2851 = vsel %vm738, %v2849, %v2850
      %v2852 = vrot.slane %v2818, 1
      %v2853 = vrot.slane %v2562, 1
      %v2854 = vsel %vm738, %v2852, %v2853
      %v2855 = vrot.slane %v2819, 1
      %v2856 = vrot.slane %v2563, 1
      %v2857 = vsel %vm738, %v2855, %v2856
      %v2858 = vrot.slane %v2820, 1
      %v2859 = vrot.slane %v2564, 1
      %v2860 = vsel %vm738, %v2858, %v2859
      %v2861 = vrot.slane %v2821, 1
      %v2862 = vrot.slane %v2565, 1
      %v2863 = vsel %vm738, %v2861, %v2862
      %v2864 = vrot.slane %v2822, 1
      %v2865 = vrot.slane %v2566, 1
      %v2866 = vsel %vm738, %v2864, %v2865
      %v2867 = vrot.slane %v2823, 1
      %v2868 = vrot.slane %v2567, 1
      %v2869 = vsel %vm738, %v2867, %v2868
      %v2870 = vrot.slane %v2824, 1
      %v2871 = vrot.slane %v2568, 1
      %v2872 = vsel %vm738, %v2870, %v2871
      %v2889 = vld [vmem:[%s1 + $0x180] sm:$0xf]
      %v2890 = vld [vmem:[%s1 + $0x184] sm:$0xf]
      %v2891 = vld [vmem:[%s1 + $0x188] sm:$0xf]
      %v2892 = vld [vmem:[%s1 + $0x18c] sm:$0xf]
      %v2893 = vld [vmem:[%s1 + $0x190] sm:$0xf]
      %v2894 = vld [vmem:[%s1 + $0x194] sm:$0xf]
      %v2895 = vld [vmem:[%s1 + $0x198] sm:$0xf]
      %v2896 = vld [vmem:[%s1 + $0x19c] sm:$0xf]
      %v2897 = vld [vmem:[%s1 + $0x1a0] sm:$0xf]
      %v2898 = vld [vmem:[%s1 + $0x1a4] sm:$0xf]
      %v2899 = vld [vmem:[%s1 + $0x1a8] sm:$0xf]
      %v2900 = vld [vmem:[%s1 + $0x1ac] sm:$0xf]
      %v2901 = vld [vmem:[%s1 + $0x1b0] sm:$0xf]
      %v2902 = vld [vmem:[%s1 + $0x1b4] sm:$0xf]
      %v2903 = vld [vmem:[%s1 + $0x1b8] sm:$0xf]
      %v2904 = vld [vmem:[%s1 + $0x1bc] sm:$0xf]
      %v2905 = vld [vmem:[%s1 + $0x1c0] sm:$0xf]
      %v2906 = vld [vmem:[%s1 + $0x1c4] sm:$0xf]
      %v2907 = vld [vmem:[%s1 + $0x1c8] sm:$0xf]
      %v2908 = vld [vmem:[%s1 + $0x1cc] sm:$0xf]
      %v2909 = vld [vmem:[%s1 + $0x1d0] sm:$0xf]
      %v2910 = vld [vmem:[%s1 + $0x1d4] sm:$0xf]
      %v2911 = vld [vmem:[%s1 + $0x1d8] sm:$0xf]
      %v2912 = vld [vmem:[%s1 + $0x1dc] sm:$0xf]
      %v2913 = vld [vmem:[%s1 + $0x1e0] sm:$0xf]
      %v2914 = vld [vmem:[%s1 + $0x1e4] sm:$0xf]
      %v2915 = vld [vmem:[%s1 + $0x1e8] sm:$0xf]
      %v2916 = vld [vmem:[%s1 + $0x1ec] sm:$0xf]
      %v2917 = vld [vmem:[%s1 + $0x1f0] sm:$0xf]
      %v2918 = vld [vmem:[%s1 + $0x1f4] sm:$0xf]
      %v2919 = vld [vmem:[%s1 + $0x1f8] sm:$0xf]
      %v2920 = vld [vmem:[%s1 + $0x1fc] sm:$0xf]
      %v2921 = vld [vmem:[%s1 + $0x200] sm:$0xf]
      %v2922 = vld [vmem:[%s1 + $0x204] sm:$0xf]
      %v2923 = vld [vmem:[%s1 + $0x208] sm:$0xf]
      %v2924 = vld [vmem:[%s1 + $0x20c] sm:$0xf]
      %v2925 = vld [vmem:[%s1 + $0x210] sm:$0xf]
      %v2926 = vld [vmem:[%s1 + $0x214] sm:$0xf]
      %v2927 = vld [vmem:[%s1 + $0x218] sm:$0xf]
      %v2928 = vld [vmem:[%s1 + $0x21c] sm:$0xf]
      %v2929 = vld [vmem:[%s1 + $0x220] sm:$0xf]
      %v2930 = vld [vmem:[%s1 + $0x224] sm:$0xf]
      %v2931 = vld [vmem:[%s1 + $0x228] sm:$0xf]
      %v2932 = vld [vmem:[%s1 + $0x22c] sm:$0xf]
      %v2933 = vld [vmem:[%s1 + $0x230] sm:$0xf]
      %v2934 = vld [vmem:[%s1 + $0x234] sm:$0xf]
      %v2935 = vld [vmem:[%s1 + $0x238] sm:$0xf]
      %v2936 = vld [vmem:[%s1 + $0x23c] sm:$0xf]
      %v2985 = vunpack.c.l.b16 %v2889
      %v2986 = vunpack.c.l.b16 %v2890
      %v2987 = vunpack.c.l.b16 %v2891
      %v2988 = vunpack.c.l.b16 %v2892
      %v2989 = vunpack.c.l.b16 %v2893
      %v2990 = vunpack.c.l.b16 %v2894
      %v2991 = vunpack.c.l.b16 %v2895
      %v2992 = vunpack.c.l.b16 %v2896
      %v2993 = vunpack.c.l.b16 %v2897
      %v2994 = vunpack.c.l.b16 %v2898
      %v2995 = vunpack.c.l.b16 %v2899
      %v2996 = vunpack.c.l.b16 %v2900
      %v2997 = vunpack.c.l.b16 %v2901
      %v2998 = vunpack.c.l.b16 %v2902
      %v2999 = vunpack.c.l.b16 %v2903
      %v3000 = vunpack.c.l.b16 %v2904
      %v3001 = vunpack.c.l.b16 %v2905
      %v3002 = vunpack.c.l.b16 %v2906
      %v3003 = vunpack.c.l.b16 %v2907
      %v3004 = vunpack.c.l.b16 %v2908
      %v3005 = vunpack.c.l.b16 %v2909
      %v3006 = vunpack.c.l.b16 %v2910
      %v3007 = vunpack.c.l.b16 %v2911
      %v3008 = vunpack.c.l.b16 %v2912
      %v3009 = vunpack.c.l.b16 %v2913
      %v3010 = vunpack.c.l.b16 %v2914
      %v3011 = vunpack.c.l.b16 %v2915
      %v3012 = vunpack.c.l.b16 %v2916
      %v3013 = vunpack.c.l.b16 %v2917
      %v3014 = vunpack.c.l.b16 %v2918
      %v3015 = vunpack.c.l.b16 %v2919
      %v3016 = vunpack.c.l.b16 %v2920
      %v3017 = vunpack.c.l.b16 %v2921
      %v3018 = vunpack.c.l.b16 %v2922
      %v3019 = vunpack.c.l.b16 %v2923
      %v3020 = vunpack.c.l.b16 %v2924
      %v3021 = vunpack.c.l.b16 %v2925
      %v3022 = vunpack.c.l.b16 %v2926
      %v3023 = vunpack.c.l.b16 %v2927
      %v3024 = vunpack.c.l.b16 %v2928
      %v3025 = vunpack.c.l.b16 %v2929
      %v3026 = vunpack.c.l.b16 %v2930
      %v3027 = vunpack.c.l.b16 %v2931
      %v3028 = vunpack.c.l.b16 %v2932
      %v3029 = vunpack.c.l.b16 %v2933
      %v3030 = vunpack.c.l.b16 %v2934
      %v3031 = vunpack.c.l.b16 %v2935
      %v3032 = vunpack.c.l.b16 %v2936
      %v3033 = vpack.c.b16 %v2986, %v2985
      %v3034 = vpack.c.b16 %v2988, %v2987
      %v3035 = vpack.c.b16 %v2990, %v2989
      %v3036 = vpack.c.b16 %v2992, %v2991
      %v3037 = vpack.c.b16 %v2994, %v2993
      %v3038 = vpack.c.b16 %v2996, %v2995
      %v3039 = vpack.c.b16 %v2998, %v2997
      %v3040 = vpack.c.b16 %v3000, %v2999
      %v3041 = vpack.c.b16 %v3002, %v3001
      %v3042 = vpack.c.b16 %v3004, %v3003
      %v3043 = vpack.c.b16 %v3006, %v3005
      %v3044 = vpack.c.b16 %v3008, %v3007
      %v3045 = vpack.c.b16 %v3010, %v3009
      %v3046 = vpack.c.b16 %v3012, %v3011
      %v3047 = vpack.c.b16 %v3014, %v3013
      %v3048 = vpack.c.b16 %v3016, %v3015
      %v3049 = vpack.c.b16 %v3018, %v3017
      %v3050 = vpack.c.b16 %v3020, %v3019
      %v3051 = vpack.c.b16 %v3022, %v3021
      %v3052 = vpack.c.b16 %v3024, %v3023
      %v3053 = vpack.c.b16 %v3026, %v3025
      %v3054 = vpack.c.b16 %v3028, %v3027
      %v3055 = vpack.c.b16 %v3030, %v3029
      %v3056 = vpack.c.b16 %v3032, %v3031
      %3081 = vmatprep.subr.bf16.mxu0 0
      %3082 = vmatpush1.bf16.msra.mxu0 %v3033
      %3083 = vmatprep.subr.bf16.mxu0 0
      %3084 = vmatpush1.bf16.msra.mxu0 %v3034
      %3085 = vmatprep.subr.bf16.mxu0 0
      %3086 = vmatpush1.bf16.msra.mxu0 %v3035
      %3087 = vmatprep.subr.bf16.mxu0 0
      %3088 = vmatpush1.bf16.msra.mxu0 %v3036
      %3089 = vmatprep.subr.bf16.mxu0 0
      %3090 = vmatpush1.bf16.msra.mxu0 %v3037
      %3091 = vmatprep.subr.bf16.mxu0 0
      %3092 = vmatpush1.bf16.msra.mxu0 %v3038
      %3093 = vmatprep.subr.bf16.mxu0 0
      %3094 = vmatpush1.bf16.msra.mxu0 %v3039
      %3095 = vmatprep.subr.bf16.mxu0 0
      %3096 = vmatpush1.bf16.msra.mxu0 %v3040
      %3097 = vmatprep.subr.bf16.mxu0 0
      %3098 = vmatpush1.bf16.msra.mxu0 %v3041
      %3099 = vmatprep.subr.bf16.mxu0 0
      %3100 = vmatpush1.bf16.msra.mxu0 %v3042
      %3101 = vmatprep.subr.bf16.mxu0 0
      %3102 = vmatpush1.bf16.msra.mxu0 %v3043
      %3103 = vmatprep.subr.bf16.mxu0 0
      %3104 = vmatpush1.bf16.msra.mxu0 %v3044
      %3105 = vmatprep.subr.bf16.mxu0 0
      %3106 = vmatpush1.bf16.msra.mxu0 %v3045
      %3107 = vmatprep.subr.bf16.mxu0 0
      %3108 = vmatpush1.bf16.msra.mxu0 %v3046
      %3109 = vmatprep.subr.bf16.mxu0 0
      %3110 = vmatpush1.bf16.msra.mxu0 %v3047
      %3111 = vmatprep.subr.bf16.mxu0 0
      %3112 = vmatpush1.bf16.msra.mxu0 %v3048
      %3113 = vmatprep.mubr.bf16.mxu0 %v2580
      %3114 = vmatmul.mubr.bf16.gmra.mrb[0].mxu0 %v2489
      %v3115 = vpop.f32.mrb[0].mxu0
      %v3116 = vadd.f32 0.0, %v3115
      %v3117 = vpop.f32.mrb[0].mxu0
      %v3118 = vpop.f32.mrb[0].mxu0
      %v3119 = vadd.f32 0.0, %v3118
      %v3120 = vpop.f32.mrb[0].mxu0
      %3121 = vmatprep.mubr.bf16.mxu0 %v2592
      %3122 = vmatmul.mubr.bf16.gmra.mrb[0].mxu0 %v2490
      %v3123 = vpop.f32.mrb[0].mxu0
      %v3124 = vadd.f32 0.0, %v3123
      %v3125 = vpop.f32.mrb[0].mxu0
      %v3126 = vpop.f32.mrb[0].mxu0
      %v3127 = vadd.f32 0.0, %v3126
      %v3128 = vpop.f32.mrb[0].mxu0
      %3129 = vmatprep.mubr.bf16.mxu0 %v2604
      %3130 = vmatmul.mubr.bf16.gmra.mrb[0].mxu0 %v2491
      %v3131 = vpop.f32.mrb[0].mxu0
      %v3132 = vadd.f32 0.0, %v3131
      %v3133 = vpop.f32.mrb[0].mxu0
      %v3134 = vpop.f32.mrb[0].mxu0
      %v3135 = vadd.f32 0.0, %v3134
      %v3136 = vpop.f32.mrb[0].mxu0
      %3137 = vmatprep.mubr.bf16.mxu0 %v2616
      %3138 = vmatmul.mubr.bf16.gmra.mrb[0].mxu0 %v2492
      %v3139 = vpop.f32.mrb[0].mxu0
      %v3140 = vadd.f32 0.0, %v3139
      %v3141 = vpop.f32.mrb[0].mxu0
      %v3142 = vpop.f32.mrb[0].mxu0
      %v3143 = vadd.f32 0.0, %v3142
      %v3144 = vpop.f32.mrb[0].mxu0
      %3145 = vmatprep.mubr.bf16.mxu0 %v2628
      %3146 = vmatmul.mubr.bf16.gmra.mrb[0].mxu0 %v2493
      %v3147 = vpop.f32.mrb[0].mxu0
      %v3148 = vadd.f32 0.0, %v3147
      %v3149 = vpop.f32.mrb[0].mxu0
      %v3150 = vpop.f32.mrb[0].mxu0
      %v3151 = vadd.f32 0.0, %v3150
      %v3152 = vpop.f32.mrb[0].mxu0
      %3153 = vmatprep.mubr.bf16.mxu0 %v2640
      %3154 = vmatmul.mubr.bf16.gmra.mrb[0].mxu0 %v2494
      %v3155 = vpop.f32.mrb[0].mxu0
      %v3156 = vadd.f32 0.0, %v3155
      %v3157 = vpop.f32.mrb[0].mxu0
      %v3158 = vpop.f32.mrb[0].mxu0
      %v3159 = vadd.f32 0.0, %v3158
      %v3160 = vpop.f32.mrb[0].mxu0
      %3161 = vmatprep.mubr.bf16.mxu0 %v2652
      %3162 = vmatmul.mubr.bf16.gmra.mrb[0].mxu0 %v2495
      %v3163 = vpop.f32.mrb[0].mxu0
      %v3164 = vadd.f32 0.0, %v3163
      %v3165 = vpop.f32.mrb[0].mxu0
      %v3166 = vpop.f32.mrb[0].mxu0
      %v3167 = vadd.f32 0.0, %v3166
      %v3168 = vpop.f32.mrb[0].mxu0
      %3169 = vmatprep.mubr.bf16.mxu0 %v2664
      %3170 = vmatmul.mubr.bf16.gmra.mrb[0].mxu0 %v2496
      %v3171 = vpop.f32.mrb[0].mxu0
      %v3172 = vadd.f32 0.0, %v3171
      %v3173 = vpop.f32.mrb[0].mxu0
      %v3174 = vpop.f32.mrb[0].mxu0
      %v3175 = vadd.f32 0.0, %v3174
      %v3176 = vpop.f32.mrb[0].mxu0
      %3177 = vmatprep.mubr.bf16.mxu0 %v2676
      %3178 = vmatmul.mubr.bf16.gmra.mrb[0].mxu0 %v2497
      %v3179 = vpop.f32.mrb[0].mxu0
      %v3180 = vadd.f32 0.0, %v3179
      %v3181 = vpop.f32.mrb[0].mxu0
      %v3182 = vpop.f32.mrb[0].mxu0
      %v3183 = vadd.f32 0.0, %v3182
      %v3184 = vpop.f32.mrb[0].mxu0
      %3185 = vmatprep.mubr.bf16.mxu0 %v2688
      %3186 = vmatmul.mubr.bf16.gmra.mrb[0].mxu0 %v2498
      %v3187 = vpop.f32.mrb[0].mxu0
      %v3188 = vadd.f32 0.0, %v3187
      %v3189 = vpop.f32.mrb[0].mxu0
      %v3190 = vpop.f32.mrb[0].mxu0
      %v3191 = vadd.f32 0.0, %v3190
      %v3192 = vpop.f32.mrb[0].mxu0
      %3193 = vmatprep.mubr.bf16.mxu0 %v2700
      %3194 = vmatmul.mubr.bf16.gmra.mrb[0].mxu0 %v2499
      %v3195 = vpop.f32.mrb[0].mxu0
      %v3196 = vadd.f32 0.0, %v3195
      %v3197 = vpop.f32.mrb[0].mxu0
      %v3198 = vpop.f32.mrb[0].mxu0
      %v3199 = vadd.f32 0.0, %v3198
      %v3200 = vpop.f32.mrb[0].mxu0
      %3201 = vmatprep.mubr.bf16.mxu0 %v2712
      %3202 = vmatmul.mubr.bf16.gmra.mrb[0].mxu0 %v2500
      %v3203 = vpop.f32.mrb[0].mxu0
      %v3204 = vadd.f32 0.0, %v3203
      %v3205 = vpop.f32.mrb[0].mxu0
      %v3206 = vpop.f32.mrb[0].mxu0
      %v3207 = vadd.f32 0.0, %v3206
      %v3208 = vpop.f32.mrb[0].mxu0
      %3209 = vmatprep.mubr.bf16.mxu0 %v2724
      %3210 = vmatmul.mubr.bf16.gmra.mrb[0].mxu0 %v2501
      %v3211 = vpop.f32.mrb[0].mxu0
      %v3212 = vadd.f32 0.0, %v3211
      %v3213 = vpop.f32.mrb[0].mxu0
      %v3214 = vpop.f32.mrb[0].mxu0
      %v3215 = vadd.f32 0.0, %v3214
      %v3216 = vpop.f32.mrb[0].mxu0
      %3217 = vmatprep.mubr.bf16.mxu0 %v2736
      %3218 = vmatmul.mubr.bf16.gmra.mrb[0].mxu0 %v2502
      %v3219 = vpop.f32.mrb[0].mxu0
      %v3220 = vadd.f32 0.0, %v3219
      %v3221 = vpop.f32.mrb[0].mxu0
      %v3222 = vpop.f32.mrb[0].mxu0
      %v3223 = vadd.f32 0.0, %v3222
      %v3224 = vpop.f32.mrb[0].mxu0
      %3225 = vmatprep.mubr.bf16.mxu0 %v2748
      %3226 = vmatmul.mubr.bf16.gmra.mrb[0].mxu0 %v2503
      %v3227 = vpop.f32.mrb[0].mxu0
      %v3228 = vadd.f32 0.0, %v3227
      %v3229 = vpop.f32.mrb[0].mxu0
      %v3230 = vpop.f32.mrb[0].mxu0
      %v3231 = vadd.f32 0.0, %v3230
      %v3232 = vpop.f32.mrb[0].mxu0
      %3233 = vmatprep.mubr.bf16.mxu0 %v2760
      %3234 = vmatmul.mubr.bf16.gmra.mrb[0].mxu0 %v2504
      %v3235 = vpop.f32.mrb[0].mxu0
      %v3236 = vadd.f32 0.0, %v3235
      %v3237 = vpop.f32.mrb[0].mxu0
      %v3238 = vpop.f32.mrb[0].mxu0
      %v3239 = vadd.f32 0.0, %v3238
      %v3240 = vpop.f32.mrb[0].mxu0
      %3241 = vdwg.mxu0
      %3242 = vmatprep.subr.bf16.mxu0 0
      %3243 = vmatpush1.bf16.msra.mxu0 %v3049
      %3244 = vmatprep.subr.bf16.mxu0 0
      %3245 = vmatpush1.bf16.msra.mxu0 %v3050
      %3246 = vmatprep.subr.bf16.mxu0 0
      %3247 = vmatpush1.bf16.msra.mxu0 %v3051
      %3248 = vmatprep.subr.bf16.mxu0 0
      %3249 = vmatpush1.bf16.msra.mxu0 %v3052
      %3250 = vmatprep.subr.bf16.mxu0 0
      %3251 = vmatpush1.bf16.msra.mxu0 %v3053
      %3252 = vmatprep.subr.bf16.mxu0 0
      %3253 = vmatpush1.bf16.msra.mxu0 %v3054
      %3254 = vmatprep.subr.bf16.mxu0 0
      %3255 = vmatpush1.bf16.msra.mxu0 %v3055
      %3256 = vmatprep.subr.bf16.mxu0 0
      %3257 = vmatpush1.bf16.msra.mxu0 %v3056
      %3258 = vmatprep.subr.bf16.mxu0 0
      %3259 = vmatpush1.bf16.msra.mxu0 0
      %3260 = vmatprep.subr.bf16.mxu0 0
      %3261 = vmatpush1.bf16.msra.mxu0 0
      %3262 = vmatprep.subr.bf16.mxu0 0
      %3263 = vmatpush1.bf16.msra.mxu0 0
      %3264 = vmatprep.subr.bf16.mxu0 0
      %3265 = vmatpush1.bf16.msra.mxu0 0
      %3266 = vmatprep.subr.bf16.mxu0 0
      %3267 = vmatpush1.bf16.msra.mxu0 0
      %3268 = vmatprep.subr.bf16.mxu0 0
      %3269 = vmatpush1.bf16.msra.mxu0 0
      %3270 = vmatprep.subr.bf16.mxu0 0
      %3271 = vmatpush1.bf16.msra.mxu0 0
      %3272 = vmatprep.subr.bf16.mxu0 0
      %3273 = vmatpush1.bf16.msra.mxu0 0
      %3274 = vmatprep.mubr.bf16.mxu0 0
      %3275 = vmatmul.mubr.bf16.gmra.mrb[0].mxu0 %v2827
      %v3276 = vpop.f32.mrb[0].mxu0
      %v3277 = vadd.f32 %v3116, %v3276
      %v3278 = vpop.f32.mrb[0].mxu0
      %v3279 = vpop.f32.mrb[0].mxu0
      %v3280 = vadd.f32 %v3119, %v3279
      %v3281 = vpop.f32.mrb[0].mxu0
      %3282 = vmatprep.mubr.bf16.mxu0 0
      %3283 = vmatmul.mubr.bf16.gmra.mrb[0].mxu0 %v2830
      %v3284 = vpop.f32.mrb[0].mxu0
      %v3285 = vadd.f32 %v3124, %v3284
      %v3286 = vpop.f32.mrb[0].mxu0
      %v3287 = vpop.f32.mrb[0].mxu0
      %v3288 = vadd.f32 %v3127, %v3287
      %v3289 = vpop.f32.mrb[0].mxu0
      %3290 = vmatprep.mubr.bf16.mxu0 0
      %3291 = vmatmul.mubr.bf16.gmra.mrb[0].mxu0 %v2833
      %v3292 = vpop.f32.mrb[0].mxu0
      %v3293 = vadd.f32 %v3132, %v3292
      %v3294 = vpop.f32.mrb[0].mxu0
      %v3295 = vpop.f32.mrb[0].mxu0
      %v3296 = vadd.f32 %v3135, %v3295
      %v3297 = vpop.f32.mrb[0].mxu0
      %3298 = vmatprep.mubr.bf16.mxu0 0
      %3299 = vmatmul.mubr.bf16.gmra.mrb[0].mxu0 %v2836
      %v3300 = vpop.f32.mrb[0].mxu0
      %v3301 = vadd.f32 %v3140, %v3300
      %v3302 = vpop.f32.mrb[0].mxu0
      %v3303 = vpop.f32.mrb[0].mxu0
      %v3304 = vadd.f32 %v3143, %v3303
      %v3305 = vpop.f32.mrb[0].mxu0
      %3306 = vmatprep.mubr.bf16.mxu0 0
      %3307 = vmatmul.mubr.bf16.gmra.mrb[0].mxu0 %v2839
      %v3308 = vpop.f32.mrb[0].mxu0
      %v3309 = vadd.f32 %v3148, %v3308
      %v3310 = vpop.f32.mrb[0].mxu0
      %v3311 = vpop.f32.mrb[0].mxu0
      %v3312 = vadd.f32 %v3151, %v3311
      %v3313 = vpop.f32.mrb[0].mxu0
      %3314 = vmatprep.mubr.bf16.mxu0 0
      %3315 = vmatmul.mubr.bf16.gmra.mrb[0].mxu0 %v2842
      %v3316 = vpop.f32.mrb[0].mxu0
      %v3317 = vadd.f32 %v3156, %v3316
      %v3318 = vpop.f32.mrb[0].mxu0
      %v3319 = vpop.f32.mrb[0].mxu0
      %v3320 = vadd.f32 %v3159, %v3319
      %v3321 = vpop.f32.mrb[0].mxu0
      %3322 = vmatprep.mubr.bf16.mxu0 0
      %3323 = vmatmul.mubr.bf16.gmra.mrb[0].mxu0 %v2845
      %v3324 = vpop.f32.mrb[0].mxu0
      %v3325 = vadd.f32 %v3164, %v3324
      %v3326 = vpop.f32.mrb[0].mxu0
      %v3327 = vpop.f32.mrb[0].mxu0
      %v3328 = vadd.f32 %v3167, %v3327
      %v3329 = vpop.f32.mrb[0].mxu0
      %3330 = vmatprep.mubr.bf16.mxu0 0
      %3331 = vmatmul.mubr.bf16.gmra.mrb[0].mxu0 %v2848
      %v3332 = vpop.f32.mrb[0].mxu0
      %v3333 = vadd.f32 %v3172, %v3332
      %v3334 = vpop.f32.mrb[0].mxu0
      %v3335 = vpop.f32.mrb[0].mxu0
      %v3336 = vadd.f32 %v3175, %v3335
      %v3337 = vpop.f32.mrb[0].mxu0
      %3338 = vmatprep.mubr.bf16.mxu0 0
      %3339 = vmatmul.mubr.bf16.gmra.mrb[0].mxu0 %v2851
      %v3340 = vpop.f32.mrb[0].mxu0
      %v3341 = vadd.f32 %v3180, %v3340
      %v3342 = vpop.f32.mrb[0].mxu0
      %v3343 = vpop.f32.mrb[0].mxu0
      %v3344 = vadd.f32 %v3183, %v3343
      %v3345 = vpop.f32.mrb[0].mxu0
      %3346 = vmatprep.mubr.bf16.mxu0 0
      %3347 = vmatmul.mubr.bf16.gmra.mrb[0].mxu0 %v2854
      %v3348 = vpop.f32.mrb[0].mxu0
      %v3349 = vadd.f32 %v3188, %v3348
      %v3350 = vpop.f32.mrb[0].mxu0
      %v3351 = vpop.f32.mrb[0].mxu0
      %v3352 = vadd.f32 %v3191, %v3351
      %v3353 = vpop.f32.mrb[0].mxu0
      %3354 = vmatprep.mubr.bf16.mxu0 0
      %3355 = vmatmul.mubr.bf16.gmra.mrb[0].mxu0 %v2857
      %v3356 = vpop.f32.mrb[0].mxu0
      %v3357 = vadd.f32 %v3196, %v3356
      %v3358 = vpop.f32.mrb[0].mxu0
      %v3359 = vpop.f32.mrb[0].mxu0
      %v3360 = vadd.f32 %v3199, %v3359
      %v3361 = vpop.f32.mrb[0].mxu0
      %3362 = vmatprep.mubr.bf16.mxu0 0
      %3363 = vmatmul.mubr.bf16.gmra.mrb[0].mxu0 %v2860
      %v3364 = vpop.f32.mrb[0].mxu0
      %v3365 = vadd.f32 %v3204, %v3364
      %v3366 = vpop.f32.mrb[0].mxu0
      %v3367 = vpop.f32.mrb[0].mxu0
      %v3368 = vadd.f32 %v3207, %v3367
      %v3369 = vpop.f32.mrb[0].mxu0
      %3370 = vmatprep.mubr.bf16.mxu0 0
      %3371 = vmatmul.mubr.bf16.gmra.mrb[0].mxu0 %v2863
      %v3372 = vpop.f32.mrb[0].mxu0
      %v3373 = vadd.f32 %v3212, %v3372
      %v3374 = vpop.f32.mrb[0].mxu0
      %v3375 = vpop.f32.mrb[0].mxu0
      %v3376 = vadd.f32 %v3215, %v3375
      %v3377 = vpop.f32.mrb[0].mxu0
      %3378 = vmatprep.mubr.bf16.mxu0 0
      %3379 = vmatmul.mubr.bf16.gmra.mrb[0].mxu0 %v2866
      %v3380 = vpop.f32.mrb[0].mxu0
      %v3381 = vadd.f32 %v3220, %v3380
      %v3382 = vpop.f32.mrb[0].mxu0
      %v3383 = vpop.f32.mrb[0].mxu0
      %v3384 = vadd.f32 %v3223, %v3383
      %v3385 = vpop.f32.mrb[0].mxu0
      %3386 = vmatprep.mubr.bf16.mxu0 0
      %3387 = vmatmul.mubr.bf16.gmra.mrb[0].mxu0 %v2869
      %v3388 = vpop.f32.mrb[0].mxu0
      %v3389 = vadd.f32 %v3228, %v3388
      %v3390 = vpop.f32.mrb[0].mxu0
      %v3391 = vpop.f32.mrb[0].mxu0
      %v3392 = vadd.f32 %v3231, %v3391
      %v3393 = vpop.f32.mrb[0].mxu0
      %3394 = vmatprep.mubr.bf16.mxu0 0
      %3395 = vmatmul.mubr.bf16.gmra.mrb[0].mxu0 %v2872
      %v3396 = vpop.f32.mrb[0].mxu0
      %v3397 = vadd.f32 %v3236, %v3396
      %v3398 = vpop.f32.mrb[0].mxu0
      %v3399 = vpop.f32.mrb[0].mxu0
      %v3400 = vadd.f32 %v3239, %v3399
      %v3401 = vpop.f32.mrb[0].mxu0
      %3402 = vdwg.mxu0
      %v3403 = vadd.f32 %v2234, %v3277
      %v3404 = vadd.f32 %v2237, %v3280
      %v3405 = vadd.f32 %v2242, %v3285
      %v3406 = vadd.f32 %v2245, %v3288
      %v3407 = vadd.f32 %v2250, %v3293
      %v3408 = vadd.f32 %v2253, %v3296
      %v3409 = vadd.f32 %v2258, %v3301
      %v3410 = vadd.f32 %v2261, %v3304
      %v3411 = vadd.f32 %v2266, %v3309
      %v3412 = vadd.f32 %v2269, %v3312
      %v3413 = vadd.f32 %v2274, %v3317
      %v3414 = vadd.f32 %v2277, %v3320
      %v3415 = vadd.f32 %v2282, %v3325
      %v3416 = vadd.f32 %v2285, %v3328
      %v3417 = vadd.f32 %v2290, %v3333
      %v3418 = vadd.f32 %v2293, %v3336
      %v3419 = vadd.f32 %v2298, %v3341
      %v3420 = vadd.f32 %v2301, %v3344
      %v3421 = vadd.f32 %v2306, %v3349
      %v3422 = vadd.f32 %v2309, %v3352
      %v3423 = vadd.f32 %v2314, %v3357
      %v3424 = vadd.f32 %v2317, %v3360
      %v3425 = vadd.f32 %v2322, %v3365
      %v3426 = vadd.f32 %v2325, %v3368
      %v3427 = vadd.f32 %v2330, %v3373
      %v3428 = vadd.f32 %v2333, %v3376
      %v3429 = vadd.f32 %v2338, %v3381
      %v3430 = vadd.f32 %v2341, %v3384
      %v3431 = vadd.f32 %v2346, %v3389
      %v3432 = vadd.f32 %v2349, %v3392
      %v3433 = vadd.f32 %v2354, %v3397
      %v3434 = vadd.f32 %v2357, %v3400
      %v3435 = vadd.f32 %v3403, %v3404
      %v3436 = vadd.f32 %v3435, %v3405
      %v3437 = vadd.f32 %v3436, %v3406
      %v3438 = vadd.f32 %v3437, %v3407
      %v3439 = vadd.f32 %v3438, %v3408
      %v3440 = vadd.f32 %v3439, %v3409
      %v3441 = vadd.f32 %v3440, %v3410
      %v3442 = vadd.f32 %v3441, %v3411
      %v3443 = vadd.f32 %v3442, %v3412
      %v3444 = vadd.f32 %v3443, %v3413
      %v3445 = vadd.f32 %v3444, %v3414
      %v3446 = vadd.f32 %v3445, %v3415
      %v3447 = vadd.f32 %v3446, %v3416
      %v3448 = vadd.f32 %v3447, %v3417
      %v3449 = vadd.f32 %v3448, %v3418
      %v3450 = vadd.f32 %v3449, %v3419
      %v3451 = vadd.f32 %v3450, %v3420
      %v3452 = vadd.f32 %v3451, %v3421
      %v3453 = vadd.f32 %v3452, %v3422
      %v3454 = vadd.f32 %v3453, %v3423
      %v3455 = vadd.f32 %v3454, %v3424
      %v3456 = vadd.f32 %v3455, %v3425
      %v3457 = vadd.f32 %v3456, %v3426
      %v3458 = vadd.f32 %v3457, %v3427
      %v3459 = vadd.f32 %v3458, %v3428
      %v3460 = vadd.f32 %v3459, %v3429
      %v3461 = vadd.f32 %v3460, %v3430
      %v3462 = vadd.f32 %v3461, %v3431
      %v3463 = vadd.f32 %v3462, %v3432
      %v3464 = vadd.f32 %v3463, %v3433
      %v3465 = vadd.f32 %v3464, %v3434
      %v3466 = vrot.slane %v3465, 4
      %v3467 = vadd.f32 %v3465, %v3466
      %v3468 = vrot.slane %v3467, 2
      %v3469 = vadd.f32 %v3467, %v3468
      %v3470 = vrot.slane %v3469, 1
      %v3471 = vadd.f32 %v3469, %v3470
      %v3472 = vmul.f32 %v3403, %v3403
      %v3473 = vmul.f32 %v3404, %v3404
      %v3474 = vmul.f32 %v3405, %v3405
      %v3475 = vmul.f32 %v3406, %v3406
      %v3476 = vmul.f32 %v3407, %v3407
      %v3477 = vmul.f32 %v3408, %v3408
      %v3478 = vmul.f32 %v3409, %v3409
      %v3479 = vmul.f32 %v3410, %v3410
      %v3480 = vmul.f32 %v3411, %v3411
      %v3481 = vmul.f32 %v3412, %v3412
      %v3482 = vmul.f32 %v3413, %v3413
      %v3483 = vmul.f32 %v3414, %v3414
      %v3484 = vmul.f32 %v3415, %v3415
      %v3485 = vmul.f32 %v3416, %v3416
      %v3486 = vmul.f32 %v3417, %v3417
      %v3487 = vmul.f32 %v3418, %v3418
      %v3488 = vmul.f32 %v3419, %v3419
      %v3489 = vmul.f32 %v3420, %v3420
      %v3490 = vmul.f32 %v3421, %v3421
      %v3491 = vmul.f32 %v3422, %v3422
      %v3492 = vmul.f32 %v3423, %v3423
      %v3493 = vmul.f32 %v3424, %v3424
      %v3494 = vmul.f32 %v3425, %v3425
      %v3495 = vmul.f32 %v3426, %v3426
      %v3496 = vmul.f32 %v3427, %v3427
      %v3497 = vmul.f32 %v3428, %v3428
      %v3498 = vmul.f32 %v3429, %v3429
      %v3499 = vmul.f32 %v3430, %v3430
      %v3500 = vmul.f32 %v3431, %v3431
      %v3501 = vmul.f32 %v3432, %v3432
      %v3502 = vmul.f32 %v3433, %v3433
      %v3503 = vmul.f32 %v3434, %v3434
      %v3504 = vadd.f32 %v3472, %v3473
      %v3505 = vadd.f32 %v3504, %v3474
      %v3506 = vadd.f32 %v3505, %v3475
      %v3507 = vadd.f32 %v3506, %v3476
      %v3508 = vadd.f32 %v3507, %v3477
      %v3509 = vadd.f32 %v3508, %v3478
      %v3510 = vadd.f32 %v3509, %v3479
      %v3511 = vadd.f32 %v3510, %v3480
      %v3512 = vadd.f32 %v3511, %v3481
      %v3513 = vadd.f32 %v3512, %v3482
      %v3514 = vadd.f32 %v3513, %v3483
      %v3515 = vadd.f32 %v3514, %v3484
      %v3516 = vadd.f32 %v3515, %v3485
      %v3517 = vadd.f32 %v3516, %v3486
      %v3518 = vadd.f32 %v3517, %v3487
      %v3519 = vadd.f32 %v3518, %v3488
      %v3520 = vadd.f32 %v3519, %v3489
      %v3521 = vadd.f32 %v3520, %v3490
      %v3522 = vadd.f32 %v3521, %v3491
      %v3523 = vadd.f32 %v3522, %v3492
      %v3524 = vadd.f32 %v3523, %v3493
      %v3525 = vadd.f32 %v3524, %v3494
      %v3526 = vadd.f32 %v3525, %v3495
      %v3527 = vadd.f32 %v3526, %v3496
      %v3528 = vadd.f32 %v3527, %v3497
      %v3529 = vadd.f32 %v3528, %v3498
      %v3530 = vadd.f32 %v3529, %v3499
      %v3531 = vadd.f32 %v3530, %v3500
      %v3532 = vadd.f32 %v3531, %v3501
      %v3533 = vadd.f32 %v3532, %v3502
      %v3534 = vadd.f32 %v3533, %v3503
      %v3535 = vrot.slane %v3534, 4
      %v3536 = vadd.f32 %v3534, %v3535
      %v3537 = vrot.slane %v3536, 2
      %v3538 = vadd.f32 %v3536, %v3537
      %v3539 = vrot.slane %v3538, 1
      %v3540 = vadd.f32 %v3538, %v3539
      %3541 = vst [vmem:[%s264] sm:$0xff] %v3471
      %3542 = vst [vmem:[%s271] sm:$0xff] %v3540
      %v3543 = vpack.c.bf16 %v3404, %v3403
      %v3544 = vpack.c.bf16 %v3406, %v3405
      %v3545 = vpack.c.bf16 %v3408, %v3407
      %v3546 = vpack.c.bf16 %v3410, %v3409
      %v3547 = vpack.c.bf16 %v3412, %v3411
      %v3548 = vpack.c.bf16 %v3414, %v3413
      %v3549 = vpack.c.bf16 %v3416, %v3415
      %v3550 = vpack.c.bf16 %v3418, %v3417
      %v3551 = vpack.c.bf16 %v3420, %v3419
      %v3552 = vpack.c.bf16 %v3422, %v3421
      %v3553 = vpack.c.bf16 %v3424, %v3423
      %v3554 = vpack.c.bf16 %v3426, %v3425
      %v3555 = vpack.c.bf16 %v3428, %v3427
      %v3556 = vpack.c.bf16 %v3430, %v3429
      %v3557 = vpack.c.bf16 %v3432, %v3431
      %v3558 = vpack.c.bf16 %v3434, %v3433
      %v3575 = vunpack.c.l.b16 %v3543
      %v3576 = vunpack.c.h.b16 %v3543
      %v3577 = vunpack.c.l.b16 %v3544
      %v3578 = vunpack.c.h.b16 %v3544
      %v3579 = vunpack.c.l.b16 %v3545
      %v3580 = vunpack.c.h.b16 %v3545
      %v3581 = vunpack.c.l.b16 %v3546
      %v3582 = vunpack.c.h.b16 %v3546
      %v3583 = vunpack.c.l.b16 %v3547
      %v3584 = vunpack.c.h.b16 %v3547
      %v3585 = vunpack.c.l.b16 %v3548
      %v3586 = vunpack.c.h.b16 %v3548
      %v3587 = vunpack.c.l.b16 %v3549
      %v3588 = vunpack.c.h.b16 %v3549
      %v3589 = vunpack.c.l.b16 %v3550
      %v3590 = vunpack.c.h.b16 %v3550
      %v3591 = vunpack.c.l.b16 %v3551
      %v3592 = vunpack.c.h.b16 %v3551
      %v3593 = vunpack.c.l.b16 %v3552
      %v3594 = vunpack.c.h.b16 %v3552
      %v3595 = vunpack.c.l.b16 %v3553
      %v3596 = vunpack.c.h.b16 %v3553
      %v3597 = vunpack.c.l.b16 %v3554
      %v3598 = vunpack.c.h.b16 %v3554
      %v3599 = vunpack.c.l.b16 %v3555
      %v3600 = vunpack.c.h.b16 %v3555
      %v3601 = vunpack.c.l.b16 %v3556
      %v3602 = vunpack.c.h.b16 %v3556
      %v3603 = vunpack.c.l.b16 %v3557
      %v3604 = vunpack.c.h.b16 %v3557
      %v3605 = vunpack.c.l.b16 %v3558
      %v3606 = vunpack.c.h.b16 %v3558
      %v3607 = vpack.c.b16 %v3575, %v3575
      %v3608 = vpack.c.b16 %v3576, %v3576
      %v3609 = vpack.c.b16 %v3577, %v3577
      %v3610 = vpack.c.b16 %v3578, %v3578
      %v3611 = vpack.c.b16 %v3579, %v3579
      %v3612 = vpack.c.b16 %v3580, %v3580
      %v3613 = vpack.c.b16 %v3581, %v3581
      %v3614 = vpack.c.b16 %v3582, %v3582
      %v3615 = vpack.c.b16 %v3583, %v3583
      %v3616 = vpack.c.b16 %v3584, %v3584
      %v3617 = vpack.c.b16 %v3585, %v3585
      %v3618 = vpack.c.b16 %v3586, %v3586
      %v3619 = vpack.c.b16 %v3587, %v3587
      %v3620 = vpack.c.b16 %v3588, %v3588
      %v3621 = vpack.c.b16 %v3589, %v3589
      %v3622 = vpack.c.b16 %v3590, %v3590
      %v3623 = vpack.c.b16 %v3591, %v3591
      %v3624 = vpack.c.b16 %v3592, %v3592
      %v3625 = vpack.c.b16 %v3593, %v3593
      %v3626 = vpack.c.b16 %v3594, %v3594
      %v3627 = vpack.c.b16 %v3595, %v3595
      %v3628 = vpack.c.b16 %v3596, %v3596
      %v3629 = vpack.c.b16 %v3597, %v3597
      %v3630 = vpack.c.b16 %v3598, %v3598
      %v3631 = vpack.c.b16 %v3599, %v3599
      %v3632 = vpack.c.b16 %v3600, %v3600
      %v3633 = vpack.c.b16 %v3601, %v3601
      %v3634 = vpack.c.b16 %v3602, %v3602
      %v3635 = vpack.c.b16 %v3603, %v3603
      %v3636 = vpack.c.b16 %v3604, %v3604
      %v3637 = vpack.c.b16 %v3605, %v3605
      %v3638 = vpack.c.b16 %v3606, %v3606
      %3671 = vst [vmem:[%s256] sm:$0xf] %v3607
      %3672 = vst [vmem:[%s256 + $0x4] sm:$0xf] %v3608
      %3673 = vst [vmem:[%s256 + $0x8] sm:$0xf] %v3609
      %3674 = vst [vmem:[%s256 + $0xc] sm:$0xf] %v3610
      %3675 = vst [vmem:[%s256 + $0x10] sm:$0xf] %v3611
      %3676 = vst [vmem:[%s256 + $0x14] sm:$0xf] %v3612
      %3677 = vst [vmem:[%s256 + $0x18] sm:$0xf] %v3613
      %3678 = vst [vmem:[%s256 + $0x1c] sm:$0xf] %v3614
      %3679 = vst [vmem:[%s256 + $0x20] sm:$0xf] %v3615
      %3680 = vst [vmem:[%s256 + $0x24] sm:$0xf] %v3616
      %3681 = vst [vmem:[%s256 + $0x28] sm:$0xf] %v3617
      %3682 = vst [vmem:[%s256 + $0x2c] sm:$0xf] %v3618
      %3683 = vst [vmem:[%s256 + $0x30] sm:$0xf] %v3619
      %3684 = vst [vmem:[%s256 + $0x34] sm:$0xf] %v3620
      %3685 = vst [vmem:[%s256 + $0x38] sm:$0xf] %v3621
      %3686 = vst [vmem:[%s256 + $0x3c] sm:$0xf] %v3622
      %3687 = vst [vmem:[%s256 + $0x40] sm:$0xf] %v3623
      %3688 = vst [vmem:[%s256 + $0x44] sm:$0xf] %v3624
      %3689 = vst [vmem:[%s256 + $0x48] sm:$0xf] %v3625
      %3690 = vst [vmem:[%s256 + $0x4c] sm:$0xf] %v3626
      %3691 = vst [vmem:[%s256 + $0x50] sm:$0xf] %v3627
      %3692 = vst [vmem:[%s256 + $0x54] sm:$0xf] %v3628
      %3693 = vst [vmem:[%s256 + $0x58] sm:$0xf] %v3629
      %3694 = vst [vmem:[%s256 + $0x5c] sm:$0xf] %v3630
      %3695 = vst [vmem:[%s256 + $0x60] sm:$0xf] %v3631
      %3696 = vst [vmem:[%s256 + $0x64] sm:$0xf] %v3632
      %3697 = vst [vmem:[%s256 + $0x68] sm:$0xf] %v3633
      %3698 = vst [vmem:[%s256 + $0x6c] sm:$0xf] %v3634
      %3699 = vst [vmem:[%s256 + $0x70] sm:$0xf] %v3635
      %3700 = vst [vmem:[%s256 + $0x74] sm:$0xf] %v3636
      %3701 = vst [vmem:[%s256 + $0x78] sm:$0xf] %v3637
      %3702 = vst [vmem:[%s256 + $0x7c] sm:$0xf] %v3638
      %s3703 = smul.u32 32, %s21
      %p3704 = scmp.lt.s32.totalorder %s20, 1
      %s3705 = scalar_select %p3704, %s20, 1
      %p3706 = scmp.lt.s32.totalorder %s3703, 31
      %s3707 = scalar_select %p3706, %s3703, 31
      %s3708 = smul.addr %s3705, 32
      %s3709 = sadd.s32 %s3707, %s3708
      %s3710 = smul.addr %s3709, 4
      %s3711 = scalar_lea.vmem %s2, %s3710
      %p3712 = scmp.lt.s32.totalorder %s20, 1
      %s3713 = scalar_select %p3712, %s20, 1
      %p3714 = scmp.lt.s32.totalorder %s21, 0
      %s3715 = scalar_select %p3714, %s21, 0
      %s3716 = sadd.s32 %s3715, %s3713
      %s3717 = smul.addr %s3716, 8
      %s3718 = scalar_lea.vmem %s3, %s3717
      %p3719 = scmp.lt.s32.totalorder %s20, 1
      %s3720 = scalar_select %p3719, %s20, 1
      %p3721 = scmp.lt.s32.totalorder %s21, 0
      %s3722 = scalar_select %p3721, %s21, 0
      %s3723 = sadd.s32 %s3722, %s3720
      %s3724 = smul.addr %s3723, 8
      %s3725 = scalar_lea.vmem %s4, %s3724
      // Predicated region
      $region29: #{residual_block_forward.4} parent=27 // pred_check
        %p3726 = pneg %p97
      $region30: #{residual_block_forward.4} parent=27 // pred_check_branch
        %3728 = sbr.rel (%p3726) target = $region32
      $region31: #{residual_block_forward.4} parent=27 // pred_region
        %s3729 = smul.u32 32, %s21
      $region32: #{residual_block_forward.4} parent=27 // pred_fallthru
        _
      // Predicated region
      $region33: #{residual_block_forward.4} parent=27 // pred_check
        %p3730 = pneg %p125
      $region34: #{residual_block_forward.4} parent=27 // pred_check_branch
        %3732 = sbr.rel (%p3730) target = $region36
      $region35: #{residual_block_forward.4} parent=27 // pred_region
        _
      $region36: #{residual_block_forward.4} parent=27 // pred_fallthru
        _
      // Predicated region
      $region37: #{residual_block_forward.4} parent=27 // pred_check
        %p3733 = pneg %p153
      $region38: #{residual_block_forward.4} parent=27 // pred_check_branch
        %3735 = sbr.rel (%p3733) target = $region40
      $region39: #{residual_block_forward.4} parent=27 // pred_region
        _
      $region40: #{residual_block_forward.4} parent=27 // pred_fallthru
        _
    $region28: #{residual_block_forward.4} parent=5 // pred_fallthru
      _
    %p3736 = scmp.le.s32.totalorder 2, %s11
    // Predicated region
    $region41: #{residual_block_forward.4} parent=5 // pred_check
      %p3737 = pneg %p3736
    $region42: #{residual_block_forward.4} parent=5 // pred_check_branch
      %3739 = sbr.rel (%p3737) target = $region44
    $region43: #{residual_block_forward.4} parent=5 // pred_region
      %s3740 = ssub.s32 %s11, 2
      // Predicated region
      $region45: #{residual_block_forward.4} parent=43 // pred_check
        %p3741 = pneg %p103
      $region46: #{residual_block_forward.4} parent=43 // pred_check_branch
        %3743 = sbr.rel (%p3741) target = $region48
      $region47: #{residual_block_forward.4} parent=43 // pred_region
        %s3744 = smul.u32 32, %s23
        %p3745 = scmp.lt.s32.totalorder %s22, 1
        %s3746 = scalar_select %p3745, %s22, 1
        %p3747 = scmp.lt.s32.totalorder %s3744, 31
        %s3748 = scalar_select %p3747, %s3744, 31
        %s3749 = smul.addr %s3746, 32
        %s3750 = sadd.s32 %s3748, %s3749
        %s3751 = smul.addr %s3750, 4
        %s3752 = scalar_lea.vmem %s2, %s3751
      $region48: #{residual_block_forward.4} parent=43 // pred_fallthru
        _
      // Predicated region
      $region49: #{residual_block_forward.4} parent=43 // pred_check
        %p3753 = pneg %p131
      $region50: #{residual_block_forward.4} parent=43 // pred_check_branch
        %3755 = sbr.rel (%p3753) target = $region52
      $region51: #{residual_block_forward.4} parent=43 // pred_region
        %p3756 = scmp.lt.s32.totalorder %s22, 1
        %s3757 = scalar_select %p3756, %s22, 1
        %p3758 = scmp.lt.s32.totalorder %s23, 0
        %s3759 = scalar_select %p3758, %s23, 0
        %s3760 = sadd.s32 %s3759, %s3757
        %s3761 = smul.addr %s3760, 8
        %s3762 = scalar_lea.vmem %s3, %s3761
      $region52: #{residual_block_forward.4} parent=43 // pred_fallthru
        _
      // Predicated region
      $region53: #{residual_block_forward.4} parent=43 // pred_check
        %p3763 = pneg %p159
      $region54: #{residual_block_forward.4} parent=43 // pred_check_branch
        %3765 = sbr.rel (%p3763) target = $region56
      $region55: #{residual_block_forward.4} parent=43 // pred_region
        %p3766 = scmp.lt.s32.totalorder %s22, 1
        %s3767 = scalar_select %p3766, %s22, 1
        %p3768 = scmp.lt.s32.totalorder %s23, 0
        %s3769 = scalar_select %p3768, %s23, 0
        %s3770 = sadd.s32 %s3769, %s3767
        %s3771 = smul.addr %s3770, 8
        %s3772 = scalar_lea.vmem %s4, %s3771
      $region56: #{residual_block_forward.4} parent=43 // pred_fallthru
        _
    $region44: #{residual_block_forward.4} parent=5 // pred_fallthru
      _
  $region6: #{residual_block_forward.4} parent=0 // loop_footer
    %s15 = sadd.s32 1, %s11
  $region7: #{residual_block_forward.4} parent=0 // loop_footer_branch
    %10 = sbr.rel target = $region3
  $region8: #{residual_block_forward.4} parent=0 // loop_exit
    _

</llo_original>
